<compile_context>
chip_gen: v7x
topology: tpu7x:2x2x1
jax: 0.10.0
libtpu: 0.0.40
codegen_flags: <defaults>
</compile_context>

<pallas_src>
import functools

import jax
import jax.numpy as jnp
from jax import lax
from jax.experimental import pallas as pl
from jax.experimental.pallas import tpu as pltpu

PSP_SIZES = (1, 2, 3, 6)
_NS = sum(s * s for s in PSP_SIZES)          # 50 pooled prior rows total
_VMEM_LIMIT = 48 * 1024 * 1024               # explicit scoped-VMEM cap (all gens)


def _row_tile(n):
    """Row tile (multiple of 128).  Rows are padded UP to a tile multiple, so
    the tile never silently shrinks to an awkward divisor of H*W."""
    if n % 512 == 0 or n >= 4096:
        return 512
    if n % 256 == 0 or n >= 2048:
        return 256
    return 128


def _round_up(n, m):
    return -(-n // m) * m


# --------------------------- PSP bottleneck kernel -------------------------- #

def _psp_kernel(x_ref, u_ref, sm_ref, wx_ref, b_ref, o_ref):
    """One row tile of  relu( x^T @ W_x + U @ small + b )  ->  (tile, mid).

    x_ref is a channels-first (1, C, tile) block taken straight from the NCHW
    input (no wrapper transpose); the channel contraction is expressed via the
    dot_general dimension numbers so the MXU consumes it as a transposed-LHS
    matmul."""
    acc = lax.dot_general(x_ref[0], wx_ref[...], (((0,), (0,)), ((), ())),
                          preferred_element_type=jnp.float32)        # (tile, mid)
    acc = acc + jnp.dot(u_ref[...], sm_ref[0],
                        preferred_element_type=jnp.float32)
    acc = acc + b_ref[...]
    o_ref[0] = jnp.maximum(acc, 0.0).astype(o_ref.dtype)


# ----------------------- phi / g projection kernel -------------------------- #

def _kv_proj_kernel(x_ref, pw_ref, pb_ref, gw_ref, gb_ref, phi_ref, g_ref):
    """phi / g 1x1 convs of the key/value features, written as two separate
    outputs (no lane-boundary slicing of a packed result)."""
    x = x_ref[0]                                                      # (tile, mid)
    phi = jnp.dot(x, pw_ref[...], preferred_element_type=jnp.float32) + pb_ref[...]
    g = jnp.dot(x, gw_ref[...], preferred_element_type=jnp.float32) + gb_ref[...]
    phi_ref[0] = phi.astype(phi_ref.dtype)
    g_ref[0] = g.astype(g_ref.dtype)


# ----------------- flash-style non-local tail (attention) ------------------- #

def _attn_tail_kernel(x1_ref, phi_ref, g_ref, thw_ref, thb_ref,
                      wout_ref, ow_ref, ob_ref, o_ref,
                      th_scr, m_scr, l_scr, acc_scr,
                      *, nk_valid, tk, mask_keys):
    ki = pl.program_id(2)

    @pl.when(ki == 0)
    def _():
        # theta projection of this query tile, kept resident across key tiles.
        th = jnp.dot(x1_ref[0], thw_ref[...],
                     preferred_element_type=jnp.float32) + thb_ref[...]
        th_scr[...] = th.astype(th_scr.dtype)
        m_scr[...] = jnp.full(m_scr.shape, -jnp.inf, m_scr.dtype)
        l_scr[...] = jnp.zeros(l_scr.shape, l_scr.dtype)
        acc_scr[...] = jnp.zeros(acc_scr.shape, acc_scr.dtype)

    # scores for this key tile: theta @ phi^T  (bf16 operands, f32 accumulate).
    s = lax.dot_general(th_scr[...], phi_ref[0], (((1,), (1,)), ((), ())),
                        preferred_element_type=jnp.float32)           # (tq, tk)
    if mask_keys:
        kidx = ki * tk + lax.broadcasted_iota(jnp.int32, s.shape, 1)
        s = jnp.where(kidx < nk_valid, s, -jnp.inf)

    # online softmax update (f32 elementwise math — safe on v5e too).
    m_prev = m_scr[...]
    m_new = jnp.maximum(m_prev, jnp.max(s, axis=-1, keepdims=True))
    alpha = jnp.exp(m_prev - m_new)
    pexp = jnp.exp(s - m_new)
    l_scr[...] = alpha * l_scr[...] + jnp.sum(pexp, axis=-1, keepdims=True)
    acc_scr[...] = alpha * acc_scr[...] + jnp.dot(
        pexp.astype(g_ref.dtype), g_ref[0], preferred_element_type=jnp.float32)
    m_scr[...] = m_new

    @pl.when(ki == pl.num_programs(2) - 1)
    def _():
        # folded W + residual + out_layer:
        #   out = y @ (W_w @ out_w) + x1 @ out_w + (W_b @ out_w + out_b)
        inv_l = pl.reciprocal(l_scr[...], approx=True)
        y = (acc_scr[...] * inv_l).astype(wout_ref.dtype)              # (tq, inter)
        out = jnp.dot(y, wout_ref[...], preferred_element_type=jnp.float32)
        out = out + jnp.dot(x1_ref[0], ow_ref[...],
                            preferred_element_type=jnp.float32)
        out = out + ob_ref[...]
        o_ref[0] = out.astype(o_ref.dtype)


# ------------------------------ wrapper helpers ------------------------------ #

def _pooled_small(x_nchw, p):
    """Folded PSP priors: concat_s( pool_s(x) @ (stage_w_s @ bneck_s) ) -> (2B,50,mid)."""
    B2, C, H, W = x_nchw.shape
    xs = x_nchw.astype(jnp.float32)
    smalls = []
    for i, s in enumerate(PSP_SIZES):
        # TODO(synk): exact-block averaging requires H, W divisible by s; torch
        # AdaptiveAvgPool2d also handles uneven windows.
        pooled = xs.reshape(B2, C, s, H // s, s, W // s).mean(axis=(3, 5))
        pooled = pooled.reshape(B2, C, s * s)
        # stage 1x1 conv (bias=False) folded into the matching bottleneck slice.
        # TODO(synk): assumes the torch concat order [prior_1,prior_2,prior_3,prior_6,x].
        w_comb = p["stage_w"][i] @ p["bottleneck_w"][i * C:(i + 1) * C]   # (C, mid)
        smalls.append(jnp.einsum("bcn,cm->bnm", pooled, w_comb))
    return jnp.concatenate(smalls, axis=1)                                # (2B,50,mid)


def _interp_matrix(H, W, size, dtype):
    """(H*W, size*size) matrix equivalent to bilinear upsample size -> (H, W).
    TODO(synk): jax.image.resize bilinear == align_corners=False; some PSP
    implementations use align_corners=True."""
    eye = jnp.eye(size * size, dtype=jnp.float32)
    up = lambda e: jax.image.resize(e.reshape(size, size), (H, W),
                                    method="bilinear").reshape(-1)
    return jax.vmap(up)(eye).T.astype(dtype)                              # (N, s*s)


# ------------------------------- full forward ------------------------------- #

def nonlocal_psp_correlation(x1, x2, p):
    """Forward of Nonlocal_psp_correlation; x1, x2 are NCHW (B, conv_planes, H, W)."""
    B, C, H, W = x1.shape
    N = H * W
    mid = p["bottleneck_w"].shape[1]
    inter = p["theta_w"].shape[1]
    op = p["out_w"].shape[1]
    odt = x1.dtype
    cdt = jnp.bfloat16                        # MXU operand dtype (f32 accumulation)

    tile = _row_tile(N)
    NP = _round_up(N, tile)

    # ---- XLA-side prep: stack x1/x2 (both go through the PSP conv_layer),
    # bf16 cast, pad rows up to the tile multiple.
    # TODO(synk): reference forward only applies conv_layer to x1 when
    # x1.size(1) == x2.size(1); the unequal-channel branch is not implemented.
    x12 = jnp.concatenate([x1, x2], axis=0)                               # (2B,C,H,W)
    small = _pooled_small(x12, p).astype(cdt)                             # (2B,50,mid)
    x12f = jnp.pad(x12.reshape(2 * B, C, N).astype(cdt),
                   ((0, 0), (0, 0), (0, NP - N)))                         # (2B,C,NP)

    U = jnp.concatenate([_interp_matrix(H, W, s, cdt) for s in PSP_SIZES], 1)
    U = jnp.pad(U, ((0, NP - N), (0, 0)))                                 # (NP, 50)

    wx = p["bottleneck_w"][4 * C:].astype(cdt)                            # (C, mid)
    bb = p["bottleneck_b"].reshape(1, mid).astype(jnp.float32)

    # ---- PSP bottleneck for x1 and x2 in a SINGLE pallas_call (stacked batch).
    x12m = pl.pallas_call(
        _psp_kernel,
        out_shape=jax.ShapeDtypeStruct((2 * B, NP, mid), cdt),
        grid=(2 * B, NP // tile),
        in_specs=[
            pl.BlockSpec((1, C, tile), lambda b, j: (b, 0, j)),
            pl.BlockSpec((tile, _NS), lambda b, j: (j, 0)),
            pl.BlockSpec((1, _NS, mid), lambda b, j: (b, 0, 0)),
            pl.BlockSpec((C, mid), lambda b, j: (0, 0)),
            pl.BlockSpec((1, mid), lambda b, j: (0, 0)),
        ],
        out_specs=pl.BlockSpec((1, tile, mid), lambda b, j: (b, j, 0)),
        compiler_params=pltpu.CompilerParams(
            dimension_semantics=("parallel", "parallel"),
            vmem_limit_bytes=_VMEM_LIMIT),
    )(x12f, U, small, wx, bb)                                             # (2B,NP,mid)

    # ---- phi/g projections of the key/value half (x2), hoisted out of the
    # attention kernel so its query axis is fully parallel on megacore.
    phi, g = pl.pallas_call(
        _kv_proj_kernel,
        out_shape=(jax.ShapeDtypeStruct((B, NP, inter), cdt),
                   jax.ShapeDtypeStruct((B, NP, inter), cdt)),
        grid=(B, NP // tile),
        in_specs=[
            pl.BlockSpec((1, tile, mid), lambda b, j: (b + B, j, 0)),
            pl.BlockSpec((mid, inter), lambda b, j: (0, 0)),
            pl.BlockSpec((1, inter), lambda b, j: (0, 0)),
            pl.BlockSpec((mid, inter), lambda b, j: (0, 0)),
            pl.BlockSpec((1, inter), lambda b, j: (0, 0)),
        ],
        out_specs=(pl.BlockSpec((1, tile, inter), lambda b, j: (b, j, 0)),
                   pl.BlockSpec((1, tile, inter), lambda b, j: (b, j, 0))),
        compiler_params=pltpu.CompilerParams(
            dimension_semantics=("parallel", "parallel"),
            vmem_limit_bytes=_VMEM_LIMIT),
    )(x12m, p["phi_w"].astype(cdt),
      p["phi_b"].reshape(1, inter).astype(jnp.float32),
      p["g_w"].astype(cdt),
      p["g_b"].reshape(1, inter).astype(jnp.float32))

    # ---- fold W + out_layer weights.
    # TODO(synk): NONLocalBlock2D's optional zero-init BN on W (bn_layer=True)
    # and the sub_sample max-pool are omitted.
    wout = (p["W_w"] @ p["out_w"]).astype(cdt)                            # (inter, op)
    ow = p["out_w"].astype(cdt)                                           # (mid, op)
    bout = (p["W_b"] @ p["out_w"] + p["out_b"]).reshape(1, op).astype(jnp.float32)
    thw = p["theta_w"].astype(cdt)
    thb = p["theta_b"].reshape(1, inter).astype(jnp.float32)

    kern = functools.partial(_attn_tail_kernel, nk_valid=N, tk=tile,
                             mask_keys=(NP != N))
    out = pl.pallas_call(
        kern,
        out_shape=jax.ShapeDtypeStruct((B, NP, op), odt),
        grid=(B, NP // tile, NP // tile),
        in_specs=[
            pl.BlockSpec((1, tile, mid), lambda b, qi, ki: (b, qi, 0)),
            pl.BlockSpec((1, tile, inter), lambda b, qi, ki: (b, ki, 0)),
            pl.BlockSpec((1, tile, inter), lambda b, qi, ki: (b, ki, 0)),
            pl.BlockSpec((mid, inter), lambda b, qi, ki: (0, 0)),
            pl.BlockSpec((1, inter), lambda b, qi, ki: (0, 0)),
            pl.BlockSpec((inter, op), lambda b, qi, ki: (0, 0)),
            pl.BlockSpec((mid, op), lambda b, qi, ki: (0, 0)),
            pl.BlockSpec((1, op), lambda b, qi, ki: (0, 0)),
        ],
        out_specs=pl.BlockSpec((1, tile, op), lambda b, qi, ki: (b, qi, 0)),
        scratch_shapes=[pltpu.VMEM((tile, inter), cdt),           # theta
                        pltpu.VMEM((tile, 1), jnp.float32),       # running max
                        pltpu.VMEM((tile, 1), jnp.float32),       # running sum
                        pltpu.VMEM((tile, inter), jnp.float32)],  # y accumulator
        compiler_params=pltpu.CompilerParams(
            dimension_semantics=("parallel", "parallel", "arbitrary"),
            vmem_limit_bytes=_VMEM_LIMIT),
    )(x12m, phi, g, thw, thb, wout, ow, bout)

    # TODO(synk): out_planes < 128 still produces masked (partial-lane) stores;
    # a channels-first (B, out, N) output block would make them lane-dense.
    out = out[:, :N, :].reshape(B, H, W, op)
    return jnp.transpose(out, (0, 3, 1, 2))                               # NCHW


def init_params(key, conv_planes, out_planes, mid_channels):
    inter = mid_channels // 2
    keys = jax.random.split(key, 16)

    def w(k, shape, scale=0.05):
        return scale * jax.random.normal(k, shape, jnp.float32)

    return {
        # PSP stage 1x1 convs (bias=False), weight stored as (Cin, Cout).
        "stage_w": [w(keys[i], (conv_planes, conv_planes)) for i in range(4)],
        "bottleneck_w": w(keys[4], (5 * conv_planes, mid_channels)),
        "bottleneck_b": w(keys[5], (mid_channels,)),
        # Non-local block (inter = mid // 2).
        "theta_w": w(keys[6], (mid_channels, inter)),
        "theta_b": w(keys[7], (inter,)),
        "phi_w": w(keys[8], (mid_channels, inter)),
        "phi_b": w(keys[9], (inter,)),
        "g_w": w(keys[10], (mid_channels, inter)),
        "g_b": w(keys[11], (inter,)),
        "W_w": w(keys[12], (inter, mid_channels)),
        "W_b": w(keys[13], (mid_channels,)),
        # out_layer 1x1 conv (bias=True).
        "out_w": w(keys[14], (mid_channels, out_planes)),
        "out_b": w(keys[15], (out_planes,)),
    }


if __name__ == "__main__":
    key = jax.random.PRNGKey(0)
    k1, k2, kp = jax.random.split(key, 3)

    # Small shapes consistent with the module: conv_planes-channel NCHW inputs;
    # H=W=24 is divisible by every PSP pooling size, and N=576 is NOT a tile
    # multiple, so the row-padding + key-masking paths are exercised.
    B, conv_planes, H, W = 2, 32, 24, 24
    out_planes, mid_channels = 8, 16

    x1 = jax.random.normal(k1, (B, conv_planes, H, W), jnp.float32)
    x2 = jax.random.normal(k2, (B, conv_planes, H, W), jnp.float32)
    params = init_params(kp, conv_planes, out_planes, mid_channels)

    fwd = jax.jit(nonlocal_psp_correlation)
    out = fwd(x1, x2, params)
    jax.block_until_ready(out)
    assert out.shape == (B, out_planes, H, W), out.shape
    assert bool(jnp.all(jnp.isfinite(out)))
    print("KERNEL_OK")
</pallas_src>

<mosaic_0001>
module attributes {stable_mosaic.version = 11 : i64} {
  func.func @_psp_kernel(%arg0: i32, %arg1: i32, %arg2: memref<1x32x128xbf16, #tpu.memory_space<vmem>>, %arg3: memref<128x50xbf16, #tpu.memory_space<vmem>>, %arg4: memref<1x50x16xbf16, #tpu.memory_space<vmem>>, %arg5: memref<32x16xbf16, #tpu.memory_space<vmem>>, %arg6: memref<1x16xf32, #tpu.memory_space<vmem>>, %arg7: memref<1x128x16xbf16, #tpu.memory_space<vmem>>) attributes {dimension_semantics = [#tpu.dimension_semantics<parallel>, #tpu.dimension_semantics<parallel>], iteration_bounds = array<i64: 4, 5>, scalar_prefetch = 0 : i64, scratch_operands = 0 : i64, tpu.core_type = #tpu.core_type<tc>, window_params = [{transform_indices = @transform_0, window_bounds = array<i64: 1, 32, 128>}, {transform_indices = @transform_1, window_bounds = array<i64: 128, 50>}, {transform_indices = @transform_2, window_bounds = array<i64: 1, 50, 16>}, {pipeline_mode = #tpu.pipeline_mode<synchronous>, transform_indices = @transform_3, window_bounds = array<i64: 32, 16>}, {pipeline_mode = #tpu.pipeline_mode<synchronous>, transform_indices = @transform_4, window_bounds = array<i64: 1, 16>}, {transform_indices = @transform_5, window_bounds = array<i64: 1, 128, 16>}]} {
    %c0 = arith.constant 0 : index
    %c0_0 = arith.constant 0 : index
    %c0_1 = arith.constant 0 : index
    %0 = vector.load %arg2[%c0, %c0_0, %c0_1] : memref<1x32x128xbf16, #tpu.memory_space<vmem>>, vector<1x32x128xbf16>
    %1 = vector.shape_cast %0 : vector<1x32x128xbf16> to vector<32x128xbf16>
    %c0_2 = arith.constant 0 : index
    %c0_3 = arith.constant 0 : index
    %2 = vector.load %arg5[%c0_2, %c0_3] : memref<32x16xbf16, #tpu.memory_space<vmem>>, vector<32x16xbf16>
    %cst = arith.constant dense<0.000000e+00> : vector<128x16xf32>
    %3 = tpu.matmul %1, %2, %cst {dimension_numbers = #tpu.dot_dimension_numbers<[0], [0], [1], [1], [0, 1, 1, 1], [], []>} : vector<32x128xbf16>, vector<32x16xbf16>, vector<128x16xf32> -> vector<128x16xf32>
    %c0_4 = arith.constant 0 : index
    %c0_5 = arith.constant 0 : index
    %4 = vector.load %arg3[%c0_4, %c0_5] : memref<128x50xbf16, #tpu.memory_space<vmem>>, vector<128x50xbf16>
    %c0_6 = arith.constant 0 : index
    %c0_7 = arith.constant 0 : index
    %c0_8 = arith.constant 0 : index
    %5 = vector.load %arg4[%c0_6, %c0_7, %c0_8] : memref<1x50x16xbf16, #tpu.memory_space<vmem>>, vector<1x50x16xbf16>
    %6 = vector.shape_cast %5 : vector<1x50x16xbf16> to vector<50x16xbf16>
    %cst_9 = arith.constant dense<0.000000e+00> : vector<128x16xf32>
    %7 = tpu.matmul %4, %6, %cst_9 {dimension_numbers = #tpu.dot_dimension_numbers<[1], [0], [0], [1], [0, 0, 1, 1], [], []>} : vector<128x50xbf16>, vector<50x16xbf16>, vector<128x16xf32> -> vector<128x16xf32>
    %8 = arith.addf %3, %7 : vector<128x16xf32>
    %c0_10 = arith.constant 0 : index
    %c0_11 = arith.constant 0 : index
    %9 = vector.load %arg6[%c0_10, %c0_11] : memref<1x16xf32, #tpu.memory_space<vmem>>, vector<1x16xf32>
    %10 = vector.broadcast %9 : vector<1x16xf32> to vector<128x16xf32>
    %11 = arith.addf %8, %10 : vector<128x16xf32>
    %cst_12 = arith.constant 0.000000e+00 : f32
    %12 = vector.broadcast %cst_12 : f32 to vector<128x16xf32>
    %13 = arith.maximumf %11, %12 : vector<128x16xf32>
    %14 = arith.truncf %13 : vector<128x16xf32> to vector<128x16xbf16>
    %c0_13 = arith.constant 0 : index
    %c0_14 = arith.constant 0 : index
    %c0_15 = arith.constant 0 : index
    %15 = vector.load %arg7[%c0_13, %c0_14, %c0_15] : memref<1x128x16xbf16, #tpu.memory_space<vmem>>, vector<1x128x16xbf16>
    %16 = vector.shape_cast %15 : vector<1x128x16xbf16> to vector<128x16xbf16>
    %17 = vector.shape_cast %14 : vector<128x16xbf16> to vector<1x128x16xbf16>
    tpu.vector_store %arg7[%c0_13, %c0_14, %c0_15], %17 {strides = array<i32>} : memref<1x128x16xbf16, #tpu.memory_space<vmem>>, vector<1x128x16xbf16>,
    return
  }
  func.func @transform_0(%arg0: i32, %arg1: i32) -> (i32, i32, i32) {
    %c0_i32 = arith.constant 0 : i32
    %c0_i32_0 = arith.constant 0 : i32
    return %arg0, %c0_i32, %arg1 : i32, i32, i32
  }
  func.func @transform_1(%arg0: i32, %arg1: i32) -> (i32, i32) {
    %c0_i32 = arith.constant 0 : i32
    %c0_i32_0 = arith.constant 0 : i32
    return %arg1, %c0_i32 : i32, i32
  }
  func.func @transform_2(%arg0: i32, %arg1: i32) -> (i32, i32, i32) {
    %c0_i32 = arith.constant 0 : i32
    %c0_i32_0 = arith.constant 0 : i32
    %c0_i32_1 = arith.constant 0 : i32
    return %arg0, %c0_i32, %c0_i32_0 : i32, i32, i32
  }
  func.func @transform_3(%arg0: i32, %arg1: i32) -> (i32, i32) {
    %c0_i32 = arith.constant 0 : i32
    %c0_i32_0 = arith.constant 0 : i32
    %c0_i32_1 = arith.constant 0 : i32
    return %c0_i32, %c0_i32_0 : i32, i32
  }
  func.func @transform_4(%arg0: i32, %arg1: i32) -> (i32, i32) {
    %c0_i32 = arith.constant 0 : i32
    %c0_i32_0 = arith.constant 0 : i32
    %c0_i32_1 = arith.constant 0 : i32
    return %c0_i32, %c0_i32_0 : i32, i32
  }
  func.func @transform_5(%arg0: i32, %arg1: i32) -> (i32, i32, i32) {
    %c0_i32 = arith.constant 0 : i32
    %c0_i32_0 = arith.constant 0 : i32
    return %arg0, %arg1, %c0_i32 : i32, i32, i32
  }
}

module attributes {stable_mosaic.version = 11 : i64} {
  func.func @_kv_proj_kernel(%arg0: i32, %arg1: i32, %arg2: memref<1x128x16xbf16, #tpu.memory_space<vmem>>, %arg3: memref<16x8xbf16, #tpu.memory_space<vmem>>, %arg4: memref<1x8xf32, #tpu.memory_space<vmem>>, %arg5: memref<16x8xbf16, #tpu.memory_space<vmem>>, %arg6: memref<1x8xf32, #tpu.memory_space<vmem>>, %arg7: memref<1x128x8xbf16, #tpu.memory_space<vmem>>, %arg8: memref<1x128x8xbf16, #tpu.memory_space<vmem>>) attributes {dimension_semantics = [#tpu.dimension_semantics<parallel>, #tpu.dimension_semantics<parallel>], iteration_bounds = array<i64: 2, 5>, scalar_prefetch = 0 : i64, scratch_operands = 0 : i64, tpu.core_type = #tpu.core_type<tc>, window_params = [{transform_indices = @transform_0, window_bounds = array<i64: 1, 128, 16>}, {pipeline_mode = #tpu.pipeline_mode<synchronous>, transform_indices = @transform_1, window_bounds = array<i64: 16, 8>}, {pipeline_mode = #tpu.pipeline_mode<synchronous>, transform_indices = @transform_2, window_bounds = array<i64: 1, 8>}, {pipeline_mode = #tpu.pipeline_mode<synchronous>, transform_indices = @transform_3, window_bounds = array<i64: 16, 8>}, {pipeline_mode = #tpu.pipeline_mode<synchronous>, transform_indices = @transform_4, window_bounds = array<i64: 1, 8>}, {transform_indices = @transform_5, window_bounds = array<i64: 1, 128, 8>}, {transform_indices = @transform_6, window_bounds = array<i64: 1, 128, 8>}]} {
    %c0 = arith.constant 0 : index
    %c0_0 = arith.constant 0 : index
    %c0_1 = arith.constant 0 : index
    %0 = vector.load %arg2[%c0, %c0_0, %c0_1] : memref<1x128x16xbf16, #tpu.memory_space<vmem>>, vector<1x128x16xbf16>
    %1 = vector.shape_cast %0 : vector<1x128x16xbf16> to vector<128x16xbf16>
    %c0_2 = arith.constant 0 : index
    %c0_3 = arith.constant 0 : index
    %2 = vector.load %arg3[%c0_2, %c0_3] : memref<16x8xbf16, #tpu.memory_space<vmem>>, vector<16x8xbf16>
    %cst = arith.constant dense<0.000000e+00> : vector<128x8xf32>
    %3 = tpu.matmul %1, %2, %cst {dimension_numbers = #tpu.dot_dimension_numbers<[1], [0], [0], [1], [0, 0, 1, 1], [], []>} : vector<128x16xbf16>, vector<16x8xbf16>, vector<128x8xf32> -> vector<128x8xf32>
    %c0_4 = arith.constant 0 : index
    %c0_5 = arith.constant 0 : index
    %4 = vector.load %arg4[%c0_4, %c0_5] : memref<1x8xf32, #tpu.memory_space<vmem>>, vector<1x8xf32>
    %5 = vector.broadcast %4 : vector<1x8xf32> to vector<128x8xf32>
    %6 = arith.addf %3, %5 : vector<128x8xf32>
    %c0_6 = arith.constant 0 : index
    %c0_7 = arith.constant 0 : index
    %7 = vector.load %arg5[%c0_6, %c0_7] : memref<16x8xbf16, #tpu.memory_space<vmem>>, vector<16x8xbf16>
    %cst_8 = arith.constant dense<0.000000e+00> : vector<128x8xf32>
    %8 = tpu.matmul %1, %7, %cst_8 {dimension_numbers = #tpu.dot_dimension_numbers<[1], [0], [0], [1], [0, 0, 1, 1], [], []>} : vector<128x16xbf16>, vector<16x8xbf16>, vector<128x8xf32> -> vector<128x8xf32>
    %c0_9 = arith.constant 0 : index
    %c0_10 = arith.constant 0 : index
    %9 = vector.load %arg6[%c0_9, %c0_10] : memref<1x8xf32, #tpu.memory_space<vmem>>, vector<1x8xf32>
    %10 = vector.broadcast %9 : vector<1x8xf32> to vector<128x8xf32>
    %11 = arith.addf %8, %10 : vector<128x8xf32>
    %12 = arith.truncf %6 : vector<128x8xf32> to vector<128x8xbf16>
    %c0_11 = arith.constant 0 : index
    %c0_12 = arith.constant 0 : index
    %c0_13 = arith.constant 0 : index
    %13 = vector.load %arg7[%c0_11, %c0_12, %c0_13] : memref<1x128x8xbf16, #tpu.memory_space<vmem>>, vector<1x128x8xbf16>
    %14 = vector.shape_cast %13 : vector<1x128x8xbf16> to vector<128x8xbf16>
    %15 = vector.shape_cast %12 : vector<128x8xbf16> to vector<1x128x8xbf16>
    tpu.vector_store %arg7[%c0_11, %c0_12, %c0_13], %15 {strides = array<i32>} : memref<1x128x8xbf16, #tpu.memory_space<vmem>>, vector<1x128x8xbf16>,
    %16 = arith.truncf %11 : vector<128x8xf32> to vector<128x8xbf16>
    %c0_14 = arith.constant 0 : index
    %c0_15 = arith.constant 0 : index
    %c0_16 = arith.constant 0 : index
    %17 = vector.load %arg8[%c0_14, %c0_15, %c0_16] : memref<1x128x8xbf16, #tpu.memory_space<vmem>>, vector<1x128x8xbf16>
    %18 = vector.shape_cast %17 : vector<1x128x8xbf16> to vector<128x8xbf16>
    %19 = vector.shape_cast %16 : vector<128x8xbf16> to vector<1x128x8xbf16>
    tpu.vector_store %arg8[%c0_14, %c0_15, %c0_16], %19 {strides = array<i32>} : memref<1x128x8xbf16, #tpu.memory_space<vmem>>, vector<1x128x8xbf16>,
    return
  }
  func.func @transform_0(%arg0: i32, %arg1: i32) -> (i32, i32, i32) {
    %c2_i32 = arith.constant 2 : i32
    %0 = arith.addi %arg0, %c2_i32 : i32
    %c0_i32 = arith.constant 0 : i32
    %c0_i32_0 = arith.constant 0 : i32
    return %0, %arg1, %c0_i32 : i32, i32, i32
  }
  func.func @transform_1(%arg0: i32, %arg1: i32) -> (i32, i32) {
    %c0_i32 = arith.constant 0 : i32
    %c0_i32_0 = arith.constant 0 : i32
    %c0_i32_1 = arith.constant 0 : i32
    return %c0_i32, %c0_i32_0 : i32, i32
  }
  func.func @transform_2(%arg0: i32, %arg1: i32) -> (i32, i32) {
    %c0_i32 = arith.constant 0 : i32
    %c0_i32_0 = arith.constant 0 : i32
    %c0_i32_1 = arith.constant 0 : i32
    return %c0_i32, %c0_i32_0 : i32, i32
  }
  func.func @transform_3(%arg0: i32, %arg1: i32) -> (i32, i32) {
    %c0_i32 = arith.constant 0 : i32
    %c0_i32_0 = arith.constant 0 : i32
    %c0_i32_1 = arith.constant 0 : i32
    return %c0_i32, %c0_i32_0 : i32, i32
  }
  func.func @transform_4(%arg0: i32, %arg1: i32) -> (i32, i32) {
    %c0_i32 = arith.constant 0 : i32
    %c0_i32_0 = arith.constant 0 : i32
    %c0_i32_1 = arith.constant 0 : i32
    return %c0_i32, %c0_i32_0 : i32, i32
  }
  func.func @transform_5(%arg0: i32, %arg1: i32) -> (i32, i32, i32) {
    %c0_i32 = arith.constant 0 : i32
    %c0_i32_0 = arith.constant 0 : i32
    return %arg0, %arg1, %c0_i32 : i32, i32, i32
  }
  func.func @transform_6(%arg0: i32, %arg1: i32) -> (i32, i32, i32) {
    %c0_i32 = arith.constant 0 : i32
    %c0_i32_0 = arith.constant 0 : i32
    return %arg0, %arg1, %c0_i32 : i32, i32, i32
  }
}

module attributes {stable_mosaic.version = 11 : i64} {
  func.func @_attn_tail_kernel(%arg0: i32, %arg1: i32, %arg2: i32, %arg3: memref<1x128x16xbf16, #tpu.memory_space<vmem>>, %arg4: memref<1x128x8xbf16, #tpu.memory_space<vmem>>, %arg5: memref<1x128x8xbf16, #tpu.memory_space<vmem>>, %arg6: memref<16x8xbf16, #tpu.memory_space<vmem>>, %arg7: memref<1x8xf32, #tpu.memory_space<vmem>>, %arg8: memref<8x8xbf16, #tpu.memory_space<vmem>>, %arg9: memref<16x8xbf16, #tpu.memory_space<vmem>>, %arg10: memref<1x8xf32, #tpu.memory_space<vmem>>, %arg11: memref<1x128x8xf32, #tpu.memory_space<vmem>>, %arg12: memref<128x8xbf16, #tpu.memory_space<vmem>>, %arg13: memref<128x1xf32, #tpu.memory_space<vmem>>, %arg14: memref<128x1xf32, #tpu.memory_space<vmem>>, %arg15: memref<128x8xf32, #tpu.memory_space<vmem>>) attributes {dimension_semantics = [#tpu.dimension_semantics<parallel>, #tpu.dimension_semantics<parallel>, #tpu.dimension_semantics<arbitrary>], iteration_bounds = array<i64: 2, 5, 5>, scalar_prefetch = 0 : i64, scratch_operands = 4 : i64, tpu.core_type = #tpu.core_type<tc>, window_params = [{transform_indices = @transform_0, window_bounds = array<i64: 1, 128, 16>}, {transform_indices = @transform_1, window_bounds = array<i64: 1, 128, 8>}, {transform_indices = @transform_2, window_bounds = array<i64: 1, 128, 8>}, {pipeline_mode = #tpu.pipeline_mode<synchronous>, transform_indices = @transform_3, window_bounds = array<i64: 16, 8>}, {pipeline_mode = #tpu.pipeline_mode<synchronous>, transform_indices = @transform_4, window_bounds = array<i64: 1, 8>}, {pipeline_mode = #tpu.pipeline_mode<synchronous>, transform_indices = @transform_5, window_bounds = array<i64: 8, 8>}, {pipeline_mode = #tpu.pipeline_mode<synchronous>, transform_indices = @transform_6, window_bounds = array<i64: 16, 8>}, {pipeline_mode = #tpu.pipeline_mode<synchronous>, transform_indices = @transform_7, window_bounds = array<i64: 1, 8>}, {transform_indices = @transform_8, window_bounds = array<i64: 1, 128, 8>}]} {
    %c0_i32 = arith.constant 0 : i32
    %0 = arith.cmpi eq, %arg2, %c0_i32 : i32
    %1 = arith.extui %0 : i1 to i32
    %c0_i32_0 = arith.constant 0 : i32
    %2 = arith.cmpi ne, %1, %c0_i32_0 : i32
    scf.if %2 {
      %c0_25 = arith.constant 0 : index
      %c0_26 = arith.constant 0 : index
      %c0_27 = arith.constant 0 : index
      %43 = vector.load %arg3[%c0_25, %c0_26, %c0_27] : memref<1x128x16xbf16, #tpu.memory_space<vmem>>, vector<1x128x16xbf16>
      %44 = vector.shape_cast %43 : vector<1x128x16xbf16> to vector<128x16xbf16>
      %c0_28 = arith.constant 0 : index
      %c0_29 = arith.constant 0 : index
      %45 = vector.load %arg6[%c0_28, %c0_29] : memref<16x8xbf16, #tpu.memory_space<vmem>>, vector<16x8xbf16>
      %cst_30 = arith.constant dense<0.000000e+00> : vector<128x8xf32>
      %46 = tpu.matmul %44, %45, %cst_30 {dimension_numbers = #tpu.dot_dimension_numbers<[1], [0], [0], [1], [0, 0, 1, 1], [], []>} : vector<128x16xbf16>, vector<16x8xbf16>, vector<128x8xf32> -> vector<128x8xf32>
      %c0_31 = arith.constant 0 : index
      %c0_32 = arith.constant 0 : index
      %47 = vector.load %arg7[%c0_31, %c0_32] : memref<1x8xf32, #tpu.memory_space<vmem>>, vector<1x8xf32>
      %48 = vector.broadcast %47 : vector<1x8xf32> to vector<128x8xf32>
      %49 = arith.addf %46, %48 : vector<128x8xf32>
      %50 = arith.truncf %49 : vector<128x8xf32> to vector<128x8xbf16>
      %c0_33 = arith.constant 0 : index
      %c0_34 = arith.constant 0 : index
      %51 = vector.load %arg12[%c0_33, %c0_34] : memref<128x8xbf16, #tpu.memory_space<vmem>>, vector<128x8xbf16>
      tpu.vector_store %arg12[%c0_33, %c0_34], %50 {strides = array<i32>} : memref<128x8xbf16, #tpu.memory_space<vmem>>, vector<128x8xbf16>,
      %cst_35 = arith.constant 0xFF800000 : f32
      %52 = vector.broadcast %cst_35 : f32 to vector<128x1xf32>
      %c0_36 = arith.constant 0 : index
      %c0_37 = arith.constant 0 : index
      %53 = vector.load %arg13[%c0_36, %c0_37] : memref<128x1xf32, #tpu.memory_space<vmem>>, vector<128x1xf32>
      tpu.vector_store %arg13[%c0_36, %c0_37], %52 {strides = array<i32>} : memref<128x1xf32, #tpu.memory_space<vmem>>, vector<128x1xf32>,
      %cst_38 = arith.constant 0.000000e+00 : f32
      %54 = vector.broadcast %cst_38 : f32 to vector<128x1xf32>
      %c0_39 = arith.constant 0 : index
      %c0_40 = arith.constant 0 : index
      %55 = vector.load %arg14[%c0_39, %c0_40] : memref<128x1xf32, #tpu.memory_space<vmem>>, vector<128x1xf32>
      tpu.vector_store %arg14[%c0_39, %c0_40], %54 {strides = array<i32>} : memref<128x1xf32, #tpu.memory_space<vmem>>, vector<128x1xf32>,
      %cst_41 = arith.constant 0.000000e+00 : f32
      %56 = vector.broadcast %cst_41 : f32 to vector<128x8xf32>
      %c0_42 = arith.constant 0 : index
      %c0_43 = arith.constant 0 : index
      %57 = vector.load %arg15[%c0_42, %c0_43] : memref<128x8xf32, #tpu.memory_space<vmem>>, vector<128x8xf32>
      tpu.vector_store %arg15[%c0_42, %c0_43], %56 {strides = array<i32>} : memref<128x8xf32, #tpu.memory_space<vmem>>, vector<128x8xf32>,
    } else {
    }
    %c0 = arith.constant 0 : index
    %c0_1 = arith.constant 0 : index
    %3 = vector.load %arg12[%c0, %c0_1] : memref<128x8xbf16, #tpu.memory_space<vmem>>, vector<128x8xbf16>
    %c0_2 = arith.constant 0 : index
    %c0_3 = arith.constant 0 : index
    %c0_4 = arith.constant 0 : index
    %4 = vector.load %arg4[%c0_2, %c0_3, %c0_4] : memref<1x128x8xbf16, #tpu.memory_space<vmem>>, vector<1x128x8xbf16>
    %5 = vector.shape_cast %4 : vector<1x128x8xbf16> to vector<128x8xbf16>
    %cst = arith.constant dense<0.000000e+00> : vector<128x128xf32>
    %6 = tpu.matmul %3, %5, %cst {dimension_numbers = #tpu.dot_dimension_numbers<[1], [1], [0], [0], [0, 0, 1, 0], [], []>} : vector<128x8xbf16>, vector<128x8xbf16>, vector<128x128xf32> -> vector<128x128xf32>
    %c128_i32 = arith.constant 128 : i32
    %7 = arith.muli %arg2, %c128_i32 : i32
    %8 = tpu.iota {dimensions = array<i32: 1>} : vector<128x128xi32>
    %9 = vector.broadcast %7 : i32 to vector<128x128xi32>
    %10 = arith.addi %9, %8 : vector<128x128xi32>
    %c576_i32 = arith.constant 576 : i32
    %11 = vector.broadcast %c576_i32 : i32 to vector<128x128xi32>
    %12 = arith.cmpi slt, %10, %11 : vector<128x128xi32>
    %cst_5 = arith.constant 0xFF800000 : f32
    %13 = vector.broadcast %cst_5 : f32 to vector<128x128xf32>
    %14 = arith.select %12, %6, %13 : vector<128x128xi1>, vector<128x128xf32>
    %c0_6 = arith.constant 0 : index
    %c0_7 = arith.constant 0 : index
    %15 = vector.load %arg13[%c0_6, %c0_7] : memref<128x1xf32, #tpu.memory_space<vmem>>, vector<128x1xf32>
    %cst_8 = arith.constant dense<0xFF800000> : vector<128xf32>
    %16 = vector.multi_reduction <maximumf>, %14, %cst_8 [1] : vector<128x128xf32> to vector<128xf32>
    %17 = vector.shape_cast %16 : vector<128xf32> to vector<128x1xf32>
    %18 = arith.maximumf %15, %17 : vector<128x1xf32>
    %19 = arith.subf %15, %18 : vector<128x1xf32>
    %20 = math.exp %19 : vector<128x1xf32>
    %21 = vector.broadcast %18 : vector<128x1xf32> to vector<128x128xf32>
    %22 = arith.subf %14, %21 : vector<128x128xf32>
    %23 = math.exp %22 : vector<128x128xf32>
    %c0_9 = arith.constant 0 : index
    %c0_10 = arith.constant 0 : index
    %24 = vector.load %arg14[%c0_9, %c0_10] : memref<128x1xf32, #tpu.memory_space<vmem>>, vector<128x1xf32>
    %25 = arith.mulf %20, %24 : vector<128x1xf32>
    %cst_11 = arith.constant dense<0.000000e+00> : vector<128xf32>
    %26 = vector.multi_reduction <add>, %23, %cst_11 [1] : vector<128x128xf32> to vector<128xf32>
    %27 = vector.shape_cast %26 : vector<128xf32> to vector<128x1xf32>
    %28 = arith.addf %25, %27 : vector<128x1xf32>
    %c0_12 = arith.constant 0 : index
    %c0_13 = arith.constant 0 : index
    %29 = vector.load %arg14[%c0_12, %c0_13] : memref<128x1xf32, #tpu.memory_space<vmem>>, vector<128x1xf32>
    tpu.vector_store %arg14[%c0_12, %c0_13], %28 {strides = array<i32>} : memref<128x1xf32, #tpu.memory_space<vmem>>, vector<128x1xf32>,
    %c0_14 = arith.constant 0 : index
    %c0_15 = arith.constant 0 : index
    %30 = vector.load %arg15[%c0_14, %c0_15] : memref<128x8xf32, #tpu.memory_space<vmem>>, vector<128x8xf32>
    %31 = vector.broadcast %20 : vector<128x1xf32> to vector<128x8xf32>
    %32 = arith.mulf %31, %30 : vector<128x8xf32>
    %33 = arith.truncf %23 : vector<128x128xf32> to vector<128x128xbf16>
    %c0_16 = arith.constant 0 : index
    %c0_17 = arith.constant 0 : index
    %c0_18 = arith.constant 0 : index
    %34 = vector.load %arg5[%c0_16, %c0_17, %c0_18] : memref<1x128x8xbf16, #tpu.memory_space<vmem>>, vector<1x128x8xbf16>
    %35 = vector.shape_cast %34 : vector<1x128x8xbf16> to vector<128x8xbf16>
    %cst_19 = arith.constant dense<0.000000e+00> : vector<128x8xf32>
    %36 = tpu.matmul %33, %35, %cst_19 {dimension_numbers = #tpu.dot_dimension_numbers<[1], [0], [0], [1], [0, 0, 1, 1], [], []>} : vector<128x128xbf16>, vector<128x8xbf16>, vector<128x8xf32> -> vector<128x8xf32>
    %37 = arith.addf %32, %36 : vector<128x8xf32>
    %c0_20 = arith.constant 0 : index
    %c0_21 = arith.constant 0 : index
    %38 = vector.load %arg15[%c0_20, %c0_21] : memref<128x8xf32, #tpu.memory_space<vmem>>, vector<128x8xf32>
    tpu.vector_store %arg15[%c0_20, %c0_21], %37 {strides = array<i32>} : memref<128x8xf32, #tpu.memory_space<vmem>>, vector<128x8xf32>,
    %c0_22 = arith.constant 0 : index
    %c0_23 = arith.constant 0 : index
    %39 = vector.load %arg13[%c0_22, %c0_23] : memref<128x1xf32, #tpu.memory_space<vmem>>, vector<128x1xf32>
    tpu.vector_store %arg13[%c0_22, %c0_23], %18 {strides = array<i32>} : memref<128x1xf32, #tpu.memory_space<vmem>>, vector<128x1xf32>,
    %c4_i32 = arith.constant 4 : i32
    %40 = arith.cmpi eq, %arg2, %c4_i32 : i32
    %41 = arith.extui %40 : i1 to i32
    %c0_i32_24 = arith.constant 0 : i32
    %42 = arith.cmpi ne, %41, %c0_i32_24 : i32
    scf.if %42 {
      %c0_25 = arith.constant 0 : index
      %c0_26 = arith.constant 0 : index
      %43 = vector.load %arg14[%c0_25, %c0_26] : memref<128x1xf32, #tpu.memory_space<vmem>>, vector<128x1xf32>
      %44 = tpu.reciprocal %43 {approx = true} : vector<128x1xf32> -> vector<128x1xf32>
      %c0_27 = arith.constant 0 : index
      %c0_28 = arith.constant 0 : index
      %45 = vector.load %arg15[%c0_27, %c0_28] : memref<128x8xf32, #tpu.memory_space<vmem>>, vector<128x8xf32>
      %46 = vector.broadcast %44 : vector<128x1xf32> to vector<128x8xf32>
      %47 = arith.mulf %45, %46 : vector<128x8xf32>
      %48 = arith.truncf %47 : vector<128x8xf32> to vector<128x8xbf16>
      %c0_29 = arith.constant 0 : index
      %c0_30 = arith.constant 0 : index
      %49 = vector.load %arg8[%c0_29, %c0_30] : memref<8x8xbf16, #tpu.memory_space<vmem>>, vector<8x8xbf16>
      %cst_31 = arith.constant dense<0.000000e+00> : vector<128x8xf32>
      %50 = tpu.matmul %48, %49, %cst_31 {dimension_numbers = #tpu.dot_dimension_numbers<[1], [0], [0], [1], [0, 0, 1, 1], [], []>} : vector<128x8xbf16>, vector<8x8xbf16>, vector<128x8xf32> -> vector<128x8xf32>
      %c0_32 = arith.constant 0 : index
      %c0_33 = arith.constant 0 : index
      %c0_34 = arith.constant 0 : index
      %51 = vector.load %arg3[%c0_32, %c0_33, %c0_34] : memref<1x128x16xbf16, #tpu.memory_space<vmem>>, vector<1x128x16xbf16>
      %52 = vector.shape_cast %51 : vector<1x128x16xbf16> to vector<128x16xbf16>
      %c0_35 = arith.constant 0 : index
      %c0_36 = arith.constant 0 : index
      %53 = vector.load %arg9[%c0_35, %c0_36] : memref<16x8xbf16, #tpu.memory_space<vmem>>, vector<16x8xbf16>
      %cst_37 = arith.constant dense<0.000000e+00> : vector<128x8xf32>
      %54 = tpu.matmul %52, %53, %cst_37 {dimension_numbers = #tpu.dot_dimension_numbers<[1], [0], [0], [1], [0, 0, 1, 1], [], []>} : vector<128x16xbf16>, vector<16x8xbf16>, vector<128x8xf32> -> vector<128x8xf32>
      %55 = arith.addf %50, %54 : vector<128x8xf32>
      %c0_38 = arith.constant 0 : index
      %c0_39 = arith.constant 0 : index
      %56 = vector.load %arg10[%c0_38, %c0_39] : memref<1x8xf32, #tpu.memory_space<vmem>>, vector<1x8xf32>
      %57 = vector.broadcast %56 : vector<1x8xf32> to vector<128x8xf32>
      %58 = arith.addf %55, %57 : vector<128x8xf32>
      %c0_40 = arith.constant 0 : index
      %c0_41 = arith.constant 0 : index
      %c0_42 = arith.constant 0 : index
      %59 = vector.load %arg11[%c0_40, %c0_41, %c0_42] : memref<1x128x8xf32, #tpu.memory_space<vmem>>, vector<1x128x8xf32>
      %60 = vector.shape_cast %59 : vector<1x128x8xf32> to vector<128x8xf32>
      %61 = vector.shape_cast %58 : vector<128x8xf32> to vector<1x128x8xf32>
      tpu.vector_store %arg11[%c0_40, %c0_41, %c0_42], %61 {strides = array<i32>} : memref<1x128x8xf32, #tpu.memory_space<vmem>>, vector<1x128x8xf32>,
    } else {
    }
    return
  }
  func.func @transform_0(%arg0: i32, %arg1: i32, %arg2: i32) -> (i32, i32, i32) {
    %c0_i32 = arith.constant 0 : i32
    %c0_i32_0 = arith.constant 0 : i32
    return %arg0, %arg1, %c0_i32 : i32, i32, i32
  }
  func.func @transform_1(%arg0: i32, %arg1: i32, %arg2: i32) -> (i32, i32, i32) {
    %c0_i32 = arith.constant 0 : i32
    %c0_i32_0 = arith.constant 0 : i32
    return %arg0, %arg2, %c0_i32 : i32, i32, i32
  }
  func.func @transform_2(%arg0: i32, %arg1: i32, %arg2: i32) -> (i32, i32, i32) {
    %c0_i32 = arith.constant 0 : i32
    %c0_i32_0 = arith.constant 0 : i32
    return %arg0, %arg2, %c0_i32 : i32, i32, i32
  }
  func.func @transform_3(%arg0: i32, %arg1: i32, %arg2: i32) -> (i32, i32) {
    %c0_i32 = arith.constant 0 : i32
    %c0_i32_0 = arith.constant 0 : i32
    %c0_i32_1 = arith.constant 0 : i32
    return %c0_i32, %c0_i32_0 : i32, i32
  }
  func.func @transform_4(%arg0: i32, %arg1: i32, %arg2: i32) -> (i32, i32) {
    %c0_i32 = arith.constant 0 : i32
    %c0_i32_0 = arith.constant 0 : i32
    %c0_i32_1 = arith.constant 0 : i32
    return %c0_i32, %c0_i32_0 : i32, i32
  }
  func.func @transform_5(%arg0: i32, %arg1: i32, %arg2: i32) -> (i32, i32) {
    %c0_i32 = arith.constant 0 : i32
    %c0_i32_0 = arith.constant 0 : i32
    %c0_i32_1 = arith.constant 0 : i32
    return %c0_i32, %c0_i32_0 : i32, i32
  }
  func.func @transform_6(%arg0: i32, %arg1: i32, %arg2: i32) -> (i32, i32) {
    %c0_i32 = arith.constant 0 : i32
    %c0_i32_0 = arith.constant 0 : i32
    %c0_i32_1 = arith.constant 0 : i32
    return %c0_i32, %c0_i32_0 : i32, i32
  }
  func.func @transform_7(%arg0: i32, %arg1: i32, %arg2: i32) -> (i32, i32) {
    %c0_i32 = arith.constant 0 : i32
    %c0_i32_0 = arith.constant 0 : i32
    %c0_i32_1 = arith.constant 0 : i32
    return %c0_i32, %c0_i32_0 : i32, i32
  }
  func.func @transform_8(%arg0: i32, %arg1: i32, %arg2: i32) -> (i32, i32, i32) {
    %c0_i32 = arith.constant 0 : i32
    %c0_i32_0 = arith.constant 0 : i32
    return %arg0, %arg1, %c0_i32 : i32, i32, i32
  }
}

</mosaic_0001>

<llo_original>
// kernel: nonlocal_psp_correlation.3
$region0: #{nonlocal_psp_correlation.3}
  #allocation0 [shape = 'u32[]', space=smem, size = 0x4, offset = 0x4, fixed_abs, tag = 'smem constant byte address 0x4 - core index']
  #allocation1 [shape = 'u32[144,128]{1,0:T(1,128)}', space=vmem, size = 0x12000, scoped, tag = 'internal scratch']
  %s0 = inlined_call_operand.vmem [shape: bf16[4,32,640], index: 0, kind: input, shape index: {}]
  %s1 = inlined_call_operand.vmem [shape: bf16[640,50], index: 1, kind: input, shape index: {}]
  %s2 = inlined_call_operand.vmem [shape: bf16[4,50,16], index: 2, kind: input, shape index: {}]
  %s3 = inlined_call_operand.vmem [shape: bf16[32,16], index: 3, kind: input, shape index: {}]
  %s4 = inlined_call_operand.vmem [shape: f32[1,16], index: 4, kind: input, shape index: {}]
  %s5 = inlined_call_operand.vmem [shape: bf16[4,640,16], index: 5, kind: output, shape index: {}]
  %s6 = sld [smem:[#allocation0]]
  $region94: #{nonlocal_psp_correlation.3} parent=0
    _
  %s8 = ssub.s32 1, %s6
  %s9 = scalar_select 0, %s8, %s6
  $region1: #{nonlocal_psp_correlation.3} parent=0
    #allocation2 [shape = 'u8[16384]{0}', space=vmem, size = 0x4000, scoped, tag = 'input window, operand 0']
    loop: start=0, step=1, limit=22
    $region2: #{nonlocal_psp_correlation.3} parent=1 // loop_pre_header
      _
    $region3: #{nonlocal_psp_correlation.3} parent=1 // loop_header
      %s11 = sphi 0, %s15
      %p12 = scmp.ge.s32.totalorder %s11, 22
      %s18 = sphi 0, %s30
      %s19 = sphi 0, %s26
      %s20 = sphi 0, %s18
      %s21 = sphi 0, %s19
      %s22 = sphi 0, %s20
      %s23 = sphi 0, %s21
      %s35 = sphi 0, %s37
      %s38 = sphi 0, %s35
      %s39 = sphi 0, %s38
      %s55 = sphi 0, %s39
      %s61 = sphi 0, %s63
      %s64 = sphi 0, %s61
      %s65 = sphi 0, %s64
      %s81 = sphi 0, %s65
      %s87 = sphi 0, %s89
      %s90 = sphi 0, %s87
      %s91 = sphi 0, %s90
      %s107 = sphi 0, %s91
      %s111 = sphi 0, %s111
      %s113 = sphi 0, %s111
      %s114 = sphi 0, %s113
      %s128 = sphi 0, %s114
      %s132 = sphi 0, %s132
      %s134 = sphi 0, %s132
      %s135 = sphi 0, %s134
      %s149 = sphi 0, %s135
      %s157 = sphi 0, %s159
      %s160 = sphi 0, %s157
      %s161 = sphi 0, %s160
      %s177 = sphi 0, %s161
    $region4: #{nonlocal_psp_correlation.3} parent=1 // loop_header_branch
      %14 = sbr.rel (%p12) target = $region8
    $region5: #{nonlocal_psp_correlation.3} parent=1 // loop_body
      %s16 = ssub.s32 %s11, 1
      %s17 = ssub.s32 %s11, 2
      %s24 = sadd.s32 1, %s19
      %p25 = scmp.ge.s32.totalorder %s24, 5
      %s26 = scalar_select %p25, 0, %s24
      %s27 = sadd.s32 1, %s18
      %s28 = scalar_select %p25, %s27, %s18
      %p29 = scmp.ge.s32.totalorder %s28, 4
      %s30 = scalar_select %p29, 0, %s28
      %s31 = ssub.s32 %s18, %s30
      %s32 = ssub.s32 %s19, %s26
      %s33 = sor.u32 %s31, %s32
      %p34 = scmp.eq.s32.totalorder %s33, 0
      %s36 = sadd.s32 %s35, 1
      %s37 = scalar_select %p34, %s35, %s36
      %p40 = pneg %p34
      %p41 = scmp.eq.s32.totalorder %s11, 19
      %p42 = por %p40, %p41
      %p43 = scmp.ne.s32.totalorder %s35, %s38
      %p44 = scmp.eq.s32.totalorder %s11, 0
      %p45 = por %p43, %p44
      %p46 = scmp.ne.s32.totalorder %s35, %s38
      %p47 = scmp.eq.s32.totalorder %s16, 19
      %p48 = por %p46, %p47
      %p49 = scmp.ne.s32.totalorder %s38, %s39
      %p50 = scmp.eq.s32.totalorder %s16, 0
      %p51 = por %p49, %p50
      %p52 = scmp.ne.s32.totalorder %s38, %s39
      %p53 = scmp.eq.s32.totalorder %s17, 19
      %p54 = por %p52, %p53
      %p56 = scmp.ne.s32.totalorder %s39, %s55
      %p57 = scmp.eq.s32.totalorder %s17, 0
      %p58 = por %p56, %p57
      %s59 = ssub.s32 %s19, %s26
      %p60 = scmp.eq.s32.totalorder %s59, 0
      %s62 = sadd.s32 %s61, 1
      %s63 = scalar_select %p60, %s61, %s62
      %p66 = pneg %p60
      %p67 = scmp.eq.s32.totalorder %s11, 19
      %p68 = por %p66, %p67
      %p69 = scmp.ne.s32.totalorder %s61, %s64
      %p70 = scmp.eq.s32.totalorder %s11, 0
      %p71 = por %p69, %p70
      %p72 = scmp.ne.s32.totalorder %s61, %s64
      %p73 = scmp.eq.s32.totalorder %s16, 19
      %p74 = por %p72, %p73
      %p75 = scmp.ne.s32.totalorder %s64, %s65
      %p76 = scmp.eq.s32.totalorder %s16, 0
      %p77 = por %p75, %p76
      %p78 = scmp.ne.s32.totalorder %s64, %s65
      %p79 = scmp.eq.s32.totalorder %s17, 19
      %p80 = por %p78, %p79
      %p82 = scmp.ne.s32.totalorder %s65, %s81
      %p83 = scmp.eq.s32.totalorder %s17, 0
      %p84 = por %p82, %p83
      %s85 = ssub.s32 %s18, %s30
      %p86 = scmp.eq.s32.totalorder %s85, 0
      %s88 = sadd.s32 %s87, 1
      %s89 = scalar_select %p86, %s87, %s88
      %p92 = pneg %p86
      %p93 = scmp.eq.s32.totalorder %s11, 19
      %p94 = por %p92, %p93
      %p95 = scmp.ne.s32.totalorder %s87, %s90
      %p96 = scmp.eq.s32.totalorder %s11, 0
      %p97 = por %p95, %p96
      %p98 = scmp.ne.s32.totalorder %s87, %s90
      %p99 = scmp.eq.s32.totalorder %s16, 19
      %p100 = por %p98, %p99
      %p101 = scmp.ne.s32.totalorder %s90, %s91
      %p102 = scmp.eq.s32.totalorder %s16, 0
      %p103 = por %p101, %p102
      %p104 = scmp.ne.s32.totalorder %s90, %s91
      %p105 = scmp.eq.s32.totalorder %s17, 19
      %p106 = por %p104, %p105
      %p108 = scmp.ne.s32.totalorder %s91, %s107
      %p109 = scmp.eq.s32.totalorder %s17, 0
      %p110 = por %p108, %p109
      %s112 = sadd.s32 %s111, 1
      %p115 = scmp.eq.s32.totalorder %s11, 19
      %p116 = scmp.ne.s32.totalorder %s111, %s113
      %p117 = scmp.eq.s32.totalorder %s11, 0
      %p118 = por %p116, %p117
      %p119 = scmp.ne.s32.totalorder %s111, %s113
      %p120 = scmp.eq.s32.totalorder %s16, 19
      %p121 = por %p119, %p120
      %p122 = scmp.ne.s32.totalorder %s113, %s114
      %p123 = scmp.eq.s32.totalorder %s16, 0
      %p124 = por %p122, %p123
      %p125 = scmp.ne.s32.totalorder %s113, %s114
      %p126 = scmp.eq.s32.totalorder %s17, 19
      %p127 = por %p125, %p126
      %p129 = scmp.ne.s32.totalorder %s114, %s128
      %p130 = scmp.eq.s32.totalorder %s17, 0
      %p131 = por %p129, %p130
      %s133 = sadd.s32 %s132, 1
      %p136 = scmp.eq.s32.totalorder %s11, 19
      %p137 = scmp.ne.s32.totalorder %s132, %s134
      %p138 = scmp.eq.s32.totalorder %s11, 0
      %p139 = por %p137, %p138
      %p140 = scmp.ne.s32.totalorder %s132, %s134
      %p141 = scmp.eq.s32.totalorder %s16, 19
      %p142 = por %p140, %p141
      %p143 = scmp.ne.s32.totalorder %s134, %s135
      %p144 = scmp.eq.s32.totalorder %s16, 0
      %p145 = por %p143, %p144
      %p146 = scmp.ne.s32.totalorder %s134, %s135
      %p147 = scmp.eq.s32.totalorder %s17, 19
      %p148 = por %p146, %p147
      %p150 = scmp.ne.s32.totalorder %s135, %s149
      %p151 = scmp.eq.s32.totalorder %s17, 0
      %p152 = por %p150, %p151
      %s153 = ssub.s32 %s18, %s30
      %s154 = ssub.s32 %s19, %s26
      %s155 = sor.u32 %s153, %s154
      %p156 = scmp.eq.s32.totalorder %s155, 0
      %s158 = sadd.s32 %s157, 1
      %s159 = scalar_select %p156, %s157, %s158
      %p162 = pneg %p156
      %p163 = scmp.eq.s32.totalorder %s11, 19
      %p164 = por %p162, %p163
      %p165 = scmp.ne.s32.totalorder %s157, %s160
      %p166 = scmp.eq.s32.totalorder %s11, 0
      %p167 = por %p165, %p166
      %p168 = scmp.ne.s32.totalorder %s157, %s160
      %p169 = scmp.eq.s32.totalorder %s16, 19
      %p170 = por %p168, %p169
      %p171 = scmp.ne.s32.totalorder %s160, %s161
      %p172 = scmp.eq.s32.totalorder %s16, 0
      %p173 = por %p171, %p172
      %p174 = scmp.ne.s32.totalorder %s160, %s161
      %p175 = scmp.eq.s32.totalorder %s17, 19
      %p176 = por %p174, %p175
      %p178 = scmp.ne.s32.totalorder %s161, %s177
      %p179 = scmp.eq.s32.totalorder %s17, 0
      %p180 = por %p178, %p179
      %p181 = scmp.le.s32.totalorder 1, %s11
      %p182 = scmp.lt.s32.totalorder %s11, 21
      %p183 = pnand %p181, %p182
      %p184 = pneg %p183
      // Predicated region
      $region9: #{nonlocal_psp_correlation.3} parent=5 // pred_check
        _
      $region10: #{nonlocal_psp_correlation.3} parent=5 // pred_check_branch
        %186 = sbr.rel (%p183) target = $region12
      $region11: #{nonlocal_psp_correlation.3} parent=5 // pred_region
        %s187 = ssub.s32 %s11, 1
        // Predicated region
        $region13: #{nonlocal_psp_correlation.3} parent=11 // pred_check
          %p188 = pneg %p124
        $region14: #{nonlocal_psp_correlation.3} parent=11 // pred_check_branch
          %190 = sbr.rel (%p188) target = $region16
        $region15: #{nonlocal_psp_correlation.3} parent=11 // pred_region
          _
        $region16: #{nonlocal_psp_correlation.3} parent=11 // pred_fallthru
          _
        // Predicated region
        $region17: #{nonlocal_psp_correlation.3} parent=11 // pred_check
          %p191 = pneg %p145
        $region18: #{nonlocal_psp_correlation.3} parent=11 // pred_check_branch
          %193 = sbr.rel (%p191) target = $region20
        $region19: #{nonlocal_psp_correlation.3} parent=11 // pred_region
          _
        $region20: #{nonlocal_psp_correlation.3} parent=11 // pred_fallthru
          _
      $region12: #{nonlocal_psp_correlation.3} parent=5 // pred_fallthru
        _
      %p194 = scmp.lt.s32.totalorder %s11, 20
      // Predicated region
      $region21: #{nonlocal_psp_correlation.3} parent=5 // pred_check
        %p195 = pneg %p194
      $region22: #{nonlocal_psp_correlation.3} parent=5 // pred_check_branch
        %197 = sbr.rel (%p195) target = $region24
      $region23: #{nonlocal_psp_correlation.3} parent=5 // pred_region
        // Predicated region
        $region25: #{nonlocal_psp_correlation.3} parent=23 // pred_check
          %p198 = pneg %p45
        $region26: #{nonlocal_psp_correlation.3} parent=23 // pred_check_branch
          %200 = sbr.rel (%p198) target = $region28
        $region27: #{nonlocal_psp_correlation.3} parent=23 // pred_region
          %s201 = sand.u32 %s35, 1
          %s202 = sand.u32 %s35, 1
          %s203 = smul.addr %s202, 16
          %s204 = scalar_lea.vmem [#allocation2], %s203
          %s205 = smul.addr %s18, 20
          %s206 = sadd.s32 %s19, %s205
          %s207 = smul.addr %s206, 4
          %s208 = scalar_lea.vmem %s0, %s207
          // Predicated region
          $region29: #{nonlocal_psp_correlation.3} parent=27 // pred_check
            _
          $region30: #{nonlocal_psp_correlation.3} parent=27 // pred_check_branch
            %210 = sbr.rel (0) target = $region32
          $region31: #{nonlocal_psp_correlation.3} parent=27 // pred_region
            // Predicated region
            $region33: #{nonlocal_psp_correlation.3} parent=31 // pred_check
              _
            $region34: #{nonlocal_psp_correlation.3} parent=31 // pred_check_branch
              %212 = sbr.rel target = $region36
            $region35: #{nonlocal_psp_correlation.3} parent=31 // pred_region
              // Predicated region
              $region48: #{nonlocal_psp_correlation.3} parent=35 // pred_check
                _
              $region49: #{nonlocal_psp_correlation.3} parent=35 // pred_check_branch
                %233 = sbr.rel (0) target = $region51
              $region50: #{nonlocal_psp_correlation.3} parent=35 // pred_region
                loop: start=0, step=1, limit=1
                $region52: #{nonlocal_psp_correlation.3} parent=50 // loop_pre_header
                  _
                $region53: #{nonlocal_psp_correlation.3} parent=50 // loop_header
                  %s235 = sphi 0, %s239
                  %p236 = scmp.ge.s32.totalorder %s235, 1
                  %s240 = sphi %s208, %s208
                  %s241 = sphi %s204, %s204
                $region54: #{nonlocal_psp_correlation.3} parent=50 // loop_header_branch
                  %238 = sbr.rel (%p236) target = $region58
                $region55: #{nonlocal_psp_correlation.3} parent=50 // loop_body
                  _
                $region56: #{nonlocal_psp_correlation.3} parent=50 // loop_footer
                  %s239 = sadd.s32 1, %s235
                $region57: #{nonlocal_psp_correlation.3} parent=50 // loop_footer_branch
                  %234 = sbr.rel target = $region53
                $region58: #{nonlocal_psp_correlation.3} parent=50 // loop_exit
                  _
                loop: start=0, step=1, limit=1
                $region59: #{nonlocal_psp_correlation.3} parent=50 // loop_pre_header
                  _
                $region60: #{nonlocal_psp_correlation.3} parent=50 // loop_header
                  %s244 = sphi 0, %s248
                  %p245 = scmp.ge.s32.totalorder %s244, 1
                  %s249 = sphi %s208, %s208
                  %s250 = sphi %s204, %s204
                $region61: #{nonlocal_psp_correlation.3} parent=50 // loop_header_branch
                  %247 = sbr.rel (%p245) target = $region65
                $region62: #{nonlocal_psp_correlation.3} parent=50 // loop_body
                  %v251 = vld [vmem:[%s249] sm:$0xf]
                  %252 = vst [vmem:[%s250] sm:$0xf] %v251
                  %v253 = vld [vmem:[%s249 + $0x14] sm:$0xf]
                  %254 = vst [vmem:[%s250 + $0x4] sm:$0xf] %v253
                  %v255 = vld [vmem:[%s249 + $0x28] sm:$0xf]
                  %256 = vst [vmem:[%s250 + $0x8] sm:$0xf] %v255
                  %v257 = vld [vmem:[%s249 + $0x3c] sm:$0xf]
                  %258 = vst [vmem:[%s250 + $0xc] sm:$0xf] %v257
                $region63: #{nonlocal_psp_correlation.3} parent=50 // loop_footer
                  %s248 = sadd.s32 1, %s244
                $region64: #{nonlocal_psp_correlation.3} parent=50 // loop_footer_branch
                  %243 = sbr.rel target = $region60
                $region65: #{nonlocal_psp_correlation.3} parent=50 // loop_exit
                  _
              $region51: #{nonlocal_psp_correlation.3} parent=35 // pred_fallthru
                _
            $region36: #{nonlocal_psp_correlation.3} parent=31 // pred_fallthru
              _
            // Predicated region
            $region37: #{nonlocal_psp_correlation.3} parent=31 // pred_check
              _
            $region38: #{nonlocal_psp_correlation.3} parent=31 // pred_check_branch
              %214 = sbr.rel (0) target = $region40
            $region39: #{nonlocal_psp_correlation.3} parent=31 // pred_region
              loop: start=0, step=1, limit=1
              $region41: #{nonlocal_psp_correlation.3} parent=39 // loop_pre_header
                _
              $region42: #{nonlocal_psp_correlation.3} parent=39 // loop_header
                %s217 = sphi 0, %s221
                %p218 = scmp.ge.s32.totalorder %s217, 1
                %s222 = sphi %s208, %s208
                %s223 = sphi %s204, %s204
              $region43: #{nonlocal_psp_correlation.3} parent=39 // loop_header_branch
                %220 = sbr.rel (%p218) target = $region47
              $region44: #{nonlocal_psp_correlation.3} parent=39 // loop_body
                %v224 = vld [vmem:[%s222] sm:$0xf]
                %225 = vst [vmem:[%s223] sm:$0xf] %v224
                %v226 = vld [vmem:[%s222 + $0x14] sm:$0xf]
                %227 = vst [vmem:[%s223 + $0x4] sm:$0xf] %v226
                %v228 = vld [vmem:[%s222 + $0x28] sm:$0xf]
                %229 = vst [vmem:[%s223 + $0x8] sm:$0xf] %v228
                %v230 = vld [vmem:[%s222 + $0x3c] sm:$0xf]
                %231 = vst [vmem:[%s223 + $0xc] sm:$0xf] %v230
              $region45: #{nonlocal_psp_correlation.3} parent=39 // loop_footer
                %s221 = sadd.s32 1, %s217
              $region46: #{nonlocal_psp_correlation.3} parent=39 // loop_footer_branch
                %216 = sbr.rel target = $region42
              $region47: #{nonlocal_psp_correlation.3} parent=39 // loop_exit
                _
            $region40: #{nonlocal_psp_correlation.3} parent=31 // pred_fallthru
              _
          $region32: #{nonlocal_psp_correlation.3} parent=27 // pred_fallthru
            _
          %259 = vnop
        $region28: #{nonlocal_psp_correlation.3} parent=23 // pred_fallthru
          _
        // Predicated region
        $region66: #{nonlocal_psp_correlation.3} parent=23 // pred_check
          %p260 = pneg %p71
        $region67: #{nonlocal_psp_correlation.3} parent=23 // pred_check_branch
          %262 = sbr.rel (%p260) target = $region69
        $region68: #{nonlocal_psp_correlation.3} parent=23 // pred_region
          %s263 = smul.u32 16, %s19
          %p264 = scmp.lt.s32.totalorder %s263, 79
          %s265 = scalar_select %p264, %s263, 79
          %s266 = smul.addr %s265, 4
          %s267 = scalar_lea.vmem %s1, %s266
          %s268 = smul.u32 16, %s19
        $region69: #{nonlocal_psp_correlation.3} parent=23 // pred_fallthru
          _
        // Predicated region
        $region70: #{nonlocal_psp_correlation.3} parent=23 // pred_check
          %p269 = pneg %p97
        $region71: #{nonlocal_psp_correlation.3} parent=23 // pred_check_branch
          %271 = sbr.rel (%p269) target = $region73
        $region72: #{nonlocal_psp_correlation.3} parent=23 // pred_region
          %p272 = scmp.lt.s32.totalorder %s18, 3
          %s273 = scalar_select %p272, %s18, 3
          %s274 = smul.addr %s273, 7
          %s275 = smul.addr %s274, 4
          %s276 = scalar_lea.vmem %s2, %s275
        $region73: #{nonlocal_psp_correlation.3} parent=23 // pred_fallthru
          _
      $region24: #{nonlocal_psp_correlation.3} parent=5 // pred_fallthru
        _
      %p277 = scmp.le.s32.totalorder 1, %s11
      %p278 = scmp.lt.s32.totalorder %s11, 21
      %p279 = pnand %p277, %p278
      %p280 = pneg %p279
      // Predicated region
      $region74: #{nonlocal_psp_correlation.3} parent=5 // pred_check
        _
      $region75: #{nonlocal_psp_correlation.3} parent=5 // pred_check_branch
        %282 = sbr.rel (%p279) target = $region77
      $region76: #{nonlocal_psp_correlation.3} parent=5 // pred_region
        %s283 = ssub.s32 %s11, 1
        %s284 = sand.u32 %s38, 1
        %s285 = sand.u32 %s38, 1
        %s286 = smul.addr %s285, 16
        %s287 = scalar_lea.vmem [#allocation2], %s286
        // Predicated region
        $region78: #{nonlocal_psp_correlation.3} parent=76 // pred_check
          %p288 = pneg %p51
        $region79: #{nonlocal_psp_correlation.3} parent=76 // pred_check_branch
          %290 = sbr.rel (%p288) target = $region81
        $region80: #{nonlocal_psp_correlation.3} parent=76 // pred_region
          _
        $region81: #{nonlocal_psp_correlation.3} parent=76 // pred_fallthru
          _
        %s291 = sand.u32 %s38, 1
        %s292 = sand.u32 %s38, 1
        %s293 = smul.addr %s292, 16
        %s294 = scalar_lea.vmem [#allocation2], %s293
        %p295 = pneg %p51
        %p296 = pneg %p48
        %s297 = smul.u32 16, %s21
        %p298 = scmp.lt.s32.totalorder %s297, 79
        %s299 = scalar_select %p298, %s297, 79
        %s300 = smul.addr %s299, 4
        %s301 = scalar_lea.vmem %s1, %s300
        %p302 = pneg %p77
        %p303 = pneg %p74
        %p304 = scmp.lt.s32.totalorder %s20, 3
        %s305 = scalar_select %p304, %s20, 3
        %s306 = smul.addr %s305, 7
        %s307 = smul.addr %s306, 4
        %s308 = scalar_lea.vmem %s2, %s307
        %p309 = pneg %p103
        %p310 = pneg %p100
        %p311 = pneg %p124
        %p312 = pneg %p121
        %p313 = pneg %p145
        %p314 = pneg %p142
        %p315 = pneg %p173
        %p316 = pneg %p170
        %s317 = smul.u32 16, %s21
        %p318 = scmp.lt.s32.totalorder %s20, 3
        %s319 = scalar_select %p318, %s20, 3
        %p320 = scmp.lt.s32.totalorder %s317, 79
        %s321 = scalar_select %p320, %s317, 79
        %s322 = smul.addr %s319, 80
        %s323 = sadd.s32 %s321, %s322
        %s324 = smul.addr %s323, 4
        %s325 = scalar_lea.vmem %s5, %s324
        %s326 = smul.u32 16, %s21
        %p327 = scmp.lt.s32.totalorder %s326, 79
        %s328 = scalar_select %p327, %s326, 79
        %s329 = smul.addr %s328, 4
        %s330 = scalar_lea.vmem %s1, %s329
        %s331 = smul.u32 16, %s21
        %p332 = scmp.lt.s32.totalorder %s20, 3
        %s333 = scalar_select %p332, %s20, 3
        %s334 = smul.addr %s333, 7
        %s335 = smul.addr %s334, 4
        %s336 = scalar_lea.vmem %s2, %s335
        %s337 = smul.u32 16, %s21
        %p338 = scmp.lt.s32.totalorder %s20, 3
        %s339 = scalar_select %p338, %s20, 3
        %p340 = scmp.lt.s32.totalorder %s337, 79
        %s341 = scalar_select %p340, %s337, 79
        %s342 = smul.addr %s339, 80
        %s343 = sadd.s32 %s341, %s342
        %s344 = smul.addr %s343, 4
        %s345 = scalar_lea.vmem %s5, %s344
        %s346 = smul.u32 16, %s21
        %v348 = vld [vmem:[%s287] sm:$0xf]
        %v349 = vld [vmem:[%s287 + $0x4] sm:$0xf]
        %v350 = vld [vmem:[%s287 + $0x8] sm:$0xf]
        %v351 = vld [vmem:[%s287 + $0xc] sm:$0xf]
        %v352 = vld [vmem:[%s3] sm:$0xf]
        %v353 = vld [vmem:[%s3 + $0x4] sm:$0xf]
        %v354 = vld [vmem:[%s3 + $0x8] sm:$0xf]
        %v355 = vld [vmem:[%s3 + $0xc] sm:$0xf]
        %v356 = vld [vmem:[%s330] sm:$0xf]
        %v357 = vld [vmem:[%s330 + $0x4] sm:$0xf]
        %v358 = vld [vmem:[%s330 + $0x8] sm:$0xf]
        %v359 = vld [vmem:[%s330 + $0xc] sm:$0xf]
        %v360 = vld [vmem:[%s330 + $0x10] sm:$0xf]
        %v361 = vld [vmem:[%s330 + $0x14] sm:$0xf]
        %v362 = vld [vmem:[%s330 + $0x18] sm:$0xf]
        %v363 = vld [vmem:[%s330 + $0x1c] sm:$0xf]
        %v364 = vld [vmem:[%s330 + $0x20] sm:$0xf]
        %v365 = vld [vmem:[%s330 + $0x24] sm:$0xf]
        %v366 = vld [vmem:[%s330 + $0x28] sm:$0xf]
        %v367 = vld [vmem:[%s330 + $0x2c] sm:$0xf]
        %v368 = vld [vmem:[%s330 + $0x30] sm:$0xf]
        %v369 = vld [vmem:[%s330 + $0x34] sm:$0xf]
        %v370 = vld [vmem:[%s330 + $0x38] sm:$0xf]
        %v371 = vld [vmem:[%s330 + $0x3c] sm:$0xf]
        %v372 = vld [vmem:[%s336] sm:$0xf]
        %v373 = vld [vmem:[%s336 + $0x4] sm:$0xf]
        %v374 = vld [vmem:[%s336 + $0x8] sm:$0xf]
        %v375 = vld [vmem:[%s336 + $0xc] sm:$0xf]
        %v376 = vld [vmem:[%s336 + $0x10] sm:$0xf]
        %v377 = vld [vmem:[%s336 + $0x14] sm:$0xf]
        %v378 = vld [vmem:[%s336 + $0x18] sm:$0x1]
        %v395 = vunpack.c.l.b16 %v356
        %v396 = vunpack.c.l.b16 %v357
        %v397 = vunpack.c.l.b16 %v358
        %v398 = vunpack.c.l.b16 %v359
        %v399 = vunpack.c.l.b16 %v360
        %v400 = vunpack.c.l.b16 %v361
        %v401 = vunpack.c.l.b16 %v362
        %v402 = vunpack.c.l.b16 %v363
        %v403 = vunpack.c.l.b16 %v364
        %v404 = vunpack.c.l.b16 %v365
        %v405 = vunpack.c.l.b16 %v366
        %v406 = vunpack.c.l.b16 %v367
        %v407 = vunpack.c.l.b16 %v368
        %v408 = vunpack.c.l.b16 %v369
        %v409 = vunpack.c.l.b16 %v370
        %v410 = vunpack.c.l.b16 %v371
        %v411 = vpack.c.b16 %v396, %v395
        %v412 = vpack.c.b16 %v398, %v397
        %v413 = vpack.c.b16 %v400, %v399
        %v414 = vpack.c.b16 %v402, %v401
        %v415 = vpack.c.b16 %v404, %v403
        %v416 = vpack.c.b16 %v406, %v405
        %v417 = vpack.c.b16 %v408, %v407
        %v418 = vpack.c.b16 %v410, %v409
        %v426 = vunpack.c.l.b16 %v372
        %v427 = vunpack.c.l.b16 %v373
        %v428 = vunpack.c.l.b16 %v374
        %v429 = vunpack.c.l.b16 %v375
        %v430 = vunpack.c.l.b16 %v376
        %v431 = vunpack.c.l.b16 %v377
        %v432 = vunpack.c.l.b16 %v378
        %v433 = vpack.c.b16 %v427, %v426
        %v434 = vpack.c.b16 %v429, %v428
        %v435 = vpack.c.b16 %v431, %v430
        %v436 = vpack.c.b16 %v432, %v432
        %vm440 = vcmask 408576
        %v442 = vsel %vm440, %v411, 0
        %v445 = vsel %vm440, %v412, 0
        %v448 = vsel %vm440, %v413, 0
        %v451 = vsel %vm440, %v414, 0
        %v454 = vsel %vm440, %v415, 0
        %v457 = vsel %vm440, %v416, 0
        %v460 = vsel %vm440, %v417, 0
        %v463 = vsel %vm440, %v418, 0
        %vm465 = vcmask 1040384
        %v467 = vsel %vm465, %v436, 0
        %469 = vmatprep.subr.bf16.mxu0 0
        %470 = vmatpush1.bf16.msra.mxu0 %v433
        %471 = vmatprep.subr.bf16.mxu0 0
        %472 = vmatpush1.bf16.msra.mxu0 %v434
        %473 = vmatprep.subr.bf16.mxu0 0
        %474 = vmatpush1.bf16.msra.mxu0 %v435
        %475 = vmatprep.subr.bf16.mxu0 0
        %476 = vmatpush1.bf16.msra.mxu0 %v467
        %477 = vmatprep.subr.bf16.mxu0 0
        %478 = vmatpush1.bf16.msra.mxu0 0
        %479 = vmatprep.subr.bf16.mxu0 0
        %480 = vmatpush1.bf16.msra.mxu0 0
        %481 = vmatprep.subr.bf16.mxu0 0
        %482 = vmatpush1.bf16.msra.mxu0 0
        %483 = vmatprep.subr.bf16.mxu0 0
        %484 = vmatpush1.bf16.msra.mxu0 0
        %485 = vmatprep.subr.bf16.mxu0 0
        %486 = vmatpush1.bf16.msra.mxu0 0
        %487 = vmatprep.subr.bf16.mxu0 0
        %488 = vmatpush1.bf16.msra.mxu0 0
        %489 = vmatprep.subr.bf16.mxu0 0
        %490 = vmatpush1.bf16.msra.mxu0 0
        %491 = vmatprep.subr.bf16.mxu0 0
        %492 = vmatpush1.bf16.msra.mxu0 0
        %493 = vmatprep.subr.bf16.mxu0 0
        %494 = vmatpush1.bf16.msra.mxu0 0
        %495 = vmatprep.subr.bf16.mxu0 0
        %496 = vmatpush1.bf16.msra.mxu0 0
        %497 = vmatprep.subr.bf16.mxu0 0
        %498 = vmatpush1.bf16.msra.mxu0 0
        %499 = vmatprep.subr.bf16.mxu0 0
        %500 = vmatpush1.bf16.msra.mxu0 0
        %501 = vmatprep.mubr.bf16.mxu0 0
        %502 = vmatmul.mubr.bf16.gmra.mrb[0].mxu0 %v442
        %v503 = vpop.f32.mrb[0].mxu0
        %v504 = vadd.f32 0.0, %v503
        %v505 = vpop.f32.mrb[0].mxu0
        %v506 = vpop.f32.mrb[0].mxu0
        %v507 = vadd.f32 0.0, %v506
        %v508 = vpop.f32.mrb[0].mxu0
        %509 = vmatprep.mubr.bf16.mxu0 0
        %510 = vmatmul.mubr.bf16.gmra.mrb[0].mxu0 %v445
        %v511 = vpop.f32.mrb[0].mxu0
        %v512 = vadd.f32 0.0, %v511
        %v513 = vpop.f32.mrb[0].mxu0
        %v514 = vpop.f32.mrb[0].mxu0
        %v515 = vadd.f32 0.0, %v514
        %v516 = vpop.f32.mrb[0].mxu0
        %517 = vmatprep.mubr.bf16.mxu0 0
        %518 = vmatmul.mubr.bf16.gmra.mrb[0].mxu0 %v448
        %v519 = vpop.f32.mrb[0].mxu0
        %v520 = vadd.f32 0.0, %v519
        %v521 = vpop.f32.mrb[0].mxu0
        %v522 = vpop.f32.mrb[0].mxu0
        %v523 = vadd.f32 0.0, %v522
        %v524 = vpop.f32.mrb[0].mxu0
        %525 = vmatprep.mubr.bf16.mxu0 0
        %526 = vmatmul.mubr.bf16.gmra.mrb[0].mxu0 %v451
        %v527 = vpop.f32.mrb[0].mxu0
        %v528 = vadd.f32 0.0, %v527
        %v529 = vpop.f32.mrb[0].mxu0
        %v530 = vpop.f32.mrb[0].mxu0
        %v531 = vadd.f32 0.0, %v530
        %v532 = vpop.f32.mrb[0].mxu0
        %533 = vmatprep.mubr.bf16.mxu0 0
        %534 = vmatmul.mubr.bf16.gmra.mrb[0].mxu0 %v454
        %v535 = vpop.f32.mrb[0].mxu0
        %v536 = vadd.f32 0.0, %v535
        %v537 = vpop.f32.mrb[0].mxu0
        %v538 = vpop.f32.mrb[0].mxu0
        %v539 = vadd.f32 0.0, %v538
        %v540 = vpop.f32.mrb[0].mxu0
        %541 = vmatprep.mubr.bf16.mxu0 0
        %542 = vmatmul.mubr.bf16.gmra.mrb[0].mxu0 %v457
        %v543 = vpop.f32.mrb[0].mxu0
        %v544 = vadd.f32 0.0, %v543
        %v545 = vpop.f32.mrb[0].mxu0
        %v546 = vpop.f32.mrb[0].mxu0
        %v547 = vadd.f32 0.0, %v546
        %v548 = vpop.f32.mrb[0].mxu0
        %549 = vmatprep.mubr.bf16.mxu0 0
        %550 = vmatmul.mubr.bf16.gmra.mrb[0].mxu0 %v460
        %v551 = vpop.f32.mrb[0].mxu0
        %v552 = vadd.f32 0.0, %v551
        %v553 = vpop.f32.mrb[0].mxu0
        %v554 = vpop.f32.mrb[0].mxu0
        %v555 = vadd.f32 0.0, %v554
        %v556 = vpop.f32.mrb[0].mxu0
        %557 = vmatprep.mubr.bf16.mxu0 0
        %558 = vmatmul.mubr.bf16.gmra.mrb[0].mxu0 %v463
        %v559 = vpop.f32.mrb[0].mxu0
        %v560 = vadd.f32 0.0, %v559
        %v561 = vpop.f32.mrb[0].mxu0
        %v562 = vpop.f32.mrb[0].mxu0
        %v563 = vadd.f32 0.0, %v562
        %v564 = vpop.f32.mrb[0].mxu0
        %565 = vdwg.mxu0
        %v570 = vunpack.c.l.b16 %v348
        %v571 = vunpack.c.l.b16 %v349
        %v572 = vunpack.c.l.b16 %v350
        %v573 = vunpack.c.l.b16 %v351
        %v574 = vpack.c.b16 %v571, %v570
        %v575 = vpack.c.b16 %v573, %v572
        %578 = vxpose.xlu0.c.b16.start [1/8] %v574, 128
        %579 = vxpose.xlu0.c.b16.cont [2/8] %v575, 128
        %580 = vxpose.xlu0.c.b16.cont [3/8] 0, 128
        %581 = vxpose.xlu0.c.b16.cont [4/8] 0, 128
        %582 = vxpose.xlu0.c.b16.cont [5/8] 0, 128
        %583 = vxpose.xlu0.c.b16.cont [6/8] 0, 128
        %584 = vxpose.xlu0.c.b16.cont [7/8] 0, 128
        %585 = vxpose.xlu0.c.b16.end [8/8] 0, 128
        %v586 = vpop.trf.xlu0
        %v587 = vpop.trf.xlu0
        %v588 = vpop.trf.xlu0
        %v589 = vpop.trf.xlu0
        %v590 = vpop.trf.xlu0
        %v591 = vpop.trf.xlu0
        %v592 = vpop.trf.xlu0
        %v593 = vpop.trf.xlu0
        %v598 = vunpack.c.l.b16 %v352
        %v599 = vunpack.c.l.b16 %v353
        %v600 = vunpack.c.l.b16 %v354
        %v601 = vunpack.c.l.b16 %v355
        %v602 = vpack.c.b16 %v599, %v598
        %v603 = vpack.c.b16 %v601, %v600
        %vm606 = vcmask 261120
        %v608 = vsel %vm606, %v586, 0
        %v611 = vsel %vm606, %v587, 0
        %v614 = vsel %vm606, %v588, 0
        %v617 = vsel %vm606, %v589, 0
        %v620 = vsel %vm606, %v590, 0
        %v623 = vsel %vm606, %v591, 0
        %v626 = vsel %vm606, %v592, 0
        %v629 = vsel %vm606, %v593, 0
        %631 = vmatprep.subr.bf16.mxu0 0
        %632 = vmatpush1.bf16.msra.mxu0 %v602
        %633 = vmatprep.subr.bf16.mxu0 0
        %634 = vmatpush1.bf16.msra.mxu0 %v603
        %635 = vmatprep.subr.bf16.mxu0 0
        %636 = vmatpush1.bf16.msra.mxu0 0
        %637 = vmatprep.subr.bf16.mxu0 0
        %638 = vmatpush1.bf16.msra.mxu0 0
        %639 = vmatprep.subr.bf16.mxu0 0
        %640 = vmatpush1.bf16.msra.mxu0 0
        %641 = vmatprep.subr.bf16.mxu0 0
        %642 = vmatpush1.bf16.msra.mxu0 0
        %643 = vmatprep.subr.bf16.mxu0 0
        %644 = vmatpush1.bf16.msra.mxu0 0
        %645 = vmatprep.subr.bf16.mxu0 0
        %646 = vmatpush1.bf16.msra.mxu0 0
        %647 = vmatprep.subr.bf16.mxu0 0
        %648 = vmatpush1.bf16.msra.mxu0 0
        %649 = vmatprep.subr.bf16.mxu0 0
        %650 = vmatpush1.bf16.msra.mxu0 0
        %651 = vmatprep.subr.bf16.mxu0 0
        %652 = vmatpush1.bf16.msra.mxu0 0
        %653 = vmatprep.subr.bf16.mxu0 0
        %654 = vmatpush1.bf16.msra.mxu0 0
        %655 = vmatprep.subr.bf16.mxu0 0
        %656 = vmatpush1.bf16.msra.mxu0 0
        %657 = vmatprep.subr.bf16.mxu0 0
        %658 = vmatpush1.bf16.msra.mxu0 0
        %659 = vmatprep.subr.bf16.mxu0 0
        %660 = vmatpush1.bf16.msra.mxu0 0
        %661 = vmatprep.subr.bf16.mxu0 0
        %662 = vmatpush1.bf16.msra.mxu0 0
        %663 = vmatprep.mubr.bf16.mxu0 0
        %664 = vmatmul.mubr.bf16.gmra.mrb[0].mxu0 %v608
        %v665 = vpop.f32.mrb[0].mxu0
        %v666 = vadd.f32 %v504, %v665
        %v667 = vpop.f32.mrb[0].mxu0
        %v668 = vpop.f32.mrb[0].mxu0
        %v669 = vadd.f32 %v507, %v668
        %v670 = vpop.f32.mrb[0].mxu0
        %671 = vmatprep.mubr.bf16.mxu0 0
        %672 = vmatmul.mubr.bf16.gmra.mrb[0].mxu0 %v611
        %v673 = vpop.f32.mrb[0].mxu0
        %v674 = vadd.f32 %v512, %v673
        %v675 = vpop.f32.mrb[0].mxu0
        %v676 = vpop.f32.mrb[0].mxu0
        %v677 = vadd.f32 %v515, %v676
        %v678 = vpop.f32.mrb[0].mxu0
        %679 = vmatprep.mubr.bf16.mxu0 0
        %680 = vmatmul.mubr.bf16.gmra.mrb[0].mxu0 %v614
        %v681 = vpop.f32.mrb[0].mxu0
        %v682 = vadd.f32 %v520, %v681
        %v683 = vpop.f32.mrb[0].mxu0
        %v684 = vpop.f32.mrb[0].mxu0
        %v685 = vadd.f32 %v523, %v684
        %v686 = vpop.f32.mrb[0].mxu0
        %687 = vmatprep.mubr.bf16.mxu0 0
        %688 = vmatmul.mubr.bf16.gmra.mrb[0].mxu0 %v617
        %v689 = vpop.f32.mrb[0].mxu0
        %v690 = vadd.f32 %v528, %v689
        %v691 = vpop.f32.mrb[0].mxu0
        %v692 = vpop.f32.mrb[0].mxu0
        %v693 = vadd.f32 %v531, %v692
        %v694 = vpop.f32.mrb[0].mxu0
        %695 = vmatprep.mubr.bf16.mxu0 0
        %696 = vmatmul.mubr.bf16.gmra.mrb[0].mxu0 %v620
        %v697 = vpop.f32.mrb[0].mxu0
        %v698 = vadd.f32 %v536, %v697
        %v699 = vpop.f32.mrb[0].mxu0
        %v700 = vpop.f32.mrb[0].mxu0
        %v701 = vadd.f32 %v539, %v700
        %v702 = vpop.f32.mrb[0].mxu0
        %703 = vmatprep.mubr.bf16.mxu0 0
        %704 = vmatmul.mubr.bf16.gmra.mrb[0].mxu0 %v623
        %v705 = vpop.f32.mrb[0].mxu0
        %v706 = vadd.f32 %v544, %v705
        %v707 = vpop.f32.mrb[0].mxu0
        %v708 = vpop.f32.mrb[0].mxu0
        %v709 = vadd.f32 %v547, %v708
        %v710 = vpop.f32.mrb[0].mxu0
        %711 = vmatprep.mubr.bf16.mxu0 0
        %712 = vmatmul.mubr.bf16.gmra.mrb[0].mxu0 %v626
        %v713 = vpop.f32.mrb[0].mxu0
        %v714 = vadd.f32 %v552, %v713
        %v715 = vpop.f32.mrb[0].mxu0
        %v716 = vpop.f32.mrb[0].mxu0
        %v717 = vadd.f32 %v555, %v716
        %v718 = vpop.f32.mrb[0].mxu0
        %719 = vmatprep.mubr.bf16.mxu0 0
        %720 = vmatmul.mubr.bf16.gmra.mrb[0].mxu0 %v629
        %v721 = vpop.f32.mrb[0].mxu0
        %v722 = vadd.f32 %v560, %v721
        %v723 = vpop.f32.mrb[0].mxu0
        %v724 = vpop.f32.mrb[0].mxu0
        %v725 = vadd.f32 %v563, %v724
        %v726 = vpop.f32.mrb[0].mxu0
        %727 = vdwg.mxu0
        %v728 = vld [vmem:[%s4] sm:$0x1]
        %v730 = vlaneseq
        %v731 = vshrl.u32 %v730, 7
        %v732 = vsub.s32 0, %v731
        %v733 = vrot.slane %v728, %v732
        %v735 = vadd.f32 %v666, %v733
        %v736 = vadd.f32 %v669, %v733
        %v737 = vadd.f32 %v674, %v733
        %v738 = vadd.f32 %v677, %v733
        %v739 = vadd.f32 %v682, %v733
        %v740 = vadd.f32 %v685, %v733
        %v741 = vadd.f32 %v690, %v733
        %v742 = vadd.f32 %v693, %v733
        %v743 = vadd.f32 %v698, %v733
        %v744 = vadd.f32 %v701, %v733
        %v745 = vadd.f32 %v706, %v733
        %v746 = vadd.f32 %v709, %v733
        %v747 = vadd.f32 %v714, %v733
        %v748 = vadd.f32 %v717, %v733
        %v749 = vadd.f32 %v722, %v733
        %v750 = vadd.f32 %v725, %v733
        %v751 = vmax.f32 %v735, 0.0
        %v752 = vmax.f32 %v736, 0.0
        %v753 = vmax.f32 %v737, 0.0
        %v754 = vmax.f32 %v738, 0.0
        %v755 = vmax.f32 %v739, 0.0
        %v756 = vmax.f32 %v740, 0.0
        %v757 = vmax.f32 %v741, 0.0
        %v758 = vmax.f32 %v742, 0.0
        %v759 = vmax.f32 %v743, 0.0
        %v760 = vmax.f32 %v744, 0.0
        %v761 = vmax.f32 %v745, 0.0
        %v762 = vmax.f32 %v746, 0.0
        %v763 = vmax.f32 %v747, 0.0
        %v764 = vmax.f32 %v748, 0.0
        %v765 = vmax.f32 %v749, 0.0
        %v766 = vmax.f32 %v750, 0.0
        %v767 = vpack.c.bf16 %v752, %v751
        %v768 = vpack.c.bf16 %v754, %v753
        %v769 = vpack.c.bf16 %v756, %v755
        %v770 = vpack.c.bf16 %v758, %v757
        %v771 = vpack.c.bf16 %v760, %v759
        %v772 = vpack.c.bf16 %v762, %v761
        %v773 = vpack.c.bf16 %v764, %v763
        %v774 = vpack.c.bf16 %v766, %v765
        %v783 = vunpack.c.l.b16 %v767
        %v784 = vunpack.c.h.b16 %v767
        %v785 = vunpack.c.l.b16 %v768
        %v786 = vunpack.c.h.b16 %v768
        %v787 = vunpack.c.l.b16 %v769
        %v788 = vunpack.c.h.b16 %v769
        %v789 = vunpack.c.l.b16 %v770
        %v790 = vunpack.c.h.b16 %v770
        %v791 = vunpack.c.l.b16 %v771
        %v792 = vunpack.c.h.b16 %v771
        %v793 = vunpack.c.l.b16 %v772
        %v794 = vunpack.c.h.b16 %v772
        %v795 = vunpack.c.l.b16 %v773
        %v796 = vunpack.c.h.b16 %v773
        %v797 = vunpack.c.l.b16 %v774
        %v798 = vunpack.c.h.b16 %v774
        %v799 = vpack.c.b16 %v783, %v783
        %v800 = vpack.c.b16 %v784, %v784
        %v801 = vpack.c.b16 %v785, %v785
        %v802 = vpack.c.b16 %v786, %v786
        %v803 = vpack.c.b16 %v787, %v787
        %v804 = vpack.c.b16 %v788, %v788
        %v805 = vpack.c.b16 %v789, %v789
        %v806 = vpack.c.b16 %v790, %v790
        %v807 = vpack.c.b16 %v791, %v791
        %v808 = vpack.c.b16 %v792, %v792
        %v809 = vpack.c.b16 %v793, %v793
        %v810 = vpack.c.b16 %v794, %v794
        %v811 = vpack.c.b16 %v795, %v795
        %v812 = vpack.c.b16 %v796, %v796
        %v813 = vpack.c.b16 %v797, %v797
        %v814 = vpack.c.b16 %v798, %v798
        %vm831 = vcmask 125952
        %832 = vst.msk [vmem:[%s345] sm:$0xf] %vm831, %v799
        %833 = vst.msk [vmem:[%s345 + $0x4] sm:$0xf] %vm831, %v800
        %834 = vst.msk [vmem:[%s345 + $0x8] sm:$0xf] %vm831, %v801
        %835 = vst.msk [vmem:[%s345 + $0xc] sm:$0xf] %vm831, %v802
        %836 = vst.msk [vmem:[%s345 + $0x10] sm:$0xf] %vm831, %v803
        %837 = vst.msk [vmem:[%s345 + $0x14] sm:$0xf] %vm831, %v804
        %838 = vst.msk [vmem:[%s345 + $0x18] sm:$0xf] %vm831, %v805
        %839 = vst.msk [vmem:[%s345 + $0x1c] sm:$0xf] %vm831, %v806
        %840 = vst.msk [vmem:[%s345 + $0x20] sm:$0xf] %vm831, %v807
        %841 = vst.msk [vmem:[%s345 + $0x24] sm:$0xf] %vm831, %v808
        %842 = vst.msk [vmem:[%s345 + $0x28] sm:$0xf] %vm831, %v809
        %843 = vst.msk [vmem:[%s345 + $0x2c] sm:$0xf] %vm831, %v810
        %844 = vst.msk [vmem:[%s345 + $0x30] sm:$0xf] %vm831, %v811
        %845 = vst.msk [vmem:[%s345 + $0x34] sm:$0xf] %vm831, %v812
        %846 = vst.msk [vmem:[%s345 + $0x38] sm:$0xf] %vm831, %v813
        %847 = vst.msk [vmem:[%s345 + $0x3c] sm:$0xf] %vm831, %v814
        %s848 = smul.u32 16, %s21
        %p849 = scmp.lt.s32.totalorder %s20, 3
        %s850 = scalar_select %p849, %s20, 3
        %p851 = scmp.lt.s32.totalorder %s848, 79
        %s852 = scalar_select %p851, %s848, 79
        %s853 = smul.addr %s850, 80
        %s854 = sadd.s32 %s852, %s853
        %s855 = smul.addr %s854, 4
        %s856 = scalar_lea.vmem %s5, %s855
        // Predicated region
        $region82: #{nonlocal_psp_correlation.3} parent=76 // pred_check
          %p857 = pneg %p170
        $region83: #{nonlocal_psp_correlation.3} parent=76 // pred_check_branch
          %859 = sbr.rel (%p857) target = $region85
        $region84: #{nonlocal_psp_correlation.3} parent=76 // pred_region
          %s860 = smul.u32 16, %s21
        $region85: #{nonlocal_psp_correlation.3} parent=76 // pred_fallthru
          _
      $region77: #{nonlocal_psp_correlation.3} parent=5 // pred_fallthru
        _
      %p861 = scmp.le.s32.totalorder 2, %s11
      // Predicated region
      $region86: #{nonlocal_psp_correlation.3} parent=5 // pred_check
        %p862 = pneg %p861
      $region87: #{nonlocal_psp_correlation.3} parent=5 // pred_check_branch
        %864 = sbr.rel (%p862) target = $region89
      $region88: #{nonlocal_psp_correlation.3} parent=5 // pred_region
        %s865 = ssub.s32 %s11, 2
        // Predicated region
        $region90: #{nonlocal_psp_correlation.3} parent=88 // pred_check
          %p866 = pneg %p176
        $region91: #{nonlocal_psp_correlation.3} parent=88 // pred_check_branch
          %868 = sbr.rel (%p866) target = $region93
        $region92: #{nonlocal_psp_correlation.3} parent=88 // pred_region
          %s869 = smul.u32 16, %s23
          %p870 = scmp.lt.s32.totalorder %s22, 3
          %s871 = scalar_select %p870, %s22, 3
          %p872 = scmp.lt.s32.totalorder %s869, 79
          %s873 = scalar_select %p872, %s869, 79
          %s874 = smul.addr %s871, 80
          %s875 = sadd.s32 %s873, %s874
          %s876 = smul.addr %s875, 4
          %s877 = scalar_lea.vmem %s5, %s876
        $region93: #{nonlocal_psp_correlation.3} parent=88 // pred_fallthru
          _
      $region89: #{nonlocal_psp_correlation.3} parent=5 // pred_fallthru
        _
    $region6: #{nonlocal_psp_correlation.3} parent=1 // loop_footer
      %s15 = sadd.s32 1, %s11
    $region7: #{nonlocal_psp_correlation.3} parent=1 // loop_footer_branch
      %10 = sbr.rel target = $region3
    $region8: #{nonlocal_psp_correlation.3} parent=1 // loop_exit
      _

// kernel: nonlocal_psp_correlation.4
$region0: #{nonlocal_psp_correlation.4}
  #allocation0 [shape = 'u32[]', space=smem, size = 0x4, offset = 0x4, fixed_abs, tag = 'smem constant byte address 0x4 - core index']
  #allocation1 [shape = 'u32[144,128]{1,0:T(1,128)}', space=vmem, size = 0x12000, scoped, tag = 'internal scratch']
  %s0 = inlined_call_operand.vmem [shape: bf16[4,640,16], index: 0, kind: input, shape index: {}]
  %s1 = inlined_call_operand.vmem [shape: bf16[16,8], index: 1, kind: input, shape index: {}]
  %s2 = inlined_call_operand.vmem [shape: f32[1,8], index: 2, kind: input, shape index: {}]
  %s3 = inlined_call_operand.vmem [shape: bf16[16,8], index: 3, kind: input, shape index: {}]
  %s4 = inlined_call_operand.vmem [shape: f32[1,8], index: 4, kind: input, shape index: {}]
  %s5 = inlined_call_operand.vmem [shape: bf16[2,640,8], index: 5, kind: output, shape index: {0}]
  %s6 = inlined_call_operand.vmem [shape: bf16[2,640,8], index: 6, kind: output, shape index: {1}]
  %7 = xla_tuple %s5, %s6
  %s8 = sld [smem:[#allocation0]]
  $region61: #{nonlocal_psp_correlation.4} parent=0
    _
  %s10 = ssub.s32 1, %s8
  %s11 = scalar_select 0, %s10, %s8
  loop: start=0, step=1, limit=12
  $region2: #{nonlocal_psp_correlation.4} parent=0 // loop_pre_header
    _
  $region3: #{nonlocal_psp_correlation.4} parent=0 // loop_header
    %s13 = sphi 0, %s17
    %p14 = scmp.ge.s32.totalorder %s13, 12
    %s20 = sphi 0, %s32
    %s21 = sphi 0, %s28
    %s22 = sphi 0, %s20
    %s23 = sphi 0, %s21
    %s24 = sphi 0, %s22
    %s25 = sphi 0, %s23
    %s39 = sphi 0, %s41
    %s42 = sphi 0, %s39
    %s43 = sphi 0, %s42
    %s59 = sphi 0, %s43
    %s63 = sphi 0, %s63
    %s65 = sphi 0, %s63
    %s66 = sphi 0, %s65
    %s80 = sphi 0, %s66
    %s84 = sphi 0, %s84
    %s86 = sphi 0, %s84
    %s87 = sphi 0, %s86
    %s101 = sphi 0, %s87
    %s105 = sphi 0, %s105
    %s107 = sphi 0, %s105
    %s108 = sphi 0, %s107
    %s122 = sphi 0, %s108
    %s126 = sphi 0, %s126
    %s128 = sphi 0, %s126
    %s129 = sphi 0, %s128
    %s143 = sphi 0, %s129
    %s151 = sphi 0, %s153
    %s154 = sphi 0, %s151
    %s155 = sphi 0, %s154
    %s171 = sphi 0, %s155
    %s179 = sphi 0, %s181
    %s182 = sphi 0, %s179
    %s183 = sphi 0, %s182
    %s199 = sphi 0, %s183
  $region4: #{nonlocal_psp_correlation.4} parent=0 // loop_header_branch
    %16 = sbr.rel (%p14) target = $region8
  $region5: #{nonlocal_psp_correlation.4} parent=0 // loop_body
    %s18 = ssub.s32 %s13, 1
    %s19 = ssub.s32 %s13, 2
    %s26 = sadd.s32 1, %s21
    %p27 = scmp.ge.s32.totalorder %s26, 5
    %s28 = scalar_select %p27, 0, %s26
    %s29 = sadd.s32 1, %s20
    %s30 = scalar_select %p27, %s29, %s20
    %p31 = scmp.ge.s32.totalorder %s30, 2
    %s32 = scalar_select %p31, 0, %s30
    %s33 = sadd.s32 %s20, 2
    %s34 = sadd.s32 %s32, 2
    %s35 = ssub.s32 %s33, %s34
    %s36 = ssub.s32 %s21, %s28
    %s37 = sor.u32 %s35, %s36
    %p38 = scmp.eq.s32.totalorder %s37, 0
    %s40 = sadd.s32 %s39, 1
    %s41 = scalar_select %p38, %s39, %s40
    %p44 = pneg %p38
    %p45 = scmp.eq.s32.totalorder %s13, 9
    %p46 = por %p44, %p45
    %p47 = scmp.ne.s32.totalorder %s39, %s42
    %p48 = scmp.eq.s32.totalorder %s13, 0
    %p49 = por %p47, %p48
    %p50 = scmp.ne.s32.totalorder %s39, %s42
    %p51 = scmp.eq.s32.totalorder %s18, 9
    %p52 = por %p50, %p51
    %p53 = scmp.ne.s32.totalorder %s42, %s43
    %p54 = scmp.eq.s32.totalorder %s18, 0
    %p55 = por %p53, %p54
    %p56 = scmp.ne.s32.totalorder %s42, %s43
    %p57 = scmp.eq.s32.totalorder %s19, 9
    %p58 = por %p56, %p57
    %p60 = scmp.ne.s32.totalorder %s43, %s59
    %p61 = scmp.eq.s32.totalorder %s19, 0
    %p62 = por %p60, %p61
    %s64 = sadd.s32 %s63, 1
    %p67 = scmp.eq.s32.totalorder %s13, 9
    %p68 = scmp.ne.s32.totalorder %s63, %s65
    %p69 = scmp.eq.s32.totalorder %s13, 0
    %p70 = por %p68, %p69
    %p71 = scmp.ne.s32.totalorder %s63, %s65
    %p72 = scmp.eq.s32.totalorder %s18, 9
    %p73 = por %p71, %p72
    %p74 = scmp.ne.s32.totalorder %s65, %s66
    %p75 = scmp.eq.s32.totalorder %s18, 0
    %p76 = por %p74, %p75
    %p77 = scmp.ne.s32.totalorder %s65, %s66
    %p78 = scmp.eq.s32.totalorder %s19, 9
    %p79 = por %p77, %p78
    %p81 = scmp.ne.s32.totalorder %s66, %s80
    %p82 = scmp.eq.s32.totalorder %s19, 0
    %p83 = por %p81, %p82
    %s85 = sadd.s32 %s84, 1
    %p88 = scmp.eq.s32.totalorder %s13, 9
    %p89 = scmp.ne.s32.totalorder %s84, %s86
    %p90 = scmp.eq.s32.totalorder %s13, 0
    %p91 = por %p89, %p90
    %p92 = scmp.ne.s32.totalorder %s84, %s86
    %p93 = scmp.eq.s32.totalorder %s18, 9
    %p94 = por %p92, %p93
    %p95 = scmp.ne.s32.totalorder %s86, %s87
    %p96 = scmp.eq.s32.totalorder %s18, 0
    %p97 = por %p95, %p96
    %p98 = scmp.ne.s32.totalorder %s86, %s87
    %p99 = scmp.eq.s32.totalorder %s19, 9
    %p100 = por %p98, %p99
    %p102 = scmp.ne.s32.totalorder %s87, %s101
    %p103 = scmp.eq.s32.totalorder %s19, 0
    %p104 = por %p102, %p103
    %s106 = sadd.s32 %s105, 1
    %p109 = scmp.eq.s32.totalorder %s13, 9
    %p110 = scmp.ne.s32.totalorder %s105, %s107
    %p111 = scmp.eq.s32.totalorder %s13, 0
    %p112 = por %p110, %p111
    %p113 = scmp.ne.s32.totalorder %s105, %s107
    %p114 = scmp.eq.s32.totalorder %s18, 9
    %p115 = por %p113, %p114
    %p116 = scmp.ne.s32.totalorder %s107, %s108
    %p117 = scmp.eq.s32.totalorder %s18, 0
    %p118 = por %p116, %p117
    %p119 = scmp.ne.s32.totalorder %s107, %s108
    %p120 = scmp.eq.s32.totalorder %s19, 9
    %p121 = por %p119, %p120
    %p123 = scmp.ne.s32.totalorder %s108, %s122
    %p124 = scmp.eq.s32.totalorder %s19, 0
    %p125 = por %p123, %p124
    %s127 = sadd.s32 %s126, 1
    %p130 = scmp.eq.s32.totalorder %s13, 9
    %p131 = scmp.ne.s32.totalorder %s126, %s128
    %p132 = scmp.eq.s32.totalorder %s13, 0
    %p133 = por %p131, %p132
    %p134 = scmp.ne.s32.totalorder %s126, %s128
    %p135 = scmp.eq.s32.totalorder %s18, 9
    %p136 = por %p134, %p135
    %p137 = scmp.ne.s32.totalorder %s128, %s129
    %p138 = scmp.eq.s32.totalorder %s18, 0
    %p139 = por %p137, %p138
    %p140 = scmp.ne.s32.totalorder %s128, %s129
    %p141 = scmp.eq.s32.totalorder %s19, 9
    %p142 = por %p140, %p141
    %p144 = scmp.ne.s32.totalorder %s129, %s143
    %p145 = scmp.eq.s32.totalorder %s19, 0
    %p146 = por %p144, %p145
    %s147 = ssub.s32 %s20, %s32
    %s148 = ssub.s32 %s21, %s28
    %s149 = sor.u32 %s147, %s148
    %p150 = scmp.eq.s32.totalorder %s149, 0
    %s152 = sadd.s32 %s151, 1
    %s153 = scalar_select %p150, %s151, %s152
    %p156 = pneg %p150
    %p157 = scmp.eq.s32.totalorder %s13, 9
    %p158 = por %p156, %p157
    %p159 = scmp.ne.s32.totalorder %s151, %s154
    %p160 = scmp.eq.s32.totalorder %s13, 0
    %p161 = por %p159, %p160
    %p162 = scmp.ne.s32.totalorder %s151, %s154
    %p163 = scmp.eq.s32.totalorder %s18, 9
    %p164 = por %p162, %p163
    %p165 = scmp.ne.s32.totalorder %s154, %s155
    %p166 = scmp.eq.s32.totalorder %s18, 0
    %p167 = por %p165, %p166
    %p168 = scmp.ne.s32.totalorder %s154, %s155
    %p169 = scmp.eq.s32.totalorder %s19, 9
    %p170 = por %p168, %p169
    %p172 = scmp.ne.s32.totalorder %s155, %s171
    %p173 = scmp.eq.s32.totalorder %s19, 0
    %p174 = por %p172, %p173
    %s175 = ssub.s32 %s20, %s32
    %s176 = ssub.s32 %s21, %s28
    %s177 = sor.u32 %s175, %s176
    %p178 = scmp.eq.s32.totalorder %s177, 0
    %s180 = sadd.s32 %s179, 1
    %s181 = scalar_select %p178, %s179, %s180
    %p184 = pneg %p178
    %p185 = scmp.eq.s32.totalorder %s13, 9
    %p186 = por %p184, %p185
    %p187 = scmp.ne.s32.totalorder %s179, %s182
    %p188 = scmp.eq.s32.totalorder %s13, 0
    %p189 = por %p187, %p188
    %p190 = scmp.ne.s32.totalorder %s179, %s182
    %p191 = scmp.eq.s32.totalorder %s18, 9
    %p192 = por %p190, %p191
    %p193 = scmp.ne.s32.totalorder %s182, %s183
    %p194 = scmp.eq.s32.totalorder %s18, 0
    %p195 = por %p193, %p194
    %p196 = scmp.ne.s32.totalorder %s182, %s183
    %p197 = scmp.eq.s32.totalorder %s19, 9
    %p198 = por %p196, %p197
    %p200 = scmp.ne.s32.totalorder %s183, %s199
    %p201 = scmp.eq.s32.totalorder %s19, 0
    %p202 = por %p200, %p201
    %p203 = scmp.le.s32.totalorder 1, %s13
    %p204 = scmp.lt.s32.totalorder %s13, 11
    %p205 = pnand %p203, %p204
    %p206 = pneg %p205
    // Predicated region
    $region9: #{nonlocal_psp_correlation.4} parent=5 // pred_check
      _
    $region10: #{nonlocal_psp_correlation.4} parent=5 // pred_check_branch
      %208 = sbr.rel (%p205) target = $region12
    $region11: #{nonlocal_psp_correlation.4} parent=5 // pred_region
      %s209 = ssub.s32 %s13, 1
      // Predicated region
      $region13: #{nonlocal_psp_correlation.4} parent=11 // pred_check
        %p210 = pneg %p76
      $region14: #{nonlocal_psp_correlation.4} parent=11 // pred_check_branch
        %212 = sbr.rel (%p210) target = $region16
      $region15: #{nonlocal_psp_correlation.4} parent=11 // pred_region
        _
      $region16: #{nonlocal_psp_correlation.4} parent=11 // pred_fallthru
        _
      // Predicated region
      $region17: #{nonlocal_psp_correlation.4} parent=11 // pred_check
        %p213 = pneg %p97
      $region18: #{nonlocal_psp_correlation.4} parent=11 // pred_check_branch
        %215 = sbr.rel (%p213) target = $region20
      $region19: #{nonlocal_psp_correlation.4} parent=11 // pred_region
        _
      $region20: #{nonlocal_psp_correlation.4} parent=11 // pred_fallthru
        _
      // Predicated region
      $region21: #{nonlocal_psp_correlation.4} parent=11 // pred_check
        %p216 = pneg %p118
      $region22: #{nonlocal_psp_correlation.4} parent=11 // pred_check_branch
        %218 = sbr.rel (%p216) target = $region24
      $region23: #{nonlocal_psp_correlation.4} parent=11 // pred_region
        _
      $region24: #{nonlocal_psp_correlation.4} parent=11 // pred_fallthru
        _
      // Predicated region
      $region25: #{nonlocal_psp_correlation.4} parent=11 // pred_check
        %p219 = pneg %p139
      $region26: #{nonlocal_psp_correlation.4} parent=11 // pred_check_branch
        %221 = sbr.rel (%p219) target = $region28
      $region27: #{nonlocal_psp_correlation.4} parent=11 // pred_region
        _
      $region28: #{nonlocal_psp_correlation.4} parent=11 // pred_fallthru
        _
    $region12: #{nonlocal_psp_correlation.4} parent=5 // pred_fallthru
      _
    %p222 = scmp.lt.s32.totalorder %s13, 10
    // Predicated region
    $region29: #{nonlocal_psp_correlation.4} parent=5 // pred_check
      %p223 = pneg %p222
    $region30: #{nonlocal_psp_correlation.4} parent=5 // pred_check_branch
      %225 = sbr.rel (%p223) target = $region32
    $region31: #{nonlocal_psp_correlation.4} parent=5 // pred_region
      // Predicated region
      $region33: #{nonlocal_psp_correlation.4} parent=31 // pred_check
        %p226 = pneg %p49
      $region34: #{nonlocal_psp_correlation.4} parent=31 // pred_check_branch
        %228 = sbr.rel (%p226) target = $region36
      $region35: #{nonlocal_psp_correlation.4} parent=31 // pred_region
        %s229 = sadd.s32 %s20, 2
        %s230 = smul.u32 16, %s21
        %p231 = scmp.lt.s32.totalorder %s229, 3
        %s232 = scalar_select %p231, %s229, 3
        %p233 = scmp.lt.s32.totalorder %s230, 79
        %s234 = scalar_select %p233, %s230, 79
        %s235 = smul.addr %s232, 80
        %s236 = sadd.s32 %s234, %s235
        %s237 = smul.addr %s236, 4
        %s238 = scalar_lea.vmem %s0, %s237
        %s239 = sadd.s32 %s20, 2
        %s240 = smul.u32 16, %s21
      $region36: #{nonlocal_psp_correlation.4} parent=31 // pred_fallthru
        _
    $region32: #{nonlocal_psp_correlation.4} parent=5 // pred_fallthru
      _
    %p241 = scmp.le.s32.totalorder 1, %s13
    %p242 = scmp.lt.s32.totalorder %s13, 11
    %p243 = pnand %p241, %p242
    %p244 = pneg %p243
    // Predicated region
    $region37: #{nonlocal_psp_correlation.4} parent=5 // pred_check
      _
    $region38: #{nonlocal_psp_correlation.4} parent=5 // pred_check_branch
      %246 = sbr.rel (%p243) target = $region40
    $region39: #{nonlocal_psp_correlation.4} parent=5 // pred_region
      %s247 = ssub.s32 %s13, 1
      %s248 = sadd.s32 %s22, 2
      %s249 = smul.u32 16, %s23
      %p250 = scmp.lt.s32.totalorder %s248, 3
      %s251 = scalar_select %p250, %s248, 3
      %p252 = scmp.lt.s32.totalorder %s249, 79
      %s253 = scalar_select %p252, %s249, 79
      %s254 = smul.addr %s251, 80
      %s255 = sadd.s32 %s253, %s254
      %s256 = smul.addr %s255, 4
      %s257 = scalar_lea.vmem %s0, %s256
      %p258 = pneg %p55
      %p259 = pneg %p52
      %p260 = pneg %p76
      %p261 = pneg %p73
      %p262 = pneg %p97
      %p263 = pneg %p94
      %p264 = pneg %p118
      %p265 = pneg %p115
      %p266 = pneg %p139
      %p267 = pneg %p136
      %p268 = pneg %p167
      %p269 = pneg %p164
      %s270 = smul.u32 16, %s23
      %p271 = scmp.lt.s32.totalorder %s22, 1
      %s272 = scalar_select %p271, %s22, 1
      %p273 = scmp.lt.s32.totalorder %s270, 79
      %s274 = scalar_select %p273, %s270, 79
      %s275 = smul.addr %s272, 80
      %s276 = sadd.s32 %s274, %s275
      %s277 = smul.addr %s276, 4
      %s278 = scalar_lea.vmem %s5, %s277
      %p279 = pneg %p195
      %p280 = pneg %p192
      %s281 = smul.u32 16, %s23
      %p282 = scmp.lt.s32.totalorder %s22, 1
      %s283 = scalar_select %p282, %s22, 1
      %p284 = scmp.lt.s32.totalorder %s281, 79
      %s285 = scalar_select %p284, %s281, 79
      %s286 = smul.addr %s283, 80
      %s287 = sadd.s32 %s285, %s286
      %s288 = smul.addr %s287, 4
      %s289 = scalar_lea.vmem %s6, %s288
      %s290 = sadd.s32 %s22, 2
      %s291 = smul.u32 16, %s23
      %p292 = scmp.lt.s32.totalorder %s290, 3
      %s293 = scalar_select %p292, %s290, 3
      %p294 = scmp.lt.s32.totalorder %s291, 79
      %s295 = scalar_select %p294, %s291, 79
      %s296 = smul.addr %s293, 80
      %s297 = sadd.s32 %s295, %s296
      %s298 = smul.addr %s297, 4
      %s299 = scalar_lea.vmem %s0, %s298
      %s300 = sadd.s32 %s22, 2
      %s301 = smul.u32 16, %s23
      %s302 = smul.u32 16, %s23
      %p303 = scmp.lt.s32.totalorder %s22, 1
      %s304 = scalar_select %p303, %s22, 1
      %p305 = scmp.lt.s32.totalorder %s302, 79
      %s306 = scalar_select %p305, %s302, 79
      %s307 = smul.addr %s304, 80
      %s308 = sadd.s32 %s306, %s307
      %s309 = smul.addr %s308, 4
      %s310 = scalar_lea.vmem %s5, %s309
      %s311 = smul.u32 16, %s23
      %s312 = smul.u32 16, %s23
      %p313 = scmp.lt.s32.totalorder %s22, 1
      %s314 = scalar_select %p313, %s22, 1
      %p315 = scmp.lt.s32.totalorder %s312, 79
      %s316 = scalar_select %p315, %s312, 79
      %s317 = smul.addr %s314, 80
      %s318 = sadd.s32 %s316, %s317
      %s319 = smul.addr %s318, 4
      %s320 = scalar_lea.vmem %s6, %s319
      %s321 = smul.u32 16, %s23
      %v323 = vld [vmem:[%s299] sm:$0xf]
      %v324 = vld [vmem:[%s299 + $0x4] sm:$0xf]
      %v325 = vld [vmem:[%s299 + $0x8] sm:$0xf]
      %v326 = vld [vmem:[%s299 + $0xc] sm:$0xf]
      %v327 = vld [vmem:[%s299 + $0x10] sm:$0xf]
      %v328 = vld [vmem:[%s299 + $0x14] sm:$0xf]
      %v329 = vld [vmem:[%s299 + $0x18] sm:$0xf]
      %v330 = vld [vmem:[%s299 + $0x1c] sm:$0xf]
      %v331 = vld [vmem:[%s299 + $0x20] sm:$0xf]
      %v332 = vld [vmem:[%s299 + $0x24] sm:$0xf]
      %v333 = vld [vmem:[%s299 + $0x28] sm:$0xf]
      %v334 = vld [vmem:[%s299 + $0x2c] sm:$0xf]
      %v335 = vld [vmem:[%s299 + $0x30] sm:$0xf]
      %v336 = vld [vmem:[%s299 + $0x34] sm:$0xf]
      %v337 = vld [vmem:[%s299 + $0x38] sm:$0xf]
      %v338 = vld [vmem:[%s299 + $0x3c] sm:$0xf]
      %v339 = vld [vmem:[%s1] sm:$0xf]
      %v340 = vld [vmem:[%s1 + $0x4] sm:$0xf]
      %v341 = vld [vmem:[%s2] sm:$0x1]
      %v343 = vlaneseq
      %v344 = vshrl.u32 %v343, 7
      %v345 = vsub.s32 0, %v344
      %v346 = vrot.slane %v341, %v345
      %v364 = vunpack.c.l.b16 %v323
      %v365 = vunpack.c.l.b16 %v324
      %v366 = vunpack.c.l.b16 %v325
      %v367 = vunpack.c.l.b16 %v326
      %v368 = vunpack.c.l.b16 %v327
      %v369 = vunpack.c.l.b16 %v328
      %v370 = vunpack.c.l.b16 %v329
      %v371 = vunpack.c.l.b16 %v330
      %v372 = vunpack.c.l.b16 %v331
      %v373 = vunpack.c.l.b16 %v332
      %v374 = vunpack.c.l.b16 %v333
      %v375 = vunpack.c.l.b16 %v334
      %v376 = vunpack.c.l.b16 %v335
      %v377 = vunpack.c.l.b16 %v336
      %v378 = vunpack.c.l.b16 %v337
      %v379 = vunpack.c.l.b16 %v338
      %v380 = vpack.c.b16 %v365, %v364
      %v381 = vpack.c.b16 %v367, %v366
      %v382 = vpack.c.b16 %v369, %v368
      %v383 = vpack.c.b16 %v371, %v370
      %v384 = vpack.c.b16 %v373, %v372
      %v385 = vpack.c.b16 %v375, %v374
      %v386 = vpack.c.b16 %v377, %v376
      %v387 = vpack.c.b16 %v379, %v378
      %v390 = vunpack.c.l.b16 %v339
      %v391 = vunpack.c.l.b16 %v340
      %v392 = vpack.c.b16 %v391, %v390
      %vm394 = vcmask 130048
      %v396 = vsel %vm394, %v380, 0
      %v399 = vsel %vm394, %v381, 0
      %v402 = vsel %vm394, %v382, 0
      %v405 = vsel %vm394, %v383, 0
      %v408 = vsel %vm394, %v384, 0
      %v411 = vsel %vm394, %v385, 0
      %v414 = vsel %vm394, %v386, 0
      %v417 = vsel %vm394, %v387, 0
      %419 = vmatprep.subr.bf16.mxu0 0
      %420 = vmatpush1.bf16.msra.mxu0 %v392
      %421 = vmatprep.subr.bf16.mxu0 0
      %422 = vmatpush1.bf16.msra.mxu0 0
      %423 = vmatprep.subr.bf16.mxu0 0
      %424 = vmatpush1.bf16.msra.mxu0 0
      %425 = vmatprep.subr.bf16.mxu0 0
      %426 = vmatpush1.bf16.msra.mxu0 0
      %427 = vmatprep.subr.bf16.mxu0 0
      %428 = vmatpush1.bf16.msra.mxu0 0
      %429 = vmatprep.subr.bf16.mxu0 0
      %430 = vmatpush1.bf16.msra.mxu0 0
      %431 = vmatprep.subr.bf16.mxu0 0
      %432 = vmatpush1.bf16.msra.mxu0 0
      %433 = vmatprep.subr.bf16.mxu0 0
      %434 = vmatpush1.bf16.msra.mxu0 0
      %435 = vmatprep.subr.bf16.mxu0 0
      %436 = vmatpush1.bf16.msra.mxu0 0
      %437 = vmatprep.subr.bf16.mxu0 0
      %438 = vmatpush1.bf16.msra.mxu0 0
      %439 = vmatprep.subr.bf16.mxu0 0
      %440 = vmatpush1.bf16.msra.mxu0 0
      %441 = vmatprep.subr.bf16.mxu0 0
      %442 = vmatpush1.bf16.msra.mxu0 0
      %443 = vmatprep.subr.bf16.mxu0 0
      %444 = vmatpush1.bf16.msra.mxu0 0
      %445 = vmatprep.subr.bf16.mxu0 0
      %446 = vmatpush1.bf16.msra.mxu0 0
      %447 = vmatprep.subr.bf16.mxu0 0
      %448 = vmatpush1.bf16.msra.mxu0 0
      %449 = vmatprep.subr.bf16.mxu0 0
      %450 = vmatpush1.bf16.msra.mxu0 0
      %451 = vmatprep.mubr.bf16.mxu0 0
      %452 = vmatmul.mubr.bf16.gmra.mrb[0].mxu0 %v396
      %v453 = vpop.f32.mrb[0].mxu0
      %v454 = vadd.f32 %v346, %v453
      %v455 = vpop.f32.mrb[0].mxu0
      %v456 = vpop.f32.mrb[0].mxu0
      %v457 = vadd.f32 %v346, %v456
      %v458 = vpop.f32.mrb[0].mxu0
      %459 = vmatprep.mubr.bf16.mxu0 0
      %460 = vmatmul.mubr.bf16.gmra.mrb[0].mxu0 %v399
      %v461 = vpop.f32.mrb[0].mxu0
      %v462 = vadd.f32 %v346, %v461
      %v463 = vpop.f32.mrb[0].mxu0
      %v464 = vpop.f32.mrb[0].mxu0
      %v465 = vadd.f32 %v346, %v464
      %v466 = vpop.f32.mrb[0].mxu0
      %467 = vmatprep.mubr.bf16.mxu0 0
      %468 = vmatmul.mubr.bf16.gmra.mrb[0].mxu0 %v402
      %v469 = vpop.f32.mrb[0].mxu0
      %v470 = vadd.f32 %v346, %v469
      %v471 = vpop.f32.mrb[0].mxu0
      %v472 = vpop.f32.mrb[0].mxu0
      %v473 = vadd.f32 %v346, %v472
      %v474 = vpop.f32.mrb[0].mxu0
      %475 = vmatprep.mubr.bf16.mxu0 0
      %476 = vmatmul.mubr.bf16.gmra.mrb[0].mxu0 %v405
      %v477 = vpop.f32.mrb[0].mxu0
      %v478 = vadd.f32 %v346, %v477
      %v479 = vpop.f32.mrb[0].mxu0
      %v480 = vpop.f32.mrb[0].mxu0
      %v481 = vadd.f32 %v346, %v480
      %v482 = vpop.f32.mrb[0].mxu0
      %483 = vmatprep.mubr.bf16.mxu0 0
      %484 = vmatmul.mubr.bf16.gmra.mrb[0].mxu0 %v408
      %v485 = vpop.f32.mrb[0].mxu0
      %v486 = vadd.f32 %v346, %v485
      %v487 = vpop.f32.mrb[0].mxu0
      %v488 = vpop.f32.mrb[0].mxu0
      %v489 = vadd.f32 %v346, %v488
      %v490 = vpop.f32.mrb[0].mxu0
      %491 = vmatprep.mubr.bf16.mxu0 0
      %492 = vmatmul.mubr.bf16.gmra.mrb[0].mxu0 %v411
      %v493 = vpop.f32.mrb[0].mxu0
      %v494 = vadd.f32 %v346, %v493
      %v495 = vpop.f32.mrb[0].mxu0
      %v496 = vpop.f32.mrb[0].mxu0
      %v497 = vadd.f32 %v346, %v496
      %v498 = vpop.f32.mrb[0].mxu0
      %499 = vmatprep.mubr.bf16.mxu0 0
      %500 = vmatmul.mubr.bf16.gmra.mrb[0].mxu0 %v414
      %v501 = vpop.f32.mrb[0].mxu0
      %v502 = vadd.f32 %v346, %v501
      %v503 = vpop.f32.mrb[0].mxu0
      %v504 = vpop.f32.mrb[0].mxu0
      %v505 = vadd.f32 %v346, %v504
      %v506 = vpop.f32.mrb[0].mxu0
      %507 = vmatprep.mubr.bf16.mxu0 0
      %508 = vmatmul.mubr.bf16.gmra.mrb[0].mxu0 %v417
      %v509 = vpop.f32.mrb[0].mxu0
      %v510 = vadd.f32 %v346, %v509
      %v511 = vpop.f32.mrb[0].mxu0
      %v512 = vpop.f32.mrb[0].mxu0
      %v513 = vadd.f32 %v346, %v512
      %v514 = vpop.f32.mrb[0].mxu0
      %515 = vdwg.mxu0
      %v516 = vld [vmem:[%s3] sm:$0xf]
      %v517 = vld [vmem:[%s3 + $0x4] sm:$0xf]
      %v518 = vld [vmem:[%s4] sm:$0x1]
      %v520 = vlaneseq
      %v521 = vshrl.u32 %v520, 7
      %v522 = vsub.s32 0, %v521
      %v523 = vrot.slane %v518, %v522
      %v527 = vunpack.c.l.b16 %v516
      %v528 = vunpack.c.l.b16 %v517
      %v529 = vpack.c.b16 %v528, %v527
      %531 = vmatprep.subr.bf16.mxu0 0
      %532 = vmatpush1.bf16.msra.mxu0 %v529
      %533 = vmatprep.subr.bf16.mxu0 0
      %534 = vmatpush1.bf16.msra.mxu0 0
      %535 = vmatprep.subr.bf16.mxu0 0
      %536 = vmatpush1.bf16.msra.mxu0 0
      %537 = vmatprep.subr.bf16.mxu0 0
      %538 = vmatpush1.bf16.msra.mxu0 0
      %539 = vmatprep.subr.bf16.mxu0 0
      %540 = vmatpush1.bf16.msra.mxu0 0
      %541 = vmatprep.subr.bf16.mxu0 0
      %542 = vmatpush1.bf16.msra.mxu0 0
      %543 = vmatprep.subr.bf16.mxu0 0
      %544 = vmatpush1.bf16.msra.mxu0 0
      %545 = vmatprep.subr.bf16.mxu0 0
      %546 = vmatpush1.bf16.msra.mxu0 0
      %547 = vmatprep.subr.bf16.mxu0 0
      %548 = vmatpush1.bf16.msra.mxu0 0
      %549 = vmatprep.subr.bf16.mxu0 0
      %550 = vmatpush1.bf16.msra.mxu0 0
      %551 = vmatprep.subr.bf16.mxu0 0
      %552 = vmatpush1.bf16.msra.mxu0 0
      %553 = vmatprep.subr.bf16.mxu0 0
      %554 = vmatpush1.bf16.msra.mxu0 0
      %555 = vmatprep.subr.bf16.mxu0 0
      %556 = vmatpush1.bf16.msra.mxu0 0
      %557 = vmatprep.subr.bf16.mxu0 0
      %558 = vmatpush1.bf16.msra.mxu0 0
      %559 = vmatprep.subr.bf16.mxu0 0
      %560 = vmatpush1.bf16.msra.mxu0 0
      %561 = vmatprep.subr.bf16.mxu0 0
      %562 = vmatpush1.bf16.msra.mxu0 0
      %563 = vmatprep.mubr.bf16.mxu0 0
      %564 = vmatmul.mubr.bf16.gmra.mrb[0].mxu0 %v396
      %v565 = vpop.f32.mrb[0].mxu0
      %v566 = vadd.f32 %v523, %v565
      %v567 = vpop.f32.mrb[0].mxu0
      %v568 = vpop.f32.mrb[0].mxu0
      %v569 = vadd.f32 %v523, %v568
      %v570 = vpop.f32.mrb[0].mxu0
      %571 = vmatprep.mubr.bf16.mxu0 0
      %572 = vmatmul.mubr.bf16.gmra.mrb[0].mxu0 %v399
      %v573 = vpop.f32.mrb[0].mxu0
      %v574 = vadd.f32 %v523, %v573
      %v575 = vpop.f32.mrb[0].mxu0
      %v576 = vpop.f32.mrb[0].mxu0
      %v577 = vadd.f32 %v523, %v576
      %v578 = vpop.f32.mrb[0].mxu0
      %579 = vmatprep.mubr.bf16.mxu0 0
      %580 = vmatmul.mubr.bf16.gmra.mrb[0].mxu0 %v402
      %v581 = vpop.f32.mrb[0].mxu0
      %v582 = vadd.f32 %v523, %v581
      %v583 = vpop.f32.mrb[0].mxu0
      %v584 = vpop.f32.mrb[0].mxu0
      %v585 = vadd.f32 %v523, %v584
      %v586 = vpop.f32.mrb[0].mxu0
      %587 = vmatprep.mubr.bf16.mxu0 0
      %588 = vmatmul.mubr.bf16.gmra.mrb[0].mxu0 %v405
      %v589 = vpop.f32.mrb[0].mxu0
      %v590 = vadd.f32 %v523, %v589
      %v591 = vpop.f32.mrb[0].mxu0
      %v592 = vpop.f32.mrb[0].mxu0
      %v593 = vadd.f32 %v523, %v592
      %v594 = vpop.f32.mrb[0].mxu0
      %595 = vmatprep.mubr.bf16.mxu0 0
      %596 = vmatmul.mubr.bf16.gmra.mrb[0].mxu0 %v408
      %v597 = vpop.f32.mrb[0].mxu0
      %v598 = vadd.f32 %v523, %v597
      %v599 = vpop.f32.mrb[0].mxu0
      %v600 = vpop.f32.mrb[0].mxu0
      %v601 = vadd.f32 %v523, %v600
      %v602 = vpop.f32.mrb[0].mxu0
      %603 = vmatprep.mubr.bf16.mxu0 0
      %604 = vmatmul.mubr.bf16.gmra.mrb[0].mxu0 %v411
      %v605 = vpop.f32.mrb[0].mxu0
      %v606 = vadd.f32 %v523, %v605
      %v607 = vpop.f32.mrb[0].mxu0
      %v608 = vpop.f32.mrb[0].mxu0
      %v609 = vadd.f32 %v523, %v608
      %v610 = vpop.f32.mrb[0].mxu0
      %611 = vmatprep.mubr.bf16.mxu0 0
      %612 = vmatmul.mubr.bf16.gmra.mrb[0].mxu0 %v414
      %v613 = vpop.f32.mrb[0].mxu0
      %v614 = vadd.f32 %v523, %v613
      %v615 = vpop.f32.mrb[0].mxu0
      %v616 = vpop.f32.mrb[0].mxu0
      %v617 = vadd.f32 %v523, %v616
      %v618 = vpop.f32.mrb[0].mxu0
      %619 = vmatprep.mubr.bf16.mxu0 0
      %620 = vmatmul.mubr.bf16.gmra.mrb[0].mxu0 %v417
      %v621 = vpop.f32.mrb[0].mxu0
      %v622 = vadd.f32 %v523, %v621
      %v623 = vpop.f32.mrb[0].mxu0
      %v624 = vpop.f32.mrb[0].mxu0
      %v625 = vadd.f32 %v523, %v624
      %v626 = vpop.f32.mrb[0].mxu0
      %627 = vdwg.mxu0
      %v628 = vpack.c.bf16 %v457, %v454
      %v629 = vpack.c.bf16 %v465, %v462
      %v630 = vpack.c.bf16 %v473, %v470
      %v631 = vpack.c.bf16 %v481, %v478
      %v632 = vpack.c.bf16 %v489, %v486
      %v633 = vpack.c.bf16 %v497, %v494
      %v634 = vpack.c.bf16 %v505, %v502
      %v635 = vpack.c.bf16 %v513, %v510
      %v644 = vunpack.c.l.b16 %v628
      %v645 = vunpack.c.h.b16 %v628
      %v646 = vunpack.c.l.b16 %v629
      %v647 = vunpack.c.h.b16 %v629
      %v648 = vunpack.c.l.b16 %v630
      %v649 = vunpack.c.h.b16 %v630
      %v650 = vunpack.c.l.b16 %v631
      %v651 = vunpack.c.h.b16 %v631
      %v652 = vunpack.c.l.b16 %v632
      %v653 = vunpack.c.h.b16 %v632
      %v654 = vunpack.c.l.b16 %v633
      %v655 = vunpack.c.h.b16 %v633
      %v656 = vunpack.c.l.b16 %v634
      %v657 = vunpack.c.h.b16 %v634
      %v658 = vunpack.c.l.b16 %v635
      %v659 = vunpack.c.h.b16 %v635
      %v660 = vpack.c.b16 %v644, %v644
      %v661 = vpack.c.b16 %v645, %v645
      %v662 = vpack.c.b16 %v646, %v646
      %v663 = vpack.c.b16 %v647, %v647
      %v664 = vpack.c.b16 %v648, %v648
      %v665 = vpack.c.b16 %v649, %v649
      %v666 = vpack.c.b16 %v650, %v650
      %v667 = vpack.c.b16 %v651, %v651
      %v668 = vpack.c.b16 %v652, %v652
      %v669 = vpack.c.b16 %v653, %v653
      %v670 = vpack.c.b16 %v654, %v654
      %v671 = vpack.c.b16 %v655, %v655
      %v672 = vpack.c.b16 %v656, %v656
      %v673 = vpack.c.b16 %v657, %v657
      %v674 = vpack.c.b16 %v658, %v658
      %v675 = vpack.c.b16 %v659, %v659
      %vm692 = vcmask 60416
      %693 = vst.msk [vmem:[%s310] sm:$0xf] %vm692, %v660
      %694 = vst.msk [vmem:[%s310 + $0x4] sm:$0xf] %vm692, %v661
      %695 = vst.msk [vmem:[%s310 + $0x8] sm:$0xf] %vm692, %v662
      %696 = vst.msk [vmem:[%s310 + $0xc] sm:$0xf] %vm692, %v663
      %697 = vst.msk [vmem:[%s310 + $0x10] sm:$0xf] %vm692, %v664
      %698 = vst.msk [vmem:[%s310 + $0x14] sm:$0xf] %vm692, %v665
      %699 = vst.msk [vmem:[%s310 + $0x18] sm:$0xf] %vm692, %v666
      %700 = vst.msk [vmem:[%s310 + $0x1c] sm:$0xf] %vm692, %v667
      %701 = vst.msk [vmem:[%s310 + $0x20] sm:$0xf] %vm692, %v668
      %702 = vst.msk [vmem:[%s310 + $0x24] sm:$0xf] %vm692, %v669
      %703 = vst.msk [vmem:[%s310 + $0x28] sm:$0xf] %vm692, %v670
      %704 = vst.msk [vmem:[%s310 + $0x2c] sm:$0xf] %vm692, %v671
      %705 = vst.msk [vmem:[%s310 + $0x30] sm:$0xf] %vm692, %v672
      %706 = vst.msk [vmem:[%s310 + $0x34] sm:$0xf] %vm692, %v673
      %707 = vst.msk [vmem:[%s310 + $0x38] sm:$0xf] %vm692, %v674
      %708 = vst.msk [vmem:[%s310 + $0x3c] sm:$0xf] %vm692, %v675
      %v709 = vpack.c.bf16 %v569, %v566
      %v710 = vpack.c.bf16 %v577, %v574
      %v711 = vpack.c.bf16 %v585, %v582
      %v712 = vpack.c.bf16 %v593, %v590
      %v713 = vpack.c.bf16 %v601, %v598
      %v714 = vpack.c.bf16 %v609, %v606
      %v715 = vpack.c.bf16 %v617, %v614
      %v716 = vpack.c.bf16 %v625, %v622
      %v725 = vunpack.c.l.b16 %v709
      %v726 = vunpack.c.h.b16 %v709
      %v727 = vunpack.c.l.b16 %v710
      %v728 = vunpack.c.h.b16 %v710
      %v729 = vunpack.c.l.b16 %v711
      %v730 = vunpack.c.h.b16 %v711
      %v731 = vunpack.c.l.b16 %v712
      %v732 = vunpack.c.h.b16 %v712
      %v733 = vunpack.c.l.b16 %v713
      %v734 = vunpack.c.h.b16 %v713
      %v735 = vunpack.c.l.b16 %v714
      %v736 = vunpack.c.h.b16 %v714
      %v737 = vunpack.c.l.b16 %v715
      %v738 = vunpack.c.h.b16 %v715
      %v739 = vunpack.c.l.b16 %v716
      %v740 = vunpack.c.h.b16 %v716
      %v741 = vpack.c.b16 %v725, %v725
      %v742 = vpack.c.b16 %v726, %v726
      %v743 = vpack.c.b16 %v727, %v727
      %v744 = vpack.c.b16 %v728, %v728
      %v745 = vpack.c.b16 %v729, %v729
      %v746 = vpack.c.b16 %v730, %v730
      %v747 = vpack.c.b16 %v731, %v731
      %v748 = vpack.c.b16 %v732, %v732
      %v749 = vpack.c.b16 %v733, %v733
      %v750 = vpack.c.b16 %v734, %v734
      %v751 = vpack.c.b16 %v735, %v735
      %v752 = vpack.c.b16 %v736, %v736
      %v753 = vpack.c.b16 %v737, %v737
      %v754 = vpack.c.b16 %v738, %v738
      %v755 = vpack.c.b16 %v739, %v739
      %v756 = vpack.c.b16 %v740, %v740
      %773 = vst.msk [vmem:[%s320] sm:$0xf] %vm692, %v741
      %774 = vst.msk [vmem:[%s320 + $0x4] sm:$0xf] %vm692, %v742
      %775 = vst.msk [vmem:[%s320 + $0x8] sm:$0xf] %vm692, %v743
      %776 = vst.msk [vmem:[%s320 + $0xc] sm:$0xf] %vm692, %v744
      %777 = vst.msk [vmem:[%s320 + $0x10] sm:$0xf] %vm692, %v745
      %778 = vst.msk [vmem:[%s320 + $0x14] sm:$0xf] %vm692, %v746
      %779 = vst.msk [vmem:[%s320 + $0x18] sm:$0xf] %vm692, %v747
      %780 = vst.msk [vmem:[%s320 + $0x1c] sm:$0xf] %vm692, %v748
      %781 = vst.msk [vmem:[%s320 + $0x20] sm:$0xf] %vm692, %v749
      %782 = vst.msk [vmem:[%s320 + $0x24] sm:$0xf] %vm692, %v750
      %783 = vst.msk [vmem:[%s320 + $0x28] sm:$0xf] %vm692, %v751
      %784 = vst.msk [vmem:[%s320 + $0x2c] sm:$0xf] %vm692, %v752
      %785 = vst.msk [vmem:[%s320 + $0x30] sm:$0xf] %vm692, %v753
      %786 = vst.msk [vmem:[%s320 + $0x34] sm:$0xf] %vm692, %v754
      %787 = vst.msk [vmem:[%s320 + $0x38] sm:$0xf] %vm692, %v755
      %788 = vst.msk [vmem:[%s320 + $0x3c] sm:$0xf] %vm692, %v756
      %s789 = smul.u32 16, %s23
      %p790 = scmp.lt.s32.totalorder %s22, 1
      %s791 = scalar_select %p790, %s22, 1
      %p792 = scmp.lt.s32.totalorder %s789, 79
      %s793 = scalar_select %p792, %s789, 79
      %s794 = smul.addr %s791, 80
      %s795 = sadd.s32 %s793, %s794
      %s796 = smul.addr %s795, 4
      %s797 = scalar_lea.vmem %s5, %s796
      %s798 = smul.u32 16, %s23
      %p799 = scmp.lt.s32.totalorder %s22, 1
      %s800 = scalar_select %p799, %s22, 1
      %p801 = scmp.lt.s32.totalorder %s798, 79
      %s802 = scalar_select %p801, %s798, 79
      %s803 = smul.addr %s800, 80
      %s804 = sadd.s32 %s802, %s803
      %s805 = smul.addr %s804, 4
      %s806 = scalar_lea.vmem %s6, %s805
      // Predicated region
      $region41: #{nonlocal_psp_correlation.4} parent=39 // pred_check
        %p807 = pneg %p164
      $region42: #{nonlocal_psp_correlation.4} parent=39 // pred_check_branch
        %809 = sbr.rel (%p807) target = $region44
      $region43: #{nonlocal_psp_correlation.4} parent=39 // pred_region
        %s810 = smul.u32 16, %s23
      $region44: #{nonlocal_psp_correlation.4} parent=39 // pred_fallthru
        _
      // Predicated region
      $region45: #{nonlocal_psp_correlation.4} parent=39 // pred_check
        %p811 = pneg %p192
      $region46: #{nonlocal_psp_correlation.4} parent=39 // pred_check_branch
        %813 = sbr.rel (%p811) target = $region48
      $region47: #{nonlocal_psp_correlation.4} parent=39 // pred_region
        %s814 = smul.u32 16, %s23
      $region48: #{nonlocal_psp_correlation.4} parent=39 // pred_fallthru
        _
    $region40: #{nonlocal_psp_correlation.4} parent=5 // pred_fallthru
      _
    %p815 = scmp.le.s32.totalorder 2, %s13
    // Predicated region
    $region49: #{nonlocal_psp_correlation.4} parent=5 // pred_check
      %p816 = pneg %p815
    $region50: #{nonlocal_psp_correlation.4} parent=5 // pred_check_branch
      %818 = sbr.rel (%p816) target = $region52
    $region51: #{nonlocal_psp_correlation.4} parent=5 // pred_region
      %s819 = ssub.s32 %s13, 2
      // Predicated region
      $region53: #{nonlocal_psp_correlation.4} parent=51 // pred_check
        %p820 = pneg %p170
      $region54: #{nonlocal_psp_correlation.4} parent=51 // pred_check_branch
        %822 = sbr.rel (%p820) target = $region56
      $region55: #{nonlocal_psp_correlation.4} parent=51 // pred_region
        %s823 = smul.u32 16, %s25
        %p824 = scmp.lt.s32.totalorder %s24, 1
        %s825 = scalar_select %p824, %s24, 1
        %p826 = scmp.lt.s32.totalorder %s823, 79
        %s827 = scalar_select %p826, %s823, 79
        %s828 = smul.addr %s825, 80
        %s829 = sadd.s32 %s827, %s828
        %s830 = smul.addr %s829, 4
        %s831 = scalar_lea.vmem %s5, %s830
      $region56: #{nonlocal_psp_correlation.4} parent=51 // pred_fallthru
        _
      // Predicated region
      $region57: #{nonlocal_psp_correlation.4} parent=51 // pred_check
        %p832 = pneg %p198
      $region58: #{nonlocal_psp_correlation.4} parent=51 // pred_check_branch
        %834 = sbr.rel (%p832) target = $region60
      $region59: #{nonlocal_psp_correlation.4} parent=51 // pred_region
        %s835 = smul.u32 16, %s25
        %p836 = scmp.lt.s32.totalorder %s24, 1
        %s837 = scalar_select %p836, %s24, 1
        %p838 = scmp.lt.s32.totalorder %s835, 79
        %s839 = scalar_select %p838, %s835, 79
        %s840 = smul.addr %s837, 80
        %s841 = sadd.s32 %s839, %s840
        %s842 = smul.addr %s841, 4
        %s843 = scalar_lea.vmem %s6, %s842
      $region60: #{nonlocal_psp_correlation.4} parent=51 // pred_fallthru
        _
    $region52: #{nonlocal_psp_correlation.4} parent=5 // pred_fallthru
      _
  $region6: #{nonlocal_psp_correlation.4} parent=0 // loop_footer
    %s17 = sadd.s32 1, %s13
  $region7: #{nonlocal_psp_correlation.4} parent=0 // loop_footer_branch
    %12 = sbr.rel target = $region3
  $region8: #{nonlocal_psp_correlation.4} parent=0 // loop_exit
    _

// kernel: nonlocal_psp_correlation.5
$region0: #{nonlocal_psp_correlation.5}
  #allocation0 [shape = 'u32[]', space=smem, size = 0x4, offset = 0x4, fixed_abs, tag = 'smem constant byte address 0x4 - core index']
  #allocation1 [shape = 'u32[144,128]{1,0:T(1,128)}', space=vmem, size = 0x12000, scoped, tag = 'internal scratch']
  #allocation2 [shape = 'bf16[128,8]{1,0:T(16,128)(2,1)}', space=vmem, size = 0x8000, scoped, tag = 'scratch operand']
  #allocation3 [shape = 'f32[128,1]{1,0:T(8,128)}', space=vmem, size = 0x10000, scoped, tag = 'scratch operand']
  #allocation4 [shape = 'f32[128,1]{1,0:T(8,128)}', space=vmem, size = 0x10000, scoped, tag = 'scratch operand']
  #allocation5 [shape = 'f32[128,8]{1,0:T(8,128)}', space=vmem, size = 0x10000, scoped, tag = 'scratch operand']
  %s0 = inlined_call_operand.vmem [shape: bf16[4,640,16], index: 0, kind: input, shape index: {}]
  %s1 = inlined_call_operand.vmem [shape: bf16[2,640,8], index: 1, kind: input, shape index: {}]
  %s2 = inlined_call_operand.vmem [shape: bf16[2,640,8], index: 2, kind: input, shape index: {}]
  %s3 = inlined_call_operand.vmem [shape: bf16[16,8], index: 3, kind: input, shape index: {}]
  %s4 = inlined_call_operand.vmem [shape: f32[1,8], index: 4, kind: input, shape index: {}]
  %s5 = inlined_call_operand.vmem [shape: bf16[8,8], index: 5, kind: input, shape index: {}]
  %s6 = inlined_call_operand.vmem [shape: bf16[16,8], index: 6, kind: input, shape index: {}]
  %s7 = inlined_call_operand.vmem [shape: f32[1,8], index: 7, kind: input, shape index: {}]
  %s8 = inlined_call_operand.vmem [shape: f32[2,640,8], index: 8, kind: output, shape index: {}]
  %s9 = sld [smem:[#allocation0]]
  $region73: #{nonlocal_psp_correlation.5} parent=0
    _
  %s11 = ssub.s32 1, %s9
  %s12 = scalar_select 0, %s11, %s9
  loop: start=0, step=1, limit=52
  $region2: #{nonlocal_psp_correlation.5} parent=0 // loop_pre_header
    _
  $region3: #{nonlocal_psp_correlation.5} parent=0 // loop_header
    %s14 = sphi 0, %s18
    %p15 = scmp.ge.s32.totalorder %s14, 52
    %s21 = sphi 0, %s40
    %s22 = sphi 0, %s36
    %s23 = sphi 0, %s32
    %s24 = sphi 0, %s21
    %s25 = sphi 0, %s22
    %s26 = sphi 0, %s23
    %s27 = sphi 0, %s24
    %s28 = sphi 0, %s25
    %s29 = sphi 0, %s26
    %s45 = sphi 0, %s47
    %s48 = sphi 0, %s45
    %s49 = sphi 0, %s48
    %s65 = sphi 0, %s49
    %s73 = sphi 0, %s75
    %s76 = sphi 0, %s73
    %s77 = sphi 0, %s76
    %s93 = sphi 0, %s77
    %s101 = sphi 0, %s103
    %s104 = sphi 0, %s101
    %s105 = sphi 0, %s104
    %s121 = sphi 0, %s105
    %s125 = sphi 0, %s125
    %s127 = sphi 0, %s125
    %s128 = sphi 0, %s127
    %s142 = sphi 0, %s128
    %s146 = sphi 0, %s146
    %s148 = sphi 0, %s146
    %s149 = sphi 0, %s148
    %s163 = sphi 0, %s149
    %s167 = sphi 0, %s167
    %s169 = sphi 0, %s167
    %s170 = sphi 0, %s169
    %s184 = sphi 0, %s170
    %s188 = sphi 0, %s188
    %s190 = sphi 0, %s188
    %s191 = sphi 0, %s190
    %s205 = sphi 0, %s191
    %s209 = sphi 0, %s209
    %s211 = sphi 0, %s209
    %s212 = sphi 0, %s211
    %s226 = sphi 0, %s212
    %s234 = sphi 0, %s236
    %s237 = sphi 0, %s234
    %s238 = sphi 0, %s237
    %s254 = sphi 0, %s238
  $region4: #{nonlocal_psp_correlation.5} parent=0 // loop_header_branch
    %17 = sbr.rel (%p15) target = $region8
  $region5: #{nonlocal_psp_correlation.5} parent=0 // loop_body
    %s19 = ssub.s32 %s14, 1
    %s20 = ssub.s32 %s14, 2
    %s30 = sadd.s32 1, %s23
    %p31 = scmp.ge.s32.totalorder %s30, 5
    %s32 = scalar_select %p31, 0, %s30
    %s33 = sadd.s32 1, %s22
    %s34 = scalar_select %p31, %s33, %s22
    %p35 = scmp.ge.s32.totalorder %s34, 5
    %s36 = scalar_select %p35, 0, %s34
    %s37 = sadd.s32 1, %s21
    %s38 = scalar_select %p35, %s37, %s21
    %p39 = scmp.ge.s32.totalorder %s38, 2
    %s40 = scalar_select %p39, 0, %s38
    %s41 = ssub.s32 %s21, %s40
    %s42 = ssub.s32 %s22, %s36
    %s43 = sor.u32 %s41, %s42
    %p44 = scmp.eq.s32.totalorder %s43, 0
    %s46 = sadd.s32 %s45, 1
    %s47 = scalar_select %p44, %s45, %s46
    %p50 = pneg %p44
    %p51 = scmp.eq.s32.totalorder %s14, 49
    %p52 = por %p50, %p51
    %p53 = scmp.ne.s32.totalorder %s45, %s48
    %p54 = scmp.eq.s32.totalorder %s14, 0
    %p55 = por %p53, %p54
    %p56 = scmp.ne.s32.totalorder %s45, %s48
    %p57 = scmp.eq.s32.totalorder %s19, 49
    %p58 = por %p56, %p57
    %p59 = scmp.ne.s32.totalorder %s48, %s49
    %p60 = scmp.eq.s32.totalorder %s19, 0
    %p61 = por %p59, %p60
    %p62 = scmp.ne.s32.totalorder %s48, %s49
    %p63 = scmp.eq.s32.totalorder %s20, 49
    %p64 = por %p62, %p63
    %p66 = scmp.ne.s32.totalorder %s49, %s65
    %p67 = scmp.eq.s32.totalorder %s20, 0
    %p68 = por %p66, %p67
    %s69 = ssub.s32 %s21, %s40
    %s70 = ssub.s32 %s23, %s32
    %s71 = sor.u32 %s69, %s70
    %p72 = scmp.eq.s32.totalorder %s71, 0
    %s74 = sadd.s32 %s73, 1
    %s75 = scalar_select %p72, %s73, %s74
    %p78 = pneg %p72
    %p79 = scmp.eq.s32.totalorder %s14, 49
    %p80 = por %p78, %p79
    %p81 = scmp.ne.s32.totalorder %s73, %s76
    %p82 = scmp.eq.s32.totalorder %s14, 0
    %p83 = por %p81, %p82
    %p84 = scmp.ne.s32.totalorder %s73, %s76
    %p85 = scmp.eq.s32.totalorder %s19, 49
    %p86 = por %p84, %p85
    %p87 = scmp.ne.s32.totalorder %s76, %s77
    %p88 = scmp.eq.s32.totalorder %s19, 0
    %p89 = por %p87, %p88
    %p90 = scmp.ne.s32.totalorder %s76, %s77
    %p91 = scmp.eq.s32.totalorder %s20, 49
    %p92 = por %p90, %p91
    %p94 = scmp.ne.s32.totalorder %s77, %s93
    %p95 = scmp.eq.s32.totalorder %s20, 0
    %p96 = por %p94, %p95
    %s97 = ssub.s32 %s21, %s40
    %s98 = ssub.s32 %s23, %s32
    %s99 = sor.u32 %s97, %s98
    %p100 = scmp.eq.s32.totalorder %s99, 0
    %s102 = sadd.s32 %s101, 1
    %s103 = scalar_select %p100, %s101, %s102
    %p106 = pneg %p100
    %p107 = scmp.eq.s32.totalorder %s14, 49
    %p108 = por %p106, %p107
    %p109 = scmp.ne.s32.totalorder %s101, %s104
    %p110 = scmp.eq.s32.totalorder %s14, 0
    %p111 = por %p109, %p110
    %p112 = scmp.ne.s32.totalorder %s101, %s104
    %p113 = scmp.eq.s32.totalorder %s19, 49
    %p114 = por %p112, %p113
    %p115 = scmp.ne.s32.totalorder %s104, %s105
    %p116 = scmp.eq.s32.totalorder %s19, 0
    %p117 = por %p115, %p116
    %p118 = scmp.ne.s32.totalorder %s104, %s105
    %p119 = scmp.eq.s32.totalorder %s20, 49
    %p120 = por %p118, %p119
    %p122 = scmp.ne.s32.totalorder %s105, %s121
    %p123 = scmp.eq.s32.totalorder %s20, 0
    %p124 = por %p122, %p123
    %s126 = sadd.s32 %s125, 1
    %p129 = scmp.eq.s32.totalorder %s14, 49
    %p130 = scmp.ne.s32.totalorder %s125, %s127
    %p131 = scmp.eq.s32.totalorder %s14, 0
    %p132 = por %p130, %p131
    %p133 = scmp.ne.s32.totalorder %s125, %s127
    %p134 = scmp.eq.s32.totalorder %s19, 49
    %p135 = por %p133, %p134
    %p136 = scmp.ne.s32.totalorder %s127, %s128
    %p137 = scmp.eq.s32.totalorder %s19, 0
    %p138 = por %p136, %p137
    %p139 = scmp.ne.s32.totalorder %s127, %s128
    %p140 = scmp.eq.s32.totalorder %s20, 49
    %p141 = por %p139, %p140
    %p143 = scmp.ne.s32.totalorder %s128, %s142
    %p144 = scmp.eq.s32.totalorder %s20, 0
    %p145 = por %p143, %p144
    %s147 = sadd.s32 %s146, 1
    %p150 = scmp.eq.s32.totalorder %s14, 49
    %p151 = scmp.ne.s32.totalorder %s146, %s148
    %p152 = scmp.eq.s32.totalorder %s14, 0
    %p153 = por %p151, %p152
    %p154 = scmp.ne.s32.totalorder %s146, %s148
    %p155 = scmp.eq.s32.totalorder %s19, 49
    %p156 = por %p154, %p155
    %p157 = scmp.ne.s32.totalorder %s148, %s149
    %p158 = scmp.eq.s32.totalorder %s19, 0
    %p159 = por %p157, %p158
    %p160 = scmp.ne.s32.totalorder %s148, %s149
    %p161 = scmp.eq.s32.totalorder %s20, 49
    %p162 = por %p160, %p161
    %p164 = scmp.ne.s32.totalorder %s149, %s163
    %p165 = scmp.eq.s32.totalorder %s20, 0
    %p166 = por %p164, %p165
    %s168 = sadd.s32 %s167, 1
    %p171 = scmp.eq.s32.totalorder %s14, 49
    %p172 = scmp.ne.s32.totalorder %s167, %s169
    %p173 = scmp.eq.s32.totalorder %s14, 0
    %p174 = por %p172, %p173
    %p175 = scmp.ne.s32.totalorder %s167, %s169
    %p176 = scmp.eq.s32.totalorder %s19, 49
    %p177 = por %p175, %p176
    %p178 = scmp.ne.s32.totalorder %s169, %s170
    %p179 = scmp.eq.s32.totalorder %s19, 0
    %p180 = por %p178, %p179
    %p181 = scmp.ne.s32.totalorder %s169, %s170
    %p182 = scmp.eq.s32.totalorder %s20, 49
    %p183 = por %p181, %p182
    %p185 = scmp.ne.s32.totalorder %s170, %s184
    %p186 = scmp.eq.s32.totalorder %s20, 0
    %p187 = por %p185, %p186
    %s189 = sadd.s32 %s188, 1
    %p192 = scmp.eq.s32.totalorder %s14, 49
    %p193 = scmp.ne.s32.totalorder %s188, %s190
    %p194 = scmp.eq.s32.totalorder %s14, 0
    %p195 = por %p193, %p194
    %p196 = scmp.ne.s32.totalorder %s188, %s190
    %p197 = scmp.eq.s32.totalorder %s19, 49
    %p198 = por %p196, %p197
    %p199 = scmp.ne.s32.totalorder %s190, %s191
    %p200 = scmp.eq.s32.totalorder %s19, 0
    %p201 = por %p199, %p200
    %p202 = scmp.ne.s32.totalorder %s190, %s191
    %p203 = scmp.eq.s32.totalorder %s20, 49
    %p204 = por %p202, %p203
    %p206 = scmp.ne.s32.totalorder %s191, %s205
    %p207 = scmp.eq.s32.totalorder %s20, 0
    %p208 = por %p206, %p207
    %s210 = sadd.s32 %s209, 1
    %p213 = scmp.eq.s32.totalorder %s14, 49
    %p214 = scmp.ne.s32.totalorder %s209, %s211
    %p215 = scmp.eq.s32.totalorder %s14, 0
    %p216 = por %p214, %p215
    %p217 = scmp.ne.s32.totalorder %s209, %s211
    %p218 = scmp.eq.s32.totalorder %s19, 49
    %p219 = por %p217, %p218
    %p220 = scmp.ne.s32.totalorder %s211, %s212
    %p221 = scmp.eq.s32.totalorder %s19, 0
    %p222 = por %p220, %p221
    %p223 = scmp.ne.s32.totalorder %s211, %s212
    %p224 = scmp.eq.s32.totalorder %s20, 49
    %p225 = por %p223, %p224
    %p227 = scmp.ne.s32.totalorder %s212, %s226
    %p228 = scmp.eq.s32.totalorder %s20, 0
    %p229 = por %p227, %p228
    %s230 = ssub.s32 %s21, %s40
    %s231 = ssub.s32 %s22, %s36
    %s232 = sor.u32 %s230, %s231
    %p233 = scmp.eq.s32.totalorder %s232, 0
    %s235 = sadd.s32 %s234, 1
    %s236 = scalar_select %p233, %s234, %s235
    %p239 = pneg %p233
    %p240 = scmp.eq.s32.totalorder %s14, 49
    %p241 = por %p239, %p240
    %p242 = scmp.ne.s32.totalorder %s234, %s237
    %p243 = scmp.eq.s32.totalorder %s14, 0
    %p244 = por %p242, %p243
    %p245 = scmp.ne.s32.totalorder %s234, %s237
    %p246 = scmp.eq.s32.totalorder %s19, 49
    %p247 = por %p245, %p246
    %p248 = scmp.ne.s32.totalorder %s237, %s238
    %p249 = scmp.eq.s32.totalorder %s19, 0
    %p250 = por %p248, %p249
    %p251 = scmp.ne.s32.totalorder %s237, %s238
    %p252 = scmp.eq.s32.totalorder %s20, 49
    %p253 = por %p251, %p252
    %p255 = scmp.ne.s32.totalorder %s238, %s254
    %p256 = scmp.eq.s32.totalorder %s20, 0
    %p257 = por %p255, %p256
    %p258 = scmp.le.s32.totalorder 1, %s14
    %p259 = scmp.lt.s32.totalorder %s14, 51
    %p260 = pnand %p258, %p259
    %p261 = pneg %p260
    // Predicated region
    $region9: #{nonlocal_psp_correlation.5} parent=5 // pred_check
      _
    $region10: #{nonlocal_psp_correlation.5} parent=5 // pred_check_branch
      %263 = sbr.rel (%p260) target = $region12
    $region11: #{nonlocal_psp_correlation.5} parent=5 // pred_region
      %s264 = ssub.s32 %s14, 1
      // Predicated region
      $region13: #{nonlocal_psp_correlation.5} parent=11 // pred_check
        %p265 = pneg %p138
      $region14: #{nonlocal_psp_correlation.5} parent=11 // pred_check_branch
        %267 = sbr.rel (%p265) target = $region16
      $region15: #{nonlocal_psp_correlation.5} parent=11 // pred_region
        _
      $region16: #{nonlocal_psp_correlation.5} parent=11 // pred_fallthru
        _
      // Predicated region
      $region17: #{nonlocal_psp_correlation.5} parent=11 // pred_check
        %p268 = pneg %p159
      $region18: #{nonlocal_psp_correlation.5} parent=11 // pred_check_branch
        %270 = sbr.rel (%p268) target = $region20
      $region19: #{nonlocal_psp_correlation.5} parent=11 // pred_region
        _
      $region20: #{nonlocal_psp_correlation.5} parent=11 // pred_fallthru
        _
      // Predicated region
      $region21: #{nonlocal_psp_correlation.5} parent=11 // pred_check
        %p271 = pneg %p180
      $region22: #{nonlocal_psp_correlation.5} parent=11 // pred_check_branch
        %273 = sbr.rel (%p271) target = $region24
      $region23: #{nonlocal_psp_correlation.5} parent=11 // pred_region
        _
      $region24: #{nonlocal_psp_correlation.5} parent=11 // pred_fallthru
        _
      // Predicated region
      $region25: #{nonlocal_psp_correlation.5} parent=11 // pred_check
        %p274 = pneg %p201
      $region26: #{nonlocal_psp_correlation.5} parent=11 // pred_check_branch
        %276 = sbr.rel (%p274) target = $region28
      $region27: #{nonlocal_psp_correlation.5} parent=11 // pred_region
        _
      $region28: #{nonlocal_psp_correlation.5} parent=11 // pred_fallthru
        _
      // Predicated region
      $region29: #{nonlocal_psp_correlation.5} parent=11 // pred_check
        %p277 = pneg %p222
      $region30: #{nonlocal_psp_correlation.5} parent=11 // pred_check_branch
        %279 = sbr.rel (%p277) target = $region32
      $region31: #{nonlocal_psp_correlation.5} parent=11 // pred_region
        _
      $region32: #{nonlocal_psp_correlation.5} parent=11 // pred_fallthru
        _
    $region12: #{nonlocal_psp_correlation.5} parent=5 // pred_fallthru
      _
    %p280 = scmp.lt.s32.totalorder %s14, 50
    // Predicated region
    $region33: #{nonlocal_psp_correlation.5} parent=5 // pred_check
      %p281 = pneg %p280
    $region34: #{nonlocal_psp_correlation.5} parent=5 // pred_check_branch
      %283 = sbr.rel (%p281) target = $region36
    $region35: #{nonlocal_psp_correlation.5} parent=5 // pred_region
      // Predicated region
      $region37: #{nonlocal_psp_correlation.5} parent=35 // pred_check
        %p284 = pneg %p55
      $region38: #{nonlocal_psp_correlation.5} parent=35 // pred_check_branch
        %286 = sbr.rel (%p284) target = $region40
      $region39: #{nonlocal_psp_correlation.5} parent=35 // pred_region
        %s287 = smul.u32 16, %s22
        %p288 = scmp.lt.s32.totalorder %s21, 3
        %s289 = scalar_select %p288, %s21, 3
        %p290 = scmp.lt.s32.totalorder %s287, 79
        %s291 = scalar_select %p290, %s287, 79
        %s292 = smul.addr %s289, 80
        %s293 = sadd.s32 %s291, %s292
        %s294 = smul.addr %s293, 4
        %s295 = scalar_lea.vmem %s0, %s294
        %s296 = smul.u32 16, %s22
      $region40: #{nonlocal_psp_correlation.5} parent=35 // pred_fallthru
        _
      // Predicated region
      $region41: #{nonlocal_psp_correlation.5} parent=35 // pred_check
        %p297 = pneg %p83
      $region42: #{nonlocal_psp_correlation.5} parent=35 // pred_check_branch
        %299 = sbr.rel (%p297) target = $region44
      $region43: #{nonlocal_psp_correlation.5} parent=35 // pred_region
        %s300 = smul.u32 16, %s23
        %p301 = scmp.lt.s32.totalorder %s21, 1
        %s302 = scalar_select %p301, %s21, 1
        %p303 = scmp.lt.s32.totalorder %s300, 79
        %s304 = scalar_select %p303, %s300, 79
        %s305 = smul.addr %s302, 80
        %s306 = sadd.s32 %s304, %s305
        %s307 = smul.addr %s306, 4
        %s308 = scalar_lea.vmem %s1, %s307
        %s309 = smul.u32 16, %s23
      $region44: #{nonlocal_psp_correlation.5} parent=35 // pred_fallthru
        _
      // Predicated region
      $region45: #{nonlocal_psp_correlation.5} parent=35 // pred_check
        %p310 = pneg %p111
      $region46: #{nonlocal_psp_correlation.5} parent=35 // pred_check_branch
        %312 = sbr.rel (%p310) target = $region48
      $region47: #{nonlocal_psp_correlation.5} parent=35 // pred_region
        %s313 = smul.u32 16, %s23
        %p314 = scmp.lt.s32.totalorder %s21, 1
        %s315 = scalar_select %p314, %s21, 1
        %p316 = scmp.lt.s32.totalorder %s313, 79
        %s317 = scalar_select %p316, %s313, 79
        %s318 = smul.addr %s315, 80
        %s319 = sadd.s32 %s317, %s318
        %s320 = smul.addr %s319, 4
        %s321 = scalar_lea.vmem %s2, %s320
        %s322 = smul.u32 16, %s23
      $region48: #{nonlocal_psp_correlation.5} parent=35 // pred_fallthru
        _
    $region36: #{nonlocal_psp_correlation.5} parent=5 // pred_fallthru
      _
    %p323 = scmp.le.s32.totalorder 1, %s14
    %p324 = scmp.lt.s32.totalorder %s14, 51
    %p325 = pnand %p323, %p324
    %p326 = pneg %p325
    // Predicated region
    $region49: #{nonlocal_psp_correlation.5} parent=5 // pred_check
      _
    $region50: #{nonlocal_psp_correlation.5} parent=5 // pred_check_branch
      %328 = sbr.rel (%p325) target = $region52
    $region51: #{nonlocal_psp_correlation.5} parent=5 // pred_region
      %s329 = ssub.s32 %s14, 1
      %s330 = smul.u32 16, %s25
      %p331 = scmp.lt.s32.totalorder %s24, 3
      %s332 = scalar_select %p331, %s24, 3
      %p333 = scmp.lt.s32.totalorder %s330, 79
      %s334 = scalar_select %p333, %s330, 79
      %s335 = smul.addr %s332, 80
      %s336 = sadd.s32 %s334, %s335
      %s337 = smul.addr %s336, 4
      %s338 = scalar_lea.vmem %s0, %s337
      %p339 = pneg %p61
      %p340 = pneg %p58
      %s341 = smul.u32 16, %s26
      %p342 = scmp.lt.s32.totalorder %s24, 1
      %s343 = scalar_select %p342, %s24, 1
      %p344 = scmp.lt.s32.totalorder %s341, 79
      %s345 = scalar_select %p344, %s341, 79
      %s346 = smul.addr %s343, 80
      %s347 = sadd.s32 %s345, %s346
      %s348 = smul.addr %s347, 4
      %s349 = scalar_lea.vmem %s1, %s348
      %p350 = pneg %p89
      %p351 = pneg %p86
      %s352 = smul.u32 16, %s26
      %p353 = scmp.lt.s32.totalorder %s24, 1
      %s354 = scalar_select %p353, %s24, 1
      %p355 = scmp.lt.s32.totalorder %s352, 79
      %s356 = scalar_select %p355, %s352, 79
      %s357 = smul.addr %s354, 80
      %s358 = sadd.s32 %s356, %s357
      %s359 = smul.addr %s358, 4
      %s360 = scalar_lea.vmem %s2, %s359
      %p361 = pneg %p117
      %p362 = pneg %p114
      %p363 = pneg %p138
      %p364 = pneg %p135
      %p365 = pneg %p159
      %p366 = pneg %p156
      %p367 = pneg %p180
      %p368 = pneg %p177
      %p369 = pneg %p201
      %p370 = pneg %p198
      %p371 = pneg %p222
      %p372 = pneg %p219
      %p373 = pneg %p250
      %p374 = pneg %p247
      %s375 = smul.u32 16, %s25
      %p376 = scmp.lt.s32.totalorder %s24, 1
      %s377 = scalar_select %p376, %s24, 1
      %p378 = scmp.lt.s32.totalorder %s375, 79
      %s379 = scalar_select %p378, %s375, 79
      %s380 = smul.addr %s377, 80
      %s381 = sadd.s32 %s379, %s380
      %s382 = smul.addr %s381, 8
      %s383 = scalar_lea.vmem %s8, %s382
      %s384 = smul.u32 16, %s25
      %p385 = scmp.lt.s32.totalorder %s24, 3
      %s386 = scalar_select %p385, %s24, 3
      %p387 = scmp.lt.s32.totalorder %s384, 79
      %s388 = scalar_select %p387, %s384, 79
      %s389 = smul.addr %s386, 80
      %s390 = sadd.s32 %s388, %s389
      %s391 = smul.addr %s390, 4
      %s392 = scalar_lea.vmem %s0, %s391
      %s393 = smul.u32 16, %s25
      %s394 = smul.u32 16, %s26
      %p395 = scmp.lt.s32.totalorder %s24, 1
      %s396 = scalar_select %p395, %s24, 1
      %p397 = scmp.lt.s32.totalorder %s394, 79
      %s398 = scalar_select %p397, %s394, 79
      %s399 = smul.addr %s396, 80
      %s400 = sadd.s32 %s398, %s399
      %s401 = smul.addr %s400, 4
      %s402 = scalar_lea.vmem %s1, %s401
      %s403 = smul.u32 16, %s26
      %s404 = smul.u32 16, %s26
      %p405 = scmp.lt.s32.totalorder %s24, 1
      %s406 = scalar_select %p405, %s24, 1
      %p407 = scmp.lt.s32.totalorder %s404, 79
      %s408 = scalar_select %p407, %s404, 79
      %s409 = smul.addr %s406, 80
      %s410 = sadd.s32 %s408, %s409
      %s411 = smul.addr %s410, 4
      %s412 = scalar_lea.vmem %s2, %s411
      %s413 = smul.u32 16, %s26
      %s414 = smul.u32 16, %s25
      %p415 = scmp.lt.s32.totalorder %s24, 1
      %s416 = scalar_select %p415, %s24, 1
      %p417 = scmp.lt.s32.totalorder %s414, 79
      %s418 = scalar_select %p417, %s414, 79
      %s419 = smul.addr %s416, 80
      %s420 = sadd.s32 %s418, %s419
      %s421 = smul.addr %s420, 8
      %s422 = scalar_lea.vmem %s8, %s421
      %s423 = smul.u32 16, %s25
      %p425 = scmp.eq.s32.totalorder %s26, 0
      // Predicated region
      $region53: #{nonlocal_psp_correlation.5} parent=51 // pred_check
        %p426 = pneg %p425
      $region54: #{nonlocal_psp_correlation.5} parent=51 // pred_check_branch
        %428 = sbr.rel (%p426) target = $region56
      $region55: #{nonlocal_psp_correlation.5} parent=51 // pred_region
        %v429 = vld [vmem:[%s392] sm:$0xf]
        %v430 = vld [vmem:[%s392 + $0x4] sm:$0xf]
        %v431 = vld [vmem:[%s392 + $0x8] sm:$0xf]
        %v432 = vld [vmem:[%s392 + $0xc] sm:$0xf]
        %v433 = vld [vmem:[%s392 + $0x10] sm:$0xf]
        %v434 = vld [vmem:[%s392 + $0x14] sm:$0xf]
        %v435 = vld [vmem:[%s392 + $0x18] sm:$0xf]
        %v436 = vld [vmem:[%s392 + $0x1c] sm:$0xf]
        %v437 = vld [vmem:[%s392 + $0x20] sm:$0xf]
        %v438 = vld [vmem:[%s392 + $0x24] sm:$0xf]
        %v439 = vld [vmem:[%s392 + $0x28] sm:$0xf]
        %v440 = vld [vmem:[%s392 + $0x2c] sm:$0xf]
        %v441 = vld [vmem:[%s392 + $0x30] sm:$0xf]
        %v442 = vld [vmem:[%s392 + $0x34] sm:$0xf]
        %v443 = vld [vmem:[%s392 + $0x38] sm:$0xf]
        %v444 = vld [vmem:[%s392 + $0x3c] sm:$0xf]
        %v445 = vld [vmem:[%s3] sm:$0xf]
        %v446 = vld [vmem:[%s3 + $0x4] sm:$0xf]
        %v447 = vld [vmem:[%s4] sm:$0x1]
        %v449 = vlaneseq
        %v450 = vshrl.u32 %v449, 7
        %v451 = vsub.s32 0, %v450
        %v452 = vrot.slane %v447, %v451
        %v470 = vunpack.c.l.b16 %v429
        %v471 = vunpack.c.l.b16 %v430
        %v472 = vunpack.c.l.b16 %v431
        %v473 = vunpack.c.l.b16 %v432
        %v474 = vunpack.c.l.b16 %v433
        %v475 = vunpack.c.l.b16 %v434
        %v476 = vunpack.c.l.b16 %v435
        %v477 = vunpack.c.l.b16 %v436
        %v478 = vunpack.c.l.b16 %v437
        %v479 = vunpack.c.l.b16 %v438
        %v480 = vunpack.c.l.b16 %v439
        %v481 = vunpack.c.l.b16 %v440
        %v482 = vunpack.c.l.b16 %v441
        %v483 = vunpack.c.l.b16 %v442
        %v484 = vunpack.c.l.b16 %v443
        %v485 = vunpack.c.l.b16 %v444
        %v486 = vpack.c.b16 %v471, %v470
        %v487 = vpack.c.b16 %v473, %v472
        %v488 = vpack.c.b16 %v475, %v474
        %v489 = vpack.c.b16 %v477, %v476
        %v490 = vpack.c.b16 %v479, %v478
        %v491 = vpack.c.b16 %v481, %v480
        %v492 = vpack.c.b16 %v483, %v482
        %v493 = vpack.c.b16 %v485, %v484
        %v496 = vunpack.c.l.b16 %v445
        %v497 = vunpack.c.l.b16 %v446
        %v498 = vpack.c.b16 %v497, %v496
        %vm500 = vcmask 130048
        %v502 = vsel %vm500, %v486, 0
        %v505 = vsel %vm500, %v487, 0
        %v508 = vsel %vm500, %v488, 0
        %v511 = vsel %vm500, %v489, 0
        %v514 = vsel %vm500, %v490, 0
        %v517 = vsel %vm500, %v491, 0
        %v520 = vsel %vm500, %v492, 0
        %v523 = vsel %vm500, %v493, 0
        %525 = vmatprep.subr.bf16.mxu0 0
        %526 = vmatpush1.bf16.msra.mxu0 %v498
        %527 = vmatprep.subr.bf16.mxu0 0
        %528 = vmatpush1.bf16.msra.mxu0 0
        %529 = vmatprep.subr.bf16.mxu0 0
        %530 = vmatpush1.bf16.msra.mxu0 0
        %531 = vmatprep.subr.bf16.mxu0 0
        %532 = vmatpush1.bf16.msra.mxu0 0
        %533 = vmatprep.subr.bf16.mxu0 0
        %534 = vmatpush1.bf16.msra.mxu0 0
        %535 = vmatprep.subr.bf16.mxu0 0
        %536 = vmatpush1.bf16.msra.mxu0 0
        %537 = vmatprep.subr.bf16.mxu0 0
        %538 = vmatpush1.bf16.msra.mxu0 0
        %539 = vmatprep.subr.bf16.mxu0 0
        %540 = vmatpush1.bf16.msra.mxu0 0
        %541 = vmatprep.subr.bf16.mxu0 0
        %542 = vmatpush1.bf16.msra.mxu0 0
        %543 = vmatprep.subr.bf16.mxu0 0
        %544 = vmatpush1.bf16.msra.mxu0 0
        %545 = vmatprep.subr.bf16.mxu0 0
        %546 = vmatpush1.bf16.msra.mxu0 0
        %547 = vmatprep.subr.bf16.mxu0 0
        %548 = vmatpush1.bf16.msra.mxu0 0
        %549 = vmatprep.subr.bf16.mxu0 0
        %550 = vmatpush1.bf16.msra.mxu0 0
        %551 = vmatprep.subr.bf16.mxu0 0
        %552 = vmatpush1.bf16.msra.mxu0 0
        %553 = vmatprep.subr.bf16.mxu0 0
        %554 = vmatpush1.bf16.msra.mxu0 0
        %555 = vmatprep.subr.bf16.mxu0 0
        %556 = vmatpush1.bf16.msra.mxu0 0
        %557 = vmatprep.mubr.bf16.mxu0 0
        %558 = vmatmul.mubr.bf16.gmra.mrb[0].mxu0 %v502
        %v559 = vpop.f32.mrb[0].mxu0
        %v560 = vadd.f32 %v452, %v559
        %v561 = vpop.f32.mrb[0].mxu0
        %v562 = vpop.f32.mrb[0].mxu0
        %v563 = vadd.f32 %v452, %v562
        %v564 = vpop.f32.mrb[0].mxu0
        %565 = vmatprep.mubr.bf16.mxu0 0
        %566 = vmatmul.mubr.bf16.gmra.mrb[0].mxu0 %v505
        %v567 = vpop.f32.mrb[0].mxu0
        %v568 = vadd.f32 %v452, %v567
        %v569 = vpop.f32.mrb[0].mxu0
        %v570 = vpop.f32.mrb[0].mxu0
        %v571 = vadd.f32 %v452, %v570
        %v572 = vpop.f32.mrb[0].mxu0
        %573 = vmatprep.mubr.bf16.mxu0 0
        %574 = vmatmul.mubr.bf16.gmra.mrb[0].mxu0 %v508
        %v575 = vpop.f32.mrb[0].mxu0
        %v576 = vadd.f32 %v452, %v575
        %v577 = vpop.f32.mrb[0].mxu0
        %v578 = vpop.f32.mrb[0].mxu0
        %v579 = vadd.f32 %v452, %v578
        %v580 = vpop.f32.mrb[0].mxu0
        %581 = vmatprep.mubr.bf16.mxu0 0
        %582 = vmatmul.mubr.bf16.gmra.mrb[0].mxu0 %v511
        %v583 = vpop.f32.mrb[0].mxu0
        %v584 = vadd.f32 %v452, %v583
        %v585 = vpop.f32.mrb[0].mxu0
        %v586 = vpop.f32.mrb[0].mxu0
        %v587 = vadd.f32 %v452, %v586
        %v588 = vpop.f32.mrb[0].mxu0
        %589 = vmatprep.mubr.bf16.mxu0 0
        %590 = vmatmul.mubr.bf16.gmra.mrb[0].mxu0 %v514
        %v591 = vpop.f32.mrb[0].mxu0
        %v592 = vadd.f32 %v452, %v591
        %v593 = vpop.f32.mrb[0].mxu0
        %v594 = vpop.f32.mrb[0].mxu0
        %v595 = vadd.f32 %v452, %v594
        %v596 = vpop.f32.mrb[0].mxu0
        %597 = vmatprep.mubr.bf16.mxu0 0
        %598 = vmatmul.mubr.bf16.gmra.mrb[0].mxu0 %v517
        %v599 = vpop.f32.mrb[0].mxu0
        %v600 = vadd.f32 %v452, %v599
        %v601 = vpop.f32.mrb[0].mxu0
        %v602 = vpop.f32.mrb[0].mxu0
        %v603 = vadd.f32 %v452, %v602
        %v604 = vpop.f32.mrb[0].mxu0
        %605 = vmatprep.mubr.bf16.mxu0 0
        %606 = vmatmul.mubr.bf16.gmra.mrb[0].mxu0 %v520
        %v607 = vpop.f32.mrb[0].mxu0
        %v608 = vadd.f32 %v452, %v607
        %v609 = vpop.f32.mrb[0].mxu0
        %v610 = vpop.f32.mrb[0].mxu0
        %v611 = vadd.f32 %v452, %v610
        %v612 = vpop.f32.mrb[0].mxu0
        %613 = vmatprep.mubr.bf16.mxu0 0
        %614 = vmatmul.mubr.bf16.gmra.mrb[0].mxu0 %v523
        %v615 = vpop.f32.mrb[0].mxu0
        %v616 = vadd.f32 %v452, %v615
        %v617 = vpop.f32.mrb[0].mxu0
        %v618 = vpop.f32.mrb[0].mxu0
        %v619 = vadd.f32 %v452, %v618
        %v620 = vpop.f32.mrb[0].mxu0
        %621 = vdwg.mxu0
        %v622 = vpack.c.bf16 %v563, %v560
        %v623 = vpack.c.bf16 %v571, %v568
        %v624 = vpack.c.bf16 %v579, %v576
        %v625 = vpack.c.bf16 %v587, %v584
        %v626 = vpack.c.bf16 %v595, %v592
        %v627 = vpack.c.bf16 %v603, %v600
        %v628 = vpack.c.bf16 %v611, %v608
        %v629 = vpack.c.bf16 %v619, %v616
        %vm630 = vcmask 64512
        %631 = vst.msk [vmem:[#allocation2] sm:$0xff] %vm630, %v622
        %632 = vst.msk [vmem:[#allocation2 + $0x8] sm:$0xff] %vm630, %v623
        %633 = vst.msk [vmem:[#allocation2 + $0x10] sm:$0xff] %vm630, %v624
        %634 = vst.msk [vmem:[#allocation2 + $0x18] sm:$0xff] %vm630, %v625
        %635 = vst.msk [vmem:[#allocation2 + $0x20] sm:$0xff] %vm630, %v626
        %636 = vst.msk [vmem:[#allocation2 + $0x28] sm:$0xff] %vm630, %v627
        %637 = vst.msk [vmem:[#allocation2 + $0x30] sm:$0xff] %vm630, %v628
        %638 = vst.msk [vmem:[#allocation2 + $0x38] sm:$0xff] %vm630, %v629
        %vm639 = vcmask 7168
        %640 = vst.msk [vmem:[#allocation3] sm:$0xff] %vm639, -inf
        %641 = vst.msk [vmem:[#allocation3 + $0x8] sm:$0xff] %vm639, -inf
        %642 = vst.msk [vmem:[#allocation3 + $0x10] sm:$0xff] %vm639, -inf
        %643 = vst.msk [vmem:[#allocation3 + $0x18] sm:$0xff] %vm639, -inf
        %644 = vst.msk [vmem:[#allocation3 + $0x20] sm:$0xff] %vm639, -inf
        %645 = vst.msk [vmem:[#allocation3 + $0x28] sm:$0xff] %vm639, -inf
        %646 = vst.msk [vmem:[#allocation3 + $0x30] sm:$0xff] %vm639, -inf
        %647 = vst.msk [vmem:[#allocation3 + $0x38] sm:$0xff] %vm639, -inf
        %648 = vst.msk [vmem:[#allocation3 + $0x40] sm:$0xff] %vm639, -inf
        %649 = vst.msk [vmem:[#allocation3 + $0x48] sm:$0xff] %vm639, -inf
        %650 = vst.msk [vmem:[#allocation3 + $0x50] sm:$0xff] %vm639, -inf
        %651 = vst.msk [vmem:[#allocation3 + $0x58] sm:$0xff] %vm639, -inf
        %652 = vst.msk [vmem:[#allocation3 + $0x60] sm:$0xff] %vm639, -inf
        %653 = vst.msk [vmem:[#allocation3 + $0x68] sm:$0xff] %vm639, -inf
        %654 = vst.msk [vmem:[#allocation3 + $0x70] sm:$0xff] %vm639, -inf
        %655 = vst.msk [vmem:[#allocation3 + $0x78] sm:$0xff] %vm639, -inf
        %656 = vst.msk [vmem:[#allocation4] sm:$0xff] %vm639, 0.0
        %657 = vst.msk [vmem:[#allocation4 + $0x8] sm:$0xff] %vm639, 0.0
        %658 = vst.msk [vmem:[#allocation4 + $0x10] sm:$0xff] %vm639, 0.0
        %659 = vst.msk [vmem:[#allocation4 + $0x18] sm:$0xff] %vm639, 0.0
        %660 = vst.msk [vmem:[#allocation4 + $0x20] sm:$0xff] %vm639, 0.0
        %661 = vst.msk [vmem:[#allocation4 + $0x28] sm:$0xff] %vm639, 0.0
        %662 = vst.msk [vmem:[#allocation4 + $0x30] sm:$0xff] %vm639, 0.0
        %663 = vst.msk [vmem:[#allocation4 + $0x38] sm:$0xff] %vm639, 0.0
        %664 = vst.msk [vmem:[#allocation4 + $0x40] sm:$0xff] %vm639, 0.0
        %665 = vst.msk [vmem:[#allocation4 + $0x48] sm:$0xff] %vm639, 0.0
        %666 = vst.msk [vmem:[#allocation4 + $0x50] sm:$0xff] %vm639, 0.0
        %667 = vst.msk [vmem:[#allocation4 + $0x58] sm:$0xff] %vm639, 0.0
        %668 = vst.msk [vmem:[#allocation4 + $0x60] sm:$0xff] %vm639, 0.0
        %669 = vst.msk [vmem:[#allocation4 + $0x68] sm:$0xff] %vm639, 0.0
        %670 = vst.msk [vmem:[#allocation4 + $0x70] sm:$0xff] %vm639, 0.0
        %671 = vst.msk [vmem:[#allocation4 + $0x78] sm:$0xff] %vm639, 0.0
        %672 = vst.msk [vmem:[#allocation5] sm:$0xff] %vm630, 0.0
        %673 = vst.msk [vmem:[#allocation5 + $0x8] sm:$0xff] %vm630, 0.0
        %674 = vst.msk [vmem:[#allocation5 + $0x10] sm:$0xff] %vm630, 0.0
        %675 = vst.msk [vmem:[#allocation5 + $0x18] sm:$0xff] %vm630, 0.0
        %676 = vst.msk [vmem:[#allocation5 + $0x20] sm:$0xff] %vm630, 0.0
        %677 = vst.msk [vmem:[#allocation5 + $0x28] sm:$0xff] %vm630, 0.0
        %678 = vst.msk [vmem:[#allocation5 + $0x30] sm:$0xff] %vm630, 0.0
        %679 = vst.msk [vmem:[#allocation5 + $0x38] sm:$0xff] %vm630, 0.0
        %680 = vst.msk [vmem:[#allocation5 + $0x40] sm:$0xff] %vm630, 0.0
        %681 = vst.msk [vmem:[#allocation5 + $0x48] sm:$0xff] %vm630, 0.0
        %682 = vst.msk [vmem:[#allocation5 + $0x50] sm:$0xff] %vm630, 0.0
        %683 = vst.msk [vmem:[#allocation5 + $0x58] sm:$0xff] %vm630, 0.0
        %684 = vst.msk [vmem:[#allocation5 + $0x60] sm:$0xff] %vm630, 0.0
        %685 = vst.msk [vmem:[#allocation5 + $0x68] sm:$0xff] %vm630, 0.0
        %686 = vst.msk [vmem:[#allocation5 + $0x70] sm:$0xff] %vm630, 0.0
        %687 = vst.msk [vmem:[#allocation5 + $0x78] sm:$0xff] %vm630, 0.0
      $region56: #{nonlocal_psp_correlation.5} parent=51 // pred_fallthru
        _
      %v688 = vld [vmem:[#allocation2] sm:$0xff]
      %v689 = vld [vmem:[#allocation2 + $0x8] sm:$0xff]
      %v690 = vld [vmem:[#allocation2 + $0x10] sm:$0xff]
      %v691 = vld [vmem:[#allocation2 + $0x18] sm:$0xff]
      %v692 = vld [vmem:[#allocation2 + $0x20] sm:$0xff]
      %v693 = vld [vmem:[#allocation2 + $0x28] sm:$0xff]
      %v694 = vld [vmem:[#allocation2 + $0x30] sm:$0xff]
      %v695 = vld [vmem:[#allocation2 + $0x38] sm:$0xff]
      %v696 = vld [vmem:[%s402] sm:$0xf]
      %v697 = vld [vmem:[%s402 + $0x4] sm:$0xf]
      %v698 = vld [vmem:[%s402 + $0x8] sm:$0xf]
      %v699 = vld [vmem:[%s402 + $0xc] sm:$0xf]
      %v700 = vld [vmem:[%s402 + $0x10] sm:$0xf]
      %v701 = vld [vmem:[%s402 + $0x14] sm:$0xf]
      %v702 = vld [vmem:[%s402 + $0x18] sm:$0xf]
      %v703 = vld [vmem:[%s402 + $0x1c] sm:$0xf]
      %v704 = vld [vmem:[%s402 + $0x20] sm:$0xf]
      %v705 = vld [vmem:[%s402 + $0x24] sm:$0xf]
      %v706 = vld [vmem:[%s402 + $0x28] sm:$0xf]
      %v707 = vld [vmem:[%s402 + $0x2c] sm:$0xf]
      %v708 = vld [vmem:[%s402 + $0x30] sm:$0xf]
      %v709 = vld [vmem:[%s402 + $0x34] sm:$0xf]
      %v710 = vld [vmem:[%s402 + $0x38] sm:$0xf]
      %v711 = vld [vmem:[%s402 + $0x3c] sm:$0xf]
      %v728 = vunpack.c.l.b16 %v696
      %v729 = vunpack.c.l.b16 %v697
      %v730 = vunpack.c.l.b16 %v698
      %v731 = vunpack.c.l.b16 %v699
      %v732 = vunpack.c.l.b16 %v700
      %v733 = vunpack.c.l.b16 %v701
      %v734 = vunpack.c.l.b16 %v702
      %v735 = vunpack.c.l.b16 %v703
      %v736 = vunpack.c.l.b16 %v704
      %v737 = vunpack.c.l.b16 %v705
      %v738 = vunpack.c.l.b16 %v706
      %v739 = vunpack.c.l.b16 %v707
      %v740 = vunpack.c.l.b16 %v708
      %v741 = vunpack.c.l.b16 %v709
      %v742 = vunpack.c.l.b16 %v710
      %v743 = vunpack.c.l.b16 %v711
      %v744 = vpack.c.b16 %v729, %v728
      %v745 = vpack.c.b16 %v731, %v730
      %v746 = vpack.c.b16 %v733, %v732
      %v747 = vpack.c.b16 %v735, %v734
      %v748 = vpack.c.b16 %v737, %v736
      %v749 = vpack.c.b16 %v739, %v738
      %v750 = vpack.c.b16 %v741, %v740
      %v751 = vpack.c.b16 %v743, %v742
      %vm752 = vcmask 64512
      %v754 = vsel %vm752, %v688, 0
      %v757 = vsel %vm752, %v689, 0
      %v760 = vsel %vm752, %v690, 0
      %v763 = vsel %vm752, %v691, 0
      %v766 = vsel %vm752, %v692, 0
      %v769 = vsel %vm752, %v693, 0
      %v772 = vsel %vm752, %v694, 0
      %v775 = vsel %vm752, %v695, 0
      %v778 = vsel %vm752, %v744, 0
      %v781 = vsel %vm752, %v745, 0
      %v784 = vsel %vm752, %v746, 0
      %v787 = vsel %vm752, %v747, 0
      %v790 = vsel %vm752, %v748, 0
      %v793 = vsel %vm752, %v749, 0
      %v796 = vsel %vm752, %v750, 0
      %v799 = vsel %vm752, %v751, 0
      %801 = vmatprep.subr.bf16.mxu0 0
      %802 = vmatpush1.bf16.xpose.msra.mxu0 %v778
      %803 = vmatprep.subr.bf16.mxu0 0
      %804 = vmatpush1.bf16.xpose.msra.mxu0 %v781
      %805 = vmatprep.subr.bf16.mxu0 0
      %806 = vmatpush1.bf16.xpose.msra.mxu0 %v784
      %807 = vmatprep.subr.bf16.mxu0 0
      %808 = vmatpush1.bf16.xpose.msra.mxu0 %v787
      %809 = vmatprep.subr.bf16.mxu0 0
      %810 = vmatpush1.bf16.xpose.msra.mxu0 %v790
      %811 = vmatprep.subr.bf16.mxu0 0
      %812 = vmatpush1.bf16.xpose.msra.mxu0 %v793
      %813 = vmatprep.subr.bf16.mxu0 0
      %814 = vmatpush1.bf16.xpose.msra.mxu0 %v796
      %815 = vmatprep.subr.bf16.mxu0 0
      %816 = vmatpush1.bf16.xpose.msra.mxu0 %v799
      %817 = vmatprep.subr.bf16.mxu0 0
      %818 = vmatpush1.bf16.xpose.msra.mxu0 0
      %819 = vmatprep.subr.bf16.mxu0 0
      %820 = vmatpush1.bf16.xpose.msra.mxu0 0
      %821 = vmatprep.subr.bf16.mxu0 0
      %822 = vmatpush1.bf16.xpose.msra.mxu0 0
      %823 = vmatprep.subr.bf16.mxu0 0
      %824 = vmatpush1.bf16.xpose.msra.mxu0 0
      %825 = vmatprep.subr.bf16.mxu0 0
      %826 = vmatpush1.bf16.xpose.msra.mxu0 0
      %827 = vmatprep.subr.bf16.mxu0 0
      %828 = vmatpush1.bf16.xpose.msra.mxu0 0
      %829 = vmatprep.subr.bf16.mxu0 0
      %830 = vmatpush1.bf16.xpose.msra.mxu0 0
      %831 = vmatprep.subr.bf16.mxu0 0
      %832 = vmatpush1.bf16.xpose.msra.mxu0 0
      %833 = vmatprep.mubr.bf16.mxu0 0
      %834 = vmatmul.mubr.bf16.gmra.mrb[0].mxu0 %v754
      %v835 = vpop.f32.mrb[0].mxu0
      %v836 = vadd.f32 0.0, %v835
      %v837 = vpop.f32.mrb[0].mxu0
      %v838 = vpop.f32.mrb[0].mxu0
      %v839 = vadd.f32 0.0, %v838
      %v840 = vpop.f32.mrb[0].mxu0
      %841 = vmatprep.mubr.bf16.mxu0 0
      %842 = vmatmul.mubr.bf16.gmra.mrb[0].mxu0 %v757
      %v843 = vpop.f32.mrb[0].mxu0
      %v844 = vadd.f32 0.0, %v843
      %v845 = vpop.f32.mrb[0].mxu0
      %v846 = vpop.f32.mrb[0].mxu0
      %v847 = vadd.f32 0.0, %v846
      %v848 = vpop.f32.mrb[0].mxu0
      %849 = vmatprep.mubr.bf16.mxu0 0
      %850 = vmatmul.mubr.bf16.gmra.mrb[0].mxu0 %v760
      %v851 = vpop.f32.mrb[0].mxu0
      %v852 = vadd.f32 0.0, %v851
      %v853 = vpop.f32.mrb[0].mxu0
      %v854 = vpop.f32.mrb[0].mxu0
      %v855 = vadd.f32 0.0, %v854
      %v856 = vpop.f32.mrb[0].mxu0
      %857 = vmatprep.mubr.bf16.mxu0 0
      %858 = vmatmul.mubr.bf16.gmra.mrb[0].mxu0 %v763
      %v859 = vpop.f32.mrb[0].mxu0
      %v860 = vadd.f32 0.0, %v859
      %v861 = vpop.f32.mrb[0].mxu0
      %v862 = vpop.f32.mrb[0].mxu0
      %v863 = vadd.f32 0.0, %v862
      %v864 = vpop.f32.mrb[0].mxu0
      %865 = vmatprep.mubr.bf16.mxu0 0
      %866 = vmatmul.mubr.bf16.gmra.mrb[0].mxu0 %v766
      %v867 = vpop.f32.mrb[0].mxu0
      %v868 = vadd.f32 0.0, %v867
      %v869 = vpop.f32.mrb[0].mxu0
      %v870 = vpop.f32.mrb[0].mxu0
      %v871 = vadd.f32 0.0, %v870
      %v872 = vpop.f32.mrb[0].mxu0
      %873 = vmatprep.mubr.bf16.mxu0 0
      %874 = vmatmul.mubr.bf16.gmra.mrb[0].mxu0 %v769
      %v875 = vpop.f32.mrb[0].mxu0
      %v876 = vadd.f32 0.0, %v875
      %v877 = vpop.f32.mrb[0].mxu0
      %v878 = vpop.f32.mrb[0].mxu0
      %v879 = vadd.f32 0.0, %v878
      %v880 = vpop.f32.mrb[0].mxu0
      %881 = vmatprep.mubr.bf16.mxu0 0
      %882 = vmatmul.mubr.bf16.gmra.mrb[0].mxu0 %v772
      %v883 = vpop.f32.mrb[0].mxu0
      %v884 = vadd.f32 0.0, %v883
      %v885 = vpop.f32.mrb[0].mxu0
      %v886 = vpop.f32.mrb[0].mxu0
      %v887 = vadd.f32 0.0, %v886
      %v888 = vpop.f32.mrb[0].mxu0
      %889 = vmatprep.mubr.bf16.mxu0 0
      %890 = vmatmul.mubr.bf16.gmra.mrb[0].mxu0 %v775
      %v891 = vpop.f32.mrb[0].mxu0
      %v892 = vadd.f32 0.0, %v891
      %v893 = vpop.f32.mrb[0].mxu0
      %v894 = vpop.f32.mrb[0].mxu0
      %v895 = vadd.f32 0.0, %v894
      %v896 = vpop.f32.mrb[0].mxu0
      %897 = vdwg.mxu0
      %s898 = smul.u32 %s26, 128
      %v899 = vlaneseq
      %v900 = vand.u32 %v899, 127
      %v901 = vstv %s898
      %v902 = vadd.s32 %v901, %v900
      %vm903 = vcmp.lt.s32.totalorder %v902, 576
      %v904 = vsel %vm903, %v836, -inf
      %v905 = vsel %vm903, %v839, -inf
      %v906 = vsel %vm903, %v844, -inf
      %v907 = vsel %vm903, %v847, -inf
      %v908 = vsel %vm903, %v852, -inf
      %v909 = vsel %vm903, %v855, -inf
      %v910 = vsel %vm903, %v860, -inf
      %v911 = vsel %vm903, %v863, -inf
      %v912 = vsel %vm903, %v868, -inf
      %v913 = vsel %vm903, %v871, -inf
      %v914 = vsel %vm903, %v876, -inf
      %v915 = vsel %vm903, %v879, -inf
      %v916 = vsel %vm903, %v884, -inf
      %v917 = vsel %vm903, %v887, -inf
      %v918 = vsel %vm903, %v892, -inf
      %v919 = vsel %vm903, %v895, -inf
      %v920 = vld [vmem:[#allocation3] sm:$0xff]
      %v921 = vld [vmem:[#allocation3 + $0x8] sm:$0xff]
      %v922 = vld [vmem:[#allocation3 + $0x10] sm:$0xff]
      %v923 = vld [vmem:[#allocation3 + $0x18] sm:$0xff]
      %v924 = vld [vmem:[#allocation3 + $0x20] sm:$0xff]
      %v925 = vld [vmem:[#allocation3 + $0x28] sm:$0xff]
      %v926 = vld [vmem:[#allocation3 + $0x30] sm:$0xff]
      %v927 = vld [vmem:[#allocation3 + $0x38] sm:$0xff]
      %v928 = vld [vmem:[#allocation3 + $0x40] sm:$0xff]
      %v929 = vld [vmem:[#allocation3 + $0x48] sm:$0xff]
      %v930 = vld [vmem:[#allocation3 + $0x50] sm:$0xff]
      %v931 = vld [vmem:[#allocation3 + $0x58] sm:$0xff]
      %v932 = vld [vmem:[#allocation3 + $0x60] sm:$0xff]
      %v933 = vld [vmem:[#allocation3 + $0x68] sm:$0xff]
      %v934 = vld [vmem:[#allocation3 + $0x70] sm:$0xff]
      %v935 = vld [vmem:[#allocation3 + $0x78] sm:$0xff]
      %936 = vmax.xlane.f32.xlu0 %v904
      %v937 = vpop.xlane.xlu0 %936
      %938 = vmax.xlane.f32.xlu0 %v905
      %v939 = vpop.xlane.xlu0 %938
      %940 = vmax.xlane.f32.xlu0 %v906
      %v941 = vpop.xlane.xlu0 %940
      %942 = vmax.xlane.f32.xlu0 %v907
      %v943 = vpop.xlane.xlu0 %942
      %944 = vmax.xlane.f32.xlu0 %v908
      %v945 = vpop.xlane.xlu0 %944
      %946 = vmax.xlane.f32.xlu0 %v909
      %v947 = vpop.xlane.xlu0 %946
      %948 = vmax.xlane.f32.xlu0 %v910
      %v949 = vpop.xlane.xlu0 %948
      %950 = vmax.xlane.f32.xlu0 %v911
      %v951 = vpop.xlane.xlu0 %950
      %952 = vmax.xlane.f32.xlu0 %v912
      %v953 = vpop.xlane.xlu0 %952
      %954 = vmax.xlane.f32.xlu0 %v913
      %v955 = vpop.xlane.xlu0 %954
      %956 = vmax.xlane.f32.xlu0 %v914
      %v957 = vpop.xlane.xlu0 %956
      %958 = vmax.xlane.f32.xlu0 %v915
      %v959 = vpop.xlane.xlu0 %958
      %960 = vmax.xlane.f32.xlu0 %v916
      %v961 = vpop.xlane.xlu0 %960
      %962 = vmax.xlane.f32.xlu0 %v917
      %v963 = vpop.xlane.xlu0 %962
      %964 = vmax.xlane.f32.xlu0 %v918
      %v965 = vpop.xlane.xlu0 %964
      %966 = vmax.xlane.f32.xlu0 %v919
      %v967 = vpop.xlane.xlu0 %966
      %v968 = vmax.f32 %v920, %v937
      %v969 = vmax.f32 %v921, %v939
      %v970 = vmax.f32 %v922, %v941
      %v971 = vmax.f32 %v923, %v943
      %v972 = vmax.f32 %v924, %v945
      %v973 = vmax.f32 %v925, %v947
      %v974 = vmax.f32 %v926, %v949
      %v975 = vmax.f32 %v927, %v951
      %v976 = vmax.f32 %v928, %v953
      %v977 = vmax.f32 %v929, %v955
      %v978 = vmax.f32 %v930, %v957
      %v979 = vmax.f32 %v931, %v959
      %v980 = vmax.f32 %v932, %v961
      %v981 = vmax.f32 %v933, %v963
      %v982 = vmax.f32 %v934, %v965
      %v983 = vmax.f32 %v935, %v967
      %v984 = vsub.f32 %v920, %v968
      %v985 = vsub.f32 %v921, %v969
      %v986 = vsub.f32 %v922, %v970
      %v987 = vsub.f32 %v923, %v971
      %v988 = vsub.f32 %v924, %v972
      %v989 = vsub.f32 %v925, %v973
      %v990 = vsub.f32 %v926, %v974
      %v991 = vsub.f32 %v927, %v975
      %v992 = vsub.f32 %v928, %v976
      %v993 = vsub.f32 %v929, %v977
      %v994 = vsub.f32 %v930, %v978
      %v995 = vsub.f32 %v931, %v979
      %v996 = vsub.f32 %v932, %v980
      %v997 = vsub.f32 %v933, %v981
      %v998 = vsub.f32 %v934, %v982
      %v999 = vsub.f32 %v935, %v983
      %v1000 = vmul.f32 %v984, 1.442695
      %v1001 = vpow.pop %v1000
      %v1002 = vmul.f32 %v985, 1.442695
      %v1003 = vpow.pop %v1002
      %v1004 = vmul.f32 %v986, 1.442695
      %v1005 = vpow.pop %v1004
      %v1006 = vmul.f32 %v987, 1.442695
      %v1007 = vpow.pop %v1006
      %v1008 = vmul.f32 %v988, 1.442695
      %v1009 = vpow.pop %v1008
      %v1010 = vmul.f32 %v989, 1.442695
      %v1011 = vpow.pop %v1010
      %v1012 = vmul.f32 %v990, 1.442695
      %v1013 = vpow.pop %v1012
      %v1014 = vmul.f32 %v991, 1.442695
      %v1015 = vpow.pop %v1014
      %v1016 = vmul.f32 %v992, 1.442695
      %v1017 = vpow.pop %v1016
      %v1018 = vmul.f32 %v993, 1.442695
      %v1019 = vpow.pop %v1018
      %v1020 = vmul.f32 %v994, 1.442695
      %v1021 = vpow.pop %v1020
      %v1022 = vmul.f32 %v995, 1.442695
      %v1023 = vpow.pop %v1022
      %v1024 = vmul.f32 %v996, 1.442695
      %v1025 = vpow.pop %v1024
      %v1026 = vmul.f32 %v997, 1.442695
      %v1027 = vpow.pop %v1026
      %v1028 = vmul.f32 %v998, 1.442695
      %v1029 = vpow.pop %v1028
      %v1030 = vmul.f32 %v999, 1.442695
      %v1031 = vpow.pop %v1030
      %1033 = vset.pattern.permute.xlu0 0
      %1034 = vperm.xlu0 %1033, %v968
      %v1035 = vpop.permute.xlu0 %1034
      %1038 = vset.pattern.permute.xlu0 0
      %1039 = vperm.xlu0 %1038, %v969
      %v1040 = vpop.permute.xlu0 %1039
      %1043 = vset.pattern.permute.xlu0 0
      %1044 = vperm.xlu0 %1043, %v970
      %v1045 = vpop.permute.xlu0 %1044
      %1048 = vset.pattern.permute.xlu0 0
      %1049 = vperm.xlu0 %1048, %v971
      %v1050 = vpop.permute.xlu0 %1049
      %1053 = vset.pattern.permute.xlu0 0
      %1054 = vperm.xlu0 %1053, %v972
      %v1055 = vpop.permute.xlu0 %1054
      %1058 = vset.pattern.permute.xlu0 0
      %1059 = vperm.xlu0 %1058, %v973
      %v1060 = vpop.permute.xlu0 %1059
      %1063 = vset.pattern.permute.xlu0 0
      %1064 = vperm.xlu0 %1063, %v974
      %v1065 = vpop.permute.xlu0 %1064
      %1068 = vset.pattern.permute.xlu0 0
      %1069 = vperm.xlu0 %1068, %v975
      %v1070 = vpop.permute.xlu0 %1069
      %1073 = vset.pattern.permute.xlu0 0
      %1074 = vperm.xlu0 %1073, %v976
      %v1075 = vpop.permute.xlu0 %1074
      %1078 = vset.pattern.permute.xlu0 0
      %1079 = vperm.xlu0 %1078, %v977
      %v1080 = vpop.permute.xlu0 %1079
      %1083 = vset.pattern.permute.xlu0 0
      %1084 = vperm.xlu0 %1083, %v978
      %v1085 = vpop.permute.xlu0 %1084
      %1088 = vset.pattern.permute.xlu0 0
      %1089 = vperm.xlu0 %1088, %v979
      %v1090 = vpop.permute.xlu0 %1089
      %1093 = vset.pattern.permute.xlu0 0
      %1094 = vperm.xlu0 %1093, %v980
      %v1095 = vpop.permute.xlu0 %1094
      %1098 = vset.pattern.permute.xlu0 0
      %1099 = vperm.xlu0 %1098, %v981
      %v1100 = vpop.permute.xlu0 %1099
      %1103 = vset.pattern.permute.xlu0 0
      %1104 = vperm.xlu0 %1103, %v982
      %v1105 = vpop.permute.xlu0 %1104
      %1108 = vset.pattern.permute.xlu0 0
      %1109 = vperm.xlu0 %1108, %v983
      %v1110 = vpop.permute.xlu0 %1109
      %v1112 = vsub.f32 %v904, %v1035
      %v1113 = vsub.f32 %v905, %v1040
      %v1114 = vsub.f32 %v906, %v1045
      %v1115 = vsub.f32 %v907, %v1050
      %v1116 = vsub.f32 %v908, %v1055
      %v1117 = vsub.f32 %v909, %v1060
      %v1118 = vsub.f32 %v910, %v1065
      %v1119 = vsub.f32 %v911, %v1070
      %v1120 = vsub.f32 %v912, %v1075
      %v1121 = vsub.f32 %v913, %v1080
      %v1122 = vsub.f32 %v914, %v1085
      %v1123 = vsub.f32 %v915, %v1090
      %v1124 = vsub.f32 %v916, %v1095
      %v1125 = vsub.f32 %v917, %v1100
      %v1126 = vsub.f32 %v918, %v1105
      %v1127 = vsub.f32 %v919, %v1110
      %v1128 = vmul.f32 %v1112, 1.442695
      %v1129 = vpow.pop %v1128
      %v1130 = vmul.f32 %v1113, 1.442695
      %v1131 = vpow.pop %v1130
      %v1132 = vmul.f32 %v1114, 1.442695
      %v1133 = vpow.pop %v1132
      %v1134 = vmul.f32 %v1115, 1.442695
      %v1135 = vpow.pop %v1134
      %v1136 = vmul.f32 %v1116, 1.442695
      %v1137 = vpow.pop %v1136
      %v1138 = vmul.f32 %v1117, 1.442695
      %v1139 = vpow.pop %v1138
      %v1140 = vmul.f32 %v1118, 1.442695
      %v1141 = vpow.pop %v1140
      %v1142 = vmul.f32 %v1119, 1.442695
      %v1143 = vpow.pop %v1142
      %v1144 = vmul.f32 %v1120, 1.442695
      %v1145 = vpow.pop %v1144
      %v1146 = vmul.f32 %v1121, 1.442695
      %v1147 = vpow.pop %v1146
      %v1148 = vmul.f32 %v1122, 1.442695
      %v1149 = vpow.pop %v1148
      %v1150 = vmul.f32 %v1123, 1.442695
      %v1151 = vpow.pop %v1150
      %v1152 = vmul.f32 %v1124, 1.442695
      %v1153 = vpow.pop %v1152
      %v1154 = vmul.f32 %v1125, 1.442695
      %v1155 = vpow.pop %v1154
      %v1156 = vmul.f32 %v1126, 1.442695
      %v1157 = vpow.pop %v1156
      %v1158 = vmul.f32 %v1127, 1.442695
      %v1159 = vpow.pop %v1158
      %v1160 = vld [vmem:[#allocation4] sm:$0xff]
      %v1161 = vld [vmem:[#allocation4 + $0x8] sm:$0xff]
      %v1162 = vld [vmem:[#allocation4 + $0x10] sm:$0xff]
      %v1163 = vld [vmem:[#allocation4 + $0x18] sm:$0xff]
      %v1164 = vld [vmem:[#allocation4 + $0x20] sm:$0xff]
      %v1165 = vld [vmem:[#allocation4 + $0x28] sm:$0xff]
      %v1166 = vld [vmem:[#allocation4 + $0x30] sm:$0xff]
      %v1167 = vld [vmem:[#allocation4 + $0x38] sm:$0xff]
      %v1168 = vld [vmem:[#allocation4 + $0x40] sm:$0xff]
      %v1169 = vld [vmem:[#allocation4 + $0x48] sm:$0xff]
      %v1170 = vld [vmem:[#allocation4 + $0x50] sm:$0xff]
      %v1171 = vld [vmem:[#allocation4 + $0x58] sm:$0xff]
      %v1172 = vld [vmem:[#allocation4 + $0x60] sm:$0xff]
      %v1173 = vld [vmem:[#allocation4 + $0x68] sm:$0xff]
      %v1174 = vld [vmem:[#allocation4 + $0x70] sm:$0xff]
      %v1175 = vld [vmem:[#allocation4 + $0x78] sm:$0xff]
      %v1176 = vmul.f32 %v1001, %v1160
      %v1177 = vmul.f32 %v1003, %v1161
      %v1178 = vmul.f32 %v1005, %v1162
      %v1179 = vmul.f32 %v1007, %v1163
      %v1180 = vmul.f32 %v1009, %v1164
      %v1181 = vmul.f32 %v1011, %v1165
      %v1182 = vmul.f32 %v1013, %v1166
      %v1183 = vmul.f32 %v1015, %v1167
      %v1184 = vmul.f32 %v1017, %v1168
      %v1185 = vmul.f32 %v1019, %v1169
      %v1186 = vmul.f32 %v1021, %v1170
      %v1187 = vmul.f32 %v1023, %v1171
      %v1188 = vmul.f32 %v1025, %v1172
      %v1189 = vmul.f32 %v1027, %v1173
      %v1190 = vmul.f32 %v1029, %v1174
      %v1191 = vmul.f32 %v1031, %v1175
      %1192 = vadd.xlane.f32.xlu0 %v1129
      %v1193 = vpop.xlane.xlu0 %1192
      %1194 = vadd.xlane.f32.xlu0 %v1131
      %v1195 = vpop.xlane.xlu0 %1194
      %1196 = vadd.xlane.f32.xlu0 %v1133
      %v1197 = vpop.xlane.xlu0 %1196
      %1198 = vadd.xlane.f32.xlu0 %v1135
      %v1199 = vpop.xlane.xlu0 %1198
      %1200 = vadd.xlane.f32.xlu0 %v1137
      %v1201 = vpop.xlane.xlu0 %1200
      %1202 = vadd.xlane.f32.xlu0 %v1139
      %v1203 = vpop.xlane.xlu0 %1202
      %1204 = vadd.xlane.f32.xlu0 %v1141
      %v1205 = vpop.xlane.xlu0 %1204
      %1206 = vadd.xlane.f32.xlu0 %v1143
      %v1207 = vpop.xlane.xlu0 %1206
      %1208 = vadd.xlane.f32.xlu0 %v1145
      %v1209 = vpop.xlane.xlu0 %1208
      %1210 = vadd.xlane.f32.xlu0 %v1147
      %v1211 = vpop.xlane.xlu0 %1210
      %1212 = vadd.xlane.f32.xlu0 %v1149
      %v1213 = vpop.xlane.xlu0 %1212
      %1214 = vadd.xlane.f32.xlu0 %v1151
      %v1215 = vpop.xlane.xlu0 %1214
      %1216 = vadd.xlane.f32.xlu0 %v1153
      %v1217 = vpop.xlane.xlu0 %1216
      %1218 = vadd.xlane.f32.xlu0 %v1155
      %v1219 = vpop.xlane.xlu0 %1218
      %1220 = vadd.xlane.f32.xlu0 %v1157
      %v1221 = vpop.xlane.xlu0 %1220
      %1222 = vadd.xlane.f32.xlu0 %v1159
      %v1223 = vpop.xlane.xlu0 %1222
      %v1224 = vadd.f32 %v1176, %v1193
      %v1225 = vadd.f32 %v1177, %v1195
      %v1226 = vadd.f32 %v1178, %v1197
      %v1227 = vadd.f32 %v1179, %v1199
      %v1228 = vadd.f32 %v1180, %v1201
      %v1229 = vadd.f32 %v1181, %v1203
      %v1230 = vadd.f32 %v1182, %v1205
      %v1231 = vadd.f32 %v1183, %v1207
      %v1232 = vadd.f32 %v1184, %v1209
      %v1233 = vadd.f32 %v1185, %v1211
      %v1234 = vadd.f32 %v1186, %v1213
      %v1235 = vadd.f32 %v1187, %v1215
      %v1236 = vadd.f32 %v1188, %v1217
      %v1237 = vadd.f32 %v1189, %v1219
      %v1238 = vadd.f32 %v1190, %v1221
      %v1239 = vadd.f32 %v1191, %v1223
      %vm1240 = vcmask 7168
      %1241 = vst.msk [vmem:[#allocation4] sm:$0xff] %vm1240, %v1224
      %1242 = vst.msk [vmem:[#allocation4 + $0x8] sm:$0xff] %vm1240, %v1225
      %1243 = vst.msk [vmem:[#allocation4 + $0x10] sm:$0xff] %vm1240, %v1226
      %1244 = vst.msk [vmem:[#allocation4 + $0x18] sm:$0xff] %vm1240, %v1227
      %1245 = vst.msk [vmem:[#allocation4 + $0x20] sm:$0xff] %vm1240, %v1228
      %1246 = vst.msk [vmem:[#allocation4 + $0x28] sm:$0xff] %vm1240, %v1229
      %1247 = vst.msk [vmem:[#allocation4 + $0x30] sm:$0xff] %vm1240, %v1230
      %1248 = vst.msk [vmem:[#allocation4 + $0x38] sm:$0xff] %vm1240, %v1231
      %1249 = vst.msk [vmem:[#allocation4 + $0x40] sm:$0xff] %vm1240, %v1232
      %1250 = vst.msk [vmem:[#allocation4 + $0x48] sm:$0xff] %vm1240, %v1233
      %1251 = vst.msk [vmem:[#allocation4 + $0x50] sm:$0xff] %vm1240, %v1234
      %1252 = vst.msk [vmem:[#allocation4 + $0x58] sm:$0xff] %vm1240, %v1235
      %1253 = vst.msk [vmem:[#allocation4 + $0x60] sm:$0xff] %vm1240, %v1236
      %1254 = vst.msk [vmem:[#allocation4 + $0x68] sm:$0xff] %vm1240, %v1237
      %1255 = vst.msk [vmem:[#allocation4 + $0x70] sm:$0xff] %vm1240, %v1238
      %1256 = vst.msk [vmem:[#allocation4 + $0x78] sm:$0xff] %vm1240, %v1239
      %v1257 = vld [vmem:[#allocation5] sm:$0xff]
      %v1258 = vld [vmem:[#allocation5 + $0x8] sm:$0xff]
      %v1259 = vld [vmem:[#allocation5 + $0x10] sm:$0xff]
      %v1260 = vld [vmem:[#allocation5 + $0x18] sm:$0xff]
      %v1261 = vld [vmem:[#allocation5 + $0x20] sm:$0xff]
      %v1262 = vld [vmem:[#allocation5 + $0x28] sm:$0xff]
      %v1263 = vld [vmem:[#allocation5 + $0x30] sm:$0xff]
      %v1264 = vld [vmem:[#allocation5 + $0x38] sm:$0xff]
      %v1265 = vld [vmem:[#allocation5 + $0x40] sm:$0xff]
      %v1266 = vld [vmem:[#allocation5 + $0x48] sm:$0xff]
      %v1267 = vld [vmem:[#allocation5 + $0x50] sm:$0xff]
      %v1268 = vld [vmem:[#allocation5 + $0x58] sm:$0xff]
      %v1269 = vld [vmem:[#allocation5 + $0x60] sm:$0xff]
      %v1270 = vld [vmem:[#allocation5 + $0x68] sm:$0xff]
      %v1271 = vld [vmem:[#allocation5 + $0x70] sm:$0xff]
      %v1272 = vld [vmem:[#allocation5 + $0x78] sm:$0xff]
      %1274 = vset.pattern.permute.xlu0 0
      %1275 = vperm.xlu0 %1274, %v1001
      %v1276 = vpop.permute.xlu0 %1275
      %1279 = vset.pattern.permute.xlu0 0
      %1280 = vperm.xlu0 %1279, %v1003
      %v1281 = vpop.permute.xlu0 %1280
      %1284 = vset.pattern.permute.xlu0 0
      %1285 = vperm.xlu0 %1284, %v1005
      %v1286 = vpop.permute.xlu0 %1285
      %1289 = vset.pattern.permute.xlu0 0
      %1290 = vperm.xlu0 %1289, %v1007
      %v1291 = vpop.permute.xlu0 %1290
      %1294 = vset.pattern.permute.xlu0 0
      %1295 = vperm.xlu0 %1294, %v1009
      %v1296 = vpop.permute.xlu0 %1295
      %1299 = vset.pattern.permute.xlu0 0
      %1300 = vperm.xlu0 %1299, %v1011
      %v1301 = vpop.permute.xlu0 %1300
      %1304 = vset.pattern.permute.xlu0 0
      %1305 = vperm.xlu0 %1304, %v1013
      %v1306 = vpop.permute.xlu0 %1305
      %1309 = vset.pattern.permute.xlu0 0
      %1310 = vperm.xlu0 %1309, %v1015
      %v1311 = vpop.permute.xlu0 %1310
      %1314 = vset.pattern.permute.xlu0 0
      %1315 = vperm.xlu0 %1314, %v1017
      %v1316 = vpop.permute.xlu0 %1315
      %1319 = vset.pattern.permute.xlu0 0
      %1320 = vperm.xlu0 %1319, %v1019
      %v1321 = vpop.permute.xlu0 %1320
      %1324 = vset.pattern.permute.xlu0 0
      %1325 = vperm.xlu0 %1324, %v1021
      %v1326 = vpop.permute.xlu0 %1325
      %1329 = vset.pattern.permute.xlu0 0
      %1330 = vperm.xlu0 %1329, %v1023
      %v1331 = vpop.permute.xlu0 %1330
      %1334 = vset.pattern.permute.xlu0 0
      %1335 = vperm.xlu0 %1334, %v1025
      %v1336 = vpop.permute.xlu0 %1335
      %1339 = vset.pattern.permute.xlu0 0
      %1340 = vperm.xlu0 %1339, %v1027
      %v1341 = vpop.permute.xlu0 %1340
      %1344 = vset.pattern.permute.xlu0 0
      %1345 = vperm.xlu0 %1344, %v1029
      %v1346 = vpop.permute.xlu0 %1345
      %1349 = vset.pattern.permute.xlu0 0
      %1350 = vperm.xlu0 %1349, %v1031
      %v1351 = vpop.permute.xlu0 %1350
      %v1353 = vmul.f32 %v1276, %v1257
      %v1354 = vmul.f32 %v1281, %v1258
      %v1355 = vmul.f32 %v1286, %v1259
      %v1356 = vmul.f32 %v1291, %v1260
      %v1357 = vmul.f32 %v1296, %v1261
      %v1358 = vmul.f32 %v1301, %v1262
      %v1359 = vmul.f32 %v1306, %v1263
      %v1360 = vmul.f32 %v1311, %v1264
      %v1361 = vmul.f32 %v1316, %v1265
      %v1362 = vmul.f32 %v1321, %v1266
      %v1363 = vmul.f32 %v1326, %v1267
      %v1364 = vmul.f32 %v1331, %v1268
      %v1365 = vmul.f32 %v1336, %v1269
      %v1366 = vmul.f32 %v1341, %v1270
      %v1367 = vmul.f32 %v1346, %v1271
      %v1368 = vmul.f32 %v1351, %v1272
      %v1369 = vpack.c.bf16 %v1131, %v1129
      %v1370 = vpack.c.bf16 %v1135, %v1133
      %v1371 = vpack.c.bf16 %v1139, %v1137
      %v1372 = vpack.c.bf16 %v1143, %v1141
      %v1373 = vpack.c.bf16 %v1147, %v1145
      %v1374 = vpack.c.bf16 %v1151, %v1149
      %v1375 = vpack.c.bf16 %v1155, %v1153
      %v1376 = vpack.c.bf16 %v1159, %v1157
      %v1377 = vld [vmem:[%s412] sm:$0xf]
      %v1378 = vld [vmem:[%s412 + $0x4] sm:$0xf]
      %v1379 = vld [vmem:[%s412 + $0x8] sm:$0xf]
      %v1380 = vld [vmem:[%s412 + $0xc] sm:$0xf]
      %v1381 = vld [vmem:[%s412 + $0x10] sm:$0xf]
      %v1382 = vld [vmem:[%s412 + $0x14] sm:$0xf]
      %v1383 = vld [vmem:[%s412 + $0x18] sm:$0xf]
      %v1384 = vld [vmem:[%s412 + $0x1c] sm:$0xf]
      %v1385 = vld [vmem:[%s412 + $0x20] sm:$0xf]
      %v1386 = vld [vmem:[%s412 + $0x24] sm:$0xf]
      %v1387 = vld [vmem:[%s412 + $0x28] sm:$0xf]
      %v1388 = vld [vmem:[%s412 + $0x2c] sm:$0xf]
      %v1389 = vld [vmem:[%s412 + $0x30] sm:$0xf]
      %v1390 = vld [vmem:[%s412 + $0x34] sm:$0xf]
      %v1391 = vld [vmem:[%s412 + $0x38] sm:$0xf]
      %v1392 = vld [vmem:[%s412 + $0x3c] sm:$0xf]
      %v1409 = vunpack.c.l.b16 %v1377
      %v1410 = vunpack.c.l.b16 %v1378
      %v1411 = vunpack.c.l.b16 %v1379
      %v1412 = vunpack.c.l.b16 %v1380
      %v1413 = vunpack.c.l.b16 %v1381
      %v1414 = vunpack.c.l.b16 %v1382
      %v1415 = vunpack.c.l.b16 %v1383
      %v1416 = vunpack.c.l.b16 %v1384
      %v1417 = vunpack.c.l.b16 %v1385
      %v1418 = vunpack.c.l.b16 %v1386
      %v1419 = vunpack.c.l.b16 %v1387
      %v1420 = vunpack.c.l.b16 %v1388
      %v1421 = vunpack.c.l.b16 %v1389
      %v1422 = vunpack.c.l.b16 %v1390
      %v1423 = vunpack.c.l.b16 %v1391
      %v1424 = vunpack.c.l.b16 %v1392
      %v1425 = vpack.c.b16 %v1410, %v1409
      %v1426 = vpack.c.b16 %v1412, %v1411
      %v1427 = vpack.c.b16 %v1414, %v1413
      %v1428 = vpack.c.b16 %v1416, %v1415
      %v1429 = vpack.c.b16 %v1418, %v1417
      %v1430 = vpack.c.b16 %v1420, %v1419
      %v1431 = vpack.c.b16 %v1422, %v1421
      %v1432 = vpack.c.b16 %v1424, %v1423
      %1441 = vmatprep.subr.bf16.mxu0 0
      %1442 = vmatpush1.bf16.msra.mxu0 %v1425
      %1443 = vmatprep.subr.bf16.mxu0 0
      %1444 = vmatpush1.bf16.msra.mxu0 %v1426
      %1445 = vmatprep.subr.bf16.mxu0 0
      %1446 = vmatpush1.bf16.msra.mxu0 %v1427
      %1447 = vmatprep.subr.bf16.mxu0 0
      %1448 = vmatpush1.bf16.msra.mxu0 %v1428
      %1449 = vmatprep.subr.bf16.mxu0 0
      %1450 = vmatpush1.bf16.msra.mxu0 %v1429
      %1451 = vmatprep.subr.bf16.mxu0 0
      %1452 = vmatpush1.bf16.msra.mxu0 %v1430
      %1453 = vmatprep.subr.bf16.mxu0 0
      %1454 = vmatpush1.bf16.msra.mxu0 %v1431
      %1455 = vmatprep.subr.bf16.mxu0 0
      %1456 = vmatpush1.bf16.msra.mxu0 %v1432
      %1457 = vmatprep.subr.bf16.mxu0 0
      %1458 = vmatpush1.bf16.msra.mxu0 0
      %1459 = vmatprep.subr.bf16.mxu0 0
      %1460 = vmatpush1.bf16.msra.mxu0 0
      %1461 = vmatprep.subr.bf16.mxu0 0
      %1462 = vmatpush1.bf16.msra.mxu0 0
      %1463 = vmatprep.subr.bf16.mxu0 0
      %1464 = vmatpush1.bf16.msra.mxu0 0
      %1465 = vmatprep.subr.bf16.mxu0 0
      %1466 = vmatpush1.bf16.msra.mxu0 0
      %1467 = vmatprep.subr.bf16.mxu0 0
      %1468 = vmatpush1.bf16.msra.mxu0 0
      %1469 = vmatprep.subr.bf16.mxu0 0
      %1470 = vmatpush1.bf16.msra.mxu0 0
      %1471 = vmatprep.subr.bf16.mxu0 0
      %1472 = vmatpush1.bf16.msra.mxu0 0
      %1473 = vmatprep.mubr.bf16.mxu0 0
      %1474 = vmatmul.mubr.bf16.gmra.mrb[0].mxu0 %v1369
      %v1475 = vpop.f32.mrb[0].mxu0
      %v1476 = vadd.f32 0.0, %v1475
      %v1477 = vpop.f32.mrb[0].mxu0
      %v1478 = vpop.f32.mrb[0].mxu0
      %v1479 = vadd.f32 0.0, %v1478
      %v1480 = vpop.f32.mrb[0].mxu0
      %1481 = vmatprep.mubr.bf16.mxu0 0
      %1482 = vmatmul.mubr.bf16.gmra.mrb[0].mxu0 %v1370
      %v1483 = vpop.f32.mrb[0].mxu0
      %v1484 = vadd.f32 0.0, %v1483
      %v1485 = vpop.f32.mrb[0].mxu0
      %v1486 = vpop.f32.mrb[0].mxu0
      %v1487 = vadd.f32 0.0, %v1486
      %v1488 = vpop.f32.mrb[0].mxu0
      %1489 = vmatprep.mubr.bf16.mxu0 0
      %1490 = vmatmul.mubr.bf16.gmra.mrb[0].mxu0 %v1371
      %v1491 = vpop.f32.mrb[0].mxu0
      %v1492 = vadd.f32 0.0, %v1491
      %v1493 = vpop.f32.mrb[0].mxu0
      %v1494 = vpop.f32.mrb[0].mxu0
      %v1495 = vadd.f32 0.0, %v1494
      %v1496 = vpop.f32.mrb[0].mxu0
      %1497 = vmatprep.mubr.bf16.mxu0 0
      %1498 = vmatmul.mubr.bf16.gmra.mrb[0].mxu0 %v1372
      %v1499 = vpop.f32.mrb[0].mxu0
      %v1500 = vadd.f32 0.0, %v1499
      %v1501 = vpop.f32.mrb[0].mxu0
      %v1502 = vpop.f32.mrb[0].mxu0
      %v1503 = vadd.f32 0.0, %v1502
      %v1504 = vpop.f32.mrb[0].mxu0
      %1505 = vmatprep.mubr.bf16.mxu0 0
      %1506 = vmatmul.mubr.bf16.gmra.mrb[0].mxu0 %v1373
      %v1507 = vpop.f32.mrb[0].mxu0
      %v1508 = vadd.f32 0.0, %v1507
      %v1509 = vpop.f32.mrb[0].mxu0
      %v1510 = vpop.f32.mrb[0].mxu0
      %v1511 = vadd.f32 0.0, %v1510
      %v1512 = vpop.f32.mrb[0].mxu0
      %1513 = vmatprep.mubr.bf16.mxu0 0
      %1514 = vmatmul.mubr.bf16.gmra.mrb[0].mxu0 %v1374
      %v1515 = vpop.f32.mrb[0].mxu0
      %v1516 = vadd.f32 0.0, %v1515
      %v1517 = vpop.f32.mrb[0].mxu0
      %v1518 = vpop.f32.mrb[0].mxu0
      %v1519 = vadd.f32 0.0, %v1518
      %v1520 = vpop.f32.mrb[0].mxu0
      %1521 = vmatprep.mubr.bf16.mxu0 0
      %1522 = vmatmul.mubr.bf16.gmra.mrb[0].mxu0 %v1375
      %v1523 = vpop.f32.mrb[0].mxu0
      %v1524 = vadd.f32 0.0, %v1523
      %v1525 = vpop.f32.mrb[0].mxu0
      %v1526 = vpop.f32.mrb[0].mxu0
      %v1527 = vadd.f32 0.0, %v1526
      %v1528 = vpop.f32.mrb[0].mxu0
      %1529 = vmatprep.mubr.bf16.mxu0 0
      %1530 = vmatmul.mubr.bf16.gmra.mrb[0].mxu0 %v1376
      %v1531 = vpop.f32.mrb[0].mxu0
      %v1532 = vadd.f32 0.0, %v1531
      %v1533 = vpop.f32.mrb[0].mxu0
      %v1534 = vpop.f32.mrb[0].mxu0
      %v1535 = vadd.f32 0.0, %v1534
      %v1536 = vpop.f32.mrb[0].mxu0
      %1537 = vdwg.mxu0
      %v1538 = vadd.f32 %v1353, %v1476
      %v1539 = vadd.f32 %v1354, %v1479
      %v1540 = vadd.f32 %v1355, %v1484
      %v1541 = vadd.f32 %v1356, %v1487
      %v1542 = vadd.f32 %v1357, %v1492
      %v1543 = vadd.f32 %v1358, %v1495
      %v1544 = vadd.f32 %v1359, %v1500
      %v1545 = vadd.f32 %v1360, %v1503
      %v1546 = vadd.f32 %v1361, %v1508
      %v1547 = vadd.f32 %v1362, %v1511
      %v1548 = vadd.f32 %v1363, %v1516
      %v1549 = vadd.f32 %v1364, %v1519
      %v1550 = vadd.f32 %v1365, %v1524
      %v1551 = vadd.f32 %v1366, %v1527
      %v1552 = vadd.f32 %v1367, %v1532
      %v1553 = vadd.f32 %v1368, %v1535
      %1554 = vst.msk [vmem:[#allocation5] sm:$0xff] %vm752, %v1538
      %1555 = vst.msk [vmem:[#allocation5 + $0x8] sm:$0xff] %vm752, %v1539
      %1556 = vst.msk [vmem:[#allocation5 + $0x10] sm:$0xff] %vm752, %v1540
      %1557 = vst.msk [vmem:[#allocation5 + $0x18] sm:$0xff] %vm752, %v1541
      %1558 = vst.msk [vmem:[#allocation5 + $0x20] sm:$0xff] %vm752, %v1542
      %1559 = vst.msk [vmem:[#allocation5 + $0x28] sm:$0xff] %vm752, %v1543
      %1560 = vst.msk [vmem:[#allocation5 + $0x30] sm:$0xff] %vm752, %v1544
      %1561 = vst.msk [vmem:[#allocation5 + $0x38] sm:$0xff] %vm752, %v1545
      %1562 = vst.msk [vmem:[#allocation5 + $0x40] sm:$0xff] %vm752, %v1546
      %1563 = vst.msk [vmem:[#allocation5 + $0x48] sm:$0xff] %vm752, %v1547
      %1564 = vst.msk [vmem:[#allocation5 + $0x50] sm:$0xff] %vm752, %v1548
      %1565 = vst.msk [vmem:[#allocation5 + $0x58] sm:$0xff] %vm752, %v1549
      %1566 = vst.msk [vmem:[#allocation5 + $0x60] sm:$0xff] %vm752, %v1550
      %1567 = vst.msk [vmem:[#allocation5 + $0x68] sm:$0xff] %vm752, %v1551
      %1568 = vst.msk [vmem:[#allocation5 + $0x70] sm:$0xff] %vm752, %v1552
      %1569 = vst.msk [vmem:[#allocation5 + $0x78] sm:$0xff] %vm752, %v1553
      %1570 = vst.msk [vmem:[#allocation3] sm:$0xff] %vm1240, %v968
      %1571 = vst.msk [vmem:[#allocation3 + $0x8] sm:$0xff] %vm1240, %v969
      %1572 = vst.msk [vmem:[#allocation3 + $0x10] sm:$0xff] %vm1240, %v970
      %1573 = vst.msk [vmem:[#allocation3 + $0x18] sm:$0xff] %vm1240, %v971
      %1574 = vst.msk [vmem:[#allocation3 + $0x20] sm:$0xff] %vm1240, %v972
      %1575 = vst.msk [vmem:[#allocation3 + $0x28] sm:$0xff] %vm1240, %v973
      %1576 = vst.msk [vmem:[#allocation3 + $0x30] sm:$0xff] %vm1240, %v974
      %1577 = vst.msk [vmem:[#allocation3 + $0x38] sm:$0xff] %vm1240, %v975
      %1578 = vst.msk [vmem:[#allocation3 + $0x40] sm:$0xff] %vm1240, %v976
      %1579 = vst.msk [vmem:[#allocation3 + $0x48] sm:$0xff] %vm1240, %v977
      %1580 = vst.msk [vmem:[#allocation3 + $0x50] sm:$0xff] %vm1240, %v978
      %1581 = vst.msk [vmem:[#allocation3 + $0x58] sm:$0xff] %vm1240, %v979
      %1582 = vst.msk [vmem:[#allocation3 + $0x60] sm:$0xff] %vm1240, %v980
      %1583 = vst.msk [vmem:[#allocation3 + $0x68] sm:$0xff] %vm1240, %v981
      %1584 = vst.msk [vmem:[#allocation3 + $0x70] sm:$0xff] %vm1240, %v982
      %1585 = vst.msk [vmem:[#allocation3 + $0x78] sm:$0xff] %vm1240, %v983
      %p1586 = scmp.eq.s32.totalorder %s26, 4
      // Predicated region
      $region57: #{nonlocal_psp_correlation.5} parent=51 // pred_check
        %p1587 = pneg %p1586
      $region58: #{nonlocal_psp_correlation.5} parent=51 // pred_check_branch
        %1589 = sbr.rel (%p1587) target = $region60
      $region59: #{nonlocal_psp_correlation.5} parent=51 // pred_region
        %v1590 = vld [vmem:[#allocation4] sm:$0xff]
        %v1591 = vld [vmem:[#allocation4 + $0x8] sm:$0xff]
        %v1592 = vld [vmem:[#allocation4 + $0x10] sm:$0xff]
        %v1593 = vld [vmem:[#allocation4 + $0x18] sm:$0xff]
        %v1594 = vld [vmem:[#allocation4 + $0x20] sm:$0xff]
        %v1595 = vld [vmem:[#allocation4 + $0x28] sm:$0xff]
        %v1596 = vld [vmem:[#allocation4 + $0x30] sm:$0xff]
        %v1597 = vld [vmem:[#allocation4 + $0x38] sm:$0xff]
        %v1598 = vld [vmem:[#allocation4 + $0x40] sm:$0xff]
        %v1599 = vld [vmem:[#allocation4 + $0x48] sm:$0xff]
        %v1600 = vld [vmem:[#allocation4 + $0x50] sm:$0xff]
        %v1601 = vld [vmem:[#allocation4 + $0x58] sm:$0xff]
        %v1602 = vld [vmem:[#allocation4 + $0x60] sm:$0xff]
        %v1603 = vld [vmem:[#allocation4 + $0x68] sm:$0xff]
        %v1604 = vld [vmem:[#allocation4 + $0x70] sm:$0xff]
        %v1605 = vld [vmem:[#allocation4 + $0x78] sm:$0xff]
        %v1606 = vrcp.pop %v1590
        %v1607 = vrcp.pop %v1591
        %v1608 = vrcp.pop %v1592
        %v1609 = vrcp.pop %v1593
        %v1610 = vrcp.pop %v1594
        %v1611 = vrcp.pop %v1595
        %v1612 = vrcp.pop %v1596
        %v1613 = vrcp.pop %v1597
        %v1614 = vrcp.pop %v1598
        %v1615 = vrcp.pop %v1599
        %v1616 = vrcp.pop %v1600
        %v1617 = vrcp.pop %v1601
        %v1618 = vrcp.pop %v1602
        %v1619 = vrcp.pop %v1603
        %v1620 = vrcp.pop %v1604
        %v1621 = vrcp.pop %v1605
        %v1622 = vld [vmem:[#allocation5] sm:$0xff]
        %v1623 = vld [vmem:[#allocation5 + $0x8] sm:$0xff]
        %v1624 = vld [vmem:[#allocation5 + $0x10] sm:$0xff]
        %v1625 = vld [vmem:[#allocation5 + $0x18] sm:$0xff]
        %v1626 = vld [vmem:[#allocation5 + $0x20] sm:$0xff]
        %v1627 = vld [vmem:[#allocation5 + $0x28] sm:$0xff]
        %v1628 = vld [vmem:[#allocation5 + $0x30] sm:$0xff]
        %v1629 = vld [vmem:[#allocation5 + $0x38] sm:$0xff]
        %v1630 = vld [vmem:[#allocation5 + $0x40] sm:$0xff]
        %v1631 = vld [vmem:[#allocation5 + $0x48] sm:$0xff]
        %v1632 = vld [vmem:[#allocation5 + $0x50] sm:$0xff]
        %v1633 = vld [vmem:[#allocation5 + $0x58] sm:$0xff]
        %v1634 = vld [vmem:[#allocation5 + $0x60] sm:$0xff]
        %v1635 = vld [vmem:[#allocation5 + $0x68] sm:$0xff]
        %v1636 = vld [vmem:[#allocation5 + $0x70] sm:$0xff]
        %v1637 = vld [vmem:[#allocation5 + $0x78] sm:$0xff]
        %1639 = vset.pattern.permute.xlu0 0
        %1640 = vperm.xlu0 %1639, %v1606
        %v1641 = vpop.permute.xlu0 %1640
        %1644 = vset.pattern.permute.xlu0 0
        %1645 = vperm.xlu0 %1644, %v1607
        %v1646 = vpop.permute.xlu0 %1645
        %1649 = vset.pattern.permute.xlu0 0
        %1650 = vperm.xlu0 %1649, %v1608
        %v1651 = vpop.permute.xlu0 %1650
        %1654 = vset.pattern.permute.xlu0 0
        %1655 = vperm.xlu0 %1654, %v1609
        %v1656 = vpop.permute.xlu0 %1655
        %1659 = vset.pattern.permute.xlu0 0
        %1660 = vperm.xlu0 %1659, %v1610
        %v1661 = vpop.permute.xlu0 %1660
        %1664 = vset.pattern.permute.xlu0 0
        %1665 = vperm.xlu0 %1664, %v1611
        %v1666 = vpop.permute.xlu0 %1665
        %1669 = vset.pattern.permute.xlu0 0
        %1670 = vperm.xlu0 %1669, %v1612
        %v1671 = vpop.permute.xlu0 %1670
        %1674 = vset.pattern.permute.xlu0 0
        %1675 = vperm.xlu0 %1674, %v1613
        %v1676 = vpop.permute.xlu0 %1675
        %1679 = vset.pattern.permute.xlu0 0
        %1680 = vperm.xlu0 %1679, %v1614
        %v1681 = vpop.permute.xlu0 %1680
        %1684 = vset.pattern.permute.xlu0 0
        %1685 = vperm.xlu0 %1684, %v1615
        %v1686 = vpop.permute.xlu0 %1685
        %1689 = vset.pattern.permute.xlu0 0
        %1690 = vperm.xlu0 %1689, %v1616
        %v1691 = vpop.permute.xlu0 %1690
        %1694 = vset.pattern.permute.xlu0 0
        %1695 = vperm.xlu0 %1694, %v1617
        %v1696 = vpop.permute.xlu0 %1695
        %1699 = vset.pattern.permute.xlu0 0
        %1700 = vperm.xlu0 %1699, %v1618
        %v1701 = vpop.permute.xlu0 %1700
        %1704 = vset.pattern.permute.xlu0 0
        %1705 = vperm.xlu0 %1704, %v1619
        %v1706 = vpop.permute.xlu0 %1705
        %1709 = vset.pattern.permute.xlu0 0
        %1710 = vperm.xlu0 %1709, %v1620
        %v1711 = vpop.permute.xlu0 %1710
        %1714 = vset.pattern.permute.xlu0 0
        %1715 = vperm.xlu0 %1714, %v1621
        %v1716 = vpop.permute.xlu0 %1715
        %v1718 = vmul.f32 %v1622, %v1641
        %v1719 = vmul.f32 %v1623, %v1646
        %v1720 = vmul.f32 %v1624, %v1651
        %v1721 = vmul.f32 %v1625, %v1656
        %v1722 = vmul.f32 %v1626, %v1661
        %v1723 = vmul.f32 %v1627, %v1666
        %v1724 = vmul.f32 %v1628, %v1671
        %v1725 = vmul.f32 %v1629, %v1676
        %v1726 = vmul.f32 %v1630, %v1681
        %v1727 = vmul.f32 %v1631, %v1686
        %v1728 = vmul.f32 %v1632, %v1691
        %v1729 = vmul.f32 %v1633, %v1696
        %v1730 = vmul.f32 %v1634, %v1701
        %v1731 = vmul.f32 %v1635, %v1706
        %v1732 = vmul.f32 %v1636, %v1711
        %v1733 = vmul.f32 %v1637, %v1716
        %v1734 = vpack.c.bf16 %v1719, %v1718
        %v1735 = vpack.c.bf16 %v1721, %v1720
        %v1736 = vpack.c.bf16 %v1723, %v1722
        %v1737 = vpack.c.bf16 %v1725, %v1724
        %v1738 = vpack.c.bf16 %v1727, %v1726
        %v1739 = vpack.c.bf16 %v1729, %v1728
        %v1740 = vpack.c.bf16 %v1731, %v1730
        %v1741 = vpack.c.bf16 %v1733, %v1732
        %v1742 = vld [vmem:[%s5] sm:$0xf]
        %v1743 = vld [vmem:[%s392] sm:$0xf]
        %v1744 = vld [vmem:[%s392 + $0x4] sm:$0xf]
        %v1745 = vld [vmem:[%s392 + $0x8] sm:$0xf]
        %v1746 = vld [vmem:[%s392 + $0xc] sm:$0xf]
        %v1747 = vld [vmem:[%s392 + $0x10] sm:$0xf]
        %v1748 = vld [vmem:[%s392 + $0x14] sm:$0xf]
        %v1749 = vld [vmem:[%s392 + $0x18] sm:$0xf]
        %v1750 = vld [vmem:[%s392 + $0x1c] sm:$0xf]
        %v1751 = vld [vmem:[%s392 + $0x20] sm:$0xf]
        %v1752 = vld [vmem:[%s392 + $0x24] sm:$0xf]
        %v1753 = vld [vmem:[%s392 + $0x28] sm:$0xf]
        %v1754 = vld [vmem:[%s392 + $0x2c] sm:$0xf]
        %v1755 = vld [vmem:[%s392 + $0x30] sm:$0xf]
        %v1756 = vld [vmem:[%s392 + $0x34] sm:$0xf]
        %v1757 = vld [vmem:[%s392 + $0x38] sm:$0xf]
        %v1758 = vld [vmem:[%s392 + $0x3c] sm:$0xf]
        %v1759 = vld [vmem:[%s6] sm:$0xf]
        %v1760 = vld [vmem:[%s6 + $0x4] sm:$0xf]
        %v1777 = vunpack.c.l.b16 %v1743
        %v1778 = vunpack.c.l.b16 %v1744
        %v1779 = vunpack.c.l.b16 %v1745
        %v1780 = vunpack.c.l.b16 %v1746
        %v1781 = vunpack.c.l.b16 %v1747
        %v1782 = vunpack.c.l.b16 %v1748
        %v1783 = vunpack.c.l.b16 %v1749
        %v1784 = vunpack.c.l.b16 %v1750
        %v1785 = vunpack.c.l.b16 %v1751
        %v1786 = vunpack.c.l.b16 %v1752
        %v1787 = vunpack.c.l.b16 %v1753
        %v1788 = vunpack.c.l.b16 %v1754
        %v1789 = vunpack.c.l.b16 %v1755
        %v1790 = vunpack.c.l.b16 %v1756
        %v1791 = vunpack.c.l.b16 %v1757
        %v1792 = vunpack.c.l.b16 %v1758
        %v1793 = vpack.c.b16 %v1778, %v1777
        %v1794 = vpack.c.b16 %v1780, %v1779
        %v1795 = vpack.c.b16 %v1782, %v1781
        %v1796 = vpack.c.b16 %v1784, %v1783
        %v1797 = vpack.c.b16 %v1786, %v1785
        %v1798 = vpack.c.b16 %v1788, %v1787
        %v1799 = vpack.c.b16 %v1790, %v1789
        %v1800 = vpack.c.b16 %v1792, %v1791
        %v1803 = vunpack.c.l.b16 %v1759
        %v1804 = vunpack.c.l.b16 %v1760
        %v1805 = vpack.c.b16 %v1804, %v1803
        %vm1807 = vcmask 130048
        %v1809 = vsel %vm1807, %v1793, 0
        %v1812 = vsel %vm1807, %v1794, 0
        %v1815 = vsel %vm1807, %v1795, 0
        %v1818 = vsel %vm1807, %v1796, 0
        %v1821 = vsel %vm1807, %v1797, 0
        %v1824 = vsel %vm1807, %v1798, 0
        %v1827 = vsel %vm1807, %v1799, 0
        %v1830 = vsel %vm1807, %v1800, 0
        %1832 = vmatprep.subr.bf16.mxu0 0
        %1833 = vmatpush1.bf16.msra.mxu0 %v1805
        %1834 = vmatprep.subr.bf16.mxu0 0
        %1835 = vmatpush1.bf16.msra.mxu0 0
        %1836 = vmatprep.subr.bf16.mxu0 0
        %1837 = vmatpush1.bf16.msra.mxu0 0
        %1838 = vmatprep.subr.bf16.mxu0 0
        %1839 = vmatpush1.bf16.msra.mxu0 0
        %1840 = vmatprep.subr.bf16.mxu0 0
        %1841 = vmatpush1.bf16.msra.mxu0 0
        %1842 = vmatprep.subr.bf16.mxu0 0
        %1843 = vmatpush1.bf16.msra.mxu0 0
        %1844 = vmatprep.subr.bf16.mxu0 0
        %1845 = vmatpush1.bf16.msra.mxu0 0
        %1846 = vmatprep.subr.bf16.mxu0 0
        %1847 = vmatpush1.bf16.msra.mxu0 0
        %1848 = vmatprep.subr.bf16.mxu0 0
        %1849 = vmatpush1.bf16.msra.mxu0 0
        %1850 = vmatprep.subr.bf16.mxu0 0
        %1851 = vmatpush1.bf16.msra.mxu0 0
        %1852 = vmatprep.subr.bf16.mxu0 0
        %1853 = vmatpush1.bf16.msra.mxu0 0
        %1854 = vmatprep.subr.bf16.mxu0 0
        %1855 = vmatpush1.bf16.msra.mxu0 0
        %1856 = vmatprep.subr.bf16.mxu0 0
        %1857 = vmatpush1.bf16.msra.mxu0 0
        %1858 = vmatprep.subr.bf16.mxu0 0
        %1859 = vmatpush1.bf16.msra.mxu0 0
        %1860 = vmatprep.subr.bf16.mxu0 0
        %1861 = vmatpush1.bf16.msra.mxu0 0
        %1862 = vmatprep.subr.bf16.mxu0 0
        %1863 = vmatpush1.bf16.msra.mxu0 0
        %1864 = vmatprep.mubr.bf16.mxu0 0
        %1865 = vmatmul.mubr.bf16.gmra.mrb[0].mxu0 %v1809
        %v1866 = vpop.f32.mrb[0].mxu0
        %v1867 = vadd.f32 0.0, %v1866
        %v1868 = vpop.f32.mrb[0].mxu0
        %v1869 = vpop.f32.mrb[0].mxu0
        %v1870 = vadd.f32 0.0, %v1869
        %v1871 = vpop.f32.mrb[0].mxu0
        %1872 = vmatprep.mubr.bf16.mxu0 0
        %1873 = vmatmul.mubr.bf16.gmra.mrb[0].mxu0 %v1812
        %v1874 = vpop.f32.mrb[0].mxu0
        %v1875 = vadd.f32 0.0, %v1874
        %v1876 = vpop.f32.mrb[0].mxu0
        %v1877 = vpop.f32.mrb[0].mxu0
        %v1878 = vadd.f32 0.0, %v1877
        %v1879 = vpop.f32.mrb[0].mxu0
        %1880 = vmatprep.mubr.bf16.mxu0 0
        %1881 = vmatmul.mubr.bf16.gmra.mrb[0].mxu0 %v1815
        %v1882 = vpop.f32.mrb[0].mxu0
        %v1883 = vadd.f32 0.0, %v1882
        %v1884 = vpop.f32.mrb[0].mxu0
        %v1885 = vpop.f32.mrb[0].mxu0
        %v1886 = vadd.f32 0.0, %v1885
        %v1887 = vpop.f32.mrb[0].mxu0
        %1888 = vmatprep.mubr.bf16.mxu0 0
        %1889 = vmatmul.mubr.bf16.gmra.mrb[0].mxu0 %v1818
        %v1890 = vpop.f32.mrb[0].mxu0
        %v1891 = vadd.f32 0.0, %v1890
        %v1892 = vpop.f32.mrb[0].mxu0
        %v1893 = vpop.f32.mrb[0].mxu0
        %v1894 = vadd.f32 0.0, %v1893
        %v1895 = vpop.f32.mrb[0].mxu0
        %1896 = vmatprep.mubr.bf16.mxu0 0
        %1897 = vmatmul.mubr.bf16.gmra.mrb[0].mxu0 %v1821
        %v1898 = vpop.f32.mrb[0].mxu0
        %v1899 = vadd.f32 0.0, %v1898
        %v1900 = vpop.f32.mrb[0].mxu0
        %v1901 = vpop.f32.mrb[0].mxu0
        %v1902 = vadd.f32 0.0, %v1901
        %v1903 = vpop.f32.mrb[0].mxu0
        %1904 = vmatprep.mubr.bf16.mxu0 0
        %1905 = vmatmul.mubr.bf16.gmra.mrb[0].mxu0 %v1824
        %v1906 = vpop.f32.mrb[0].mxu0
        %v1907 = vadd.f32 0.0, %v1906
        %v1908 = vpop.f32.mrb[0].mxu0
        %v1909 = vpop.f32.mrb[0].mxu0
        %v1910 = vadd.f32 0.0, %v1909
        %v1911 = vpop.f32.mrb[0].mxu0
        %1912 = vmatprep.mubr.bf16.mxu0 0
        %1913 = vmatmul.mubr.bf16.gmra.mrb[0].mxu0 %v1827
        %v1914 = vpop.f32.mrb[0].mxu0
        %v1915 = vadd.f32 0.0, %v1914
        %v1916 = vpop.f32.mrb[0].mxu0
        %v1917 = vpop.f32.mrb[0].mxu0
        %v1918 = vadd.f32 0.0, %v1917
        %v1919 = vpop.f32.mrb[0].mxu0
        %1920 = vmatprep.mubr.bf16.mxu0 0
        %1921 = vmatmul.mubr.bf16.gmra.mrb[0].mxu0 %v1830
        %v1922 = vpop.f32.mrb[0].mxu0
        %v1923 = vadd.f32 0.0, %v1922
        %v1924 = vpop.f32.mrb[0].mxu0
        %v1925 = vpop.f32.mrb[0].mxu0
        %v1926 = vadd.f32 0.0, %v1925
        %v1927 = vpop.f32.mrb[0].mxu0
        %1928 = vdwg.mxu0
        %v1930 = vsel %vm752, %v1734, 0
        %v1933 = vsel %vm752, %v1735, 0
        %v1936 = vsel %vm752, %v1736, 0
        %v1939 = vsel %vm752, %v1737, 0
        %v1942 = vsel %vm752, %v1738, 0
        %v1945 = vsel %vm752, %v1739, 0
        %v1948 = vsel %vm752, %v1740, 0
        %v1951 = vsel %vm752, %v1741, 0
        %vm1953 = vcmask 1043456
        %v1955 = vsel %vm1953, %v1742, 0
        %1957 = vmatprep.subr.bf16.mxu0 0
        %1958 = vmatpush1.bf16.msra.mxu0 %v1955
        %1959 = vmatprep.subr.bf16.mxu0 0
        %1960 = vmatpush1.bf16.msra.mxu0 0
        %1961 = vmatprep.subr.bf16.mxu0 0
        %1962 = vmatpush1.bf16.msra.mxu0 0
        %1963 = vmatprep.subr.bf16.mxu0 0
        %1964 = vmatpush1.bf16.msra.mxu0 0
        %1965 = vmatprep.subr.bf16.mxu0 0
        %1966 = vmatpush1.bf16.msra.mxu0 0
        %1967 = vmatprep.subr.bf16.mxu0 0
        %1968 = vmatpush1.bf16.msra.mxu0 0
        %1969 = vmatprep.subr.bf16.mxu0 0
        %1970 = vmatpush1.bf16.msra.mxu0 0
        %1971 = vmatprep.subr.bf16.mxu0 0
        %1972 = vmatpush1.bf16.msra.mxu0 0
        %1973 = vmatprep.subr.bf16.mxu0 0
        %1974 = vmatpush1.bf16.msra.mxu0 0
        %1975 = vmatprep.subr.bf16.mxu0 0
        %1976 = vmatpush1.bf16.msra.mxu0 0
        %1977 = vmatprep.subr.bf16.mxu0 0
        %1978 = vmatpush1.bf16.msra.mxu0 0
        %1979 = vmatprep.subr.bf16.mxu0 0
        %1980 = vmatpush1.bf16.msra.mxu0 0
        %1981 = vmatprep.subr.bf16.mxu0 0
        %1982 = vmatpush1.bf16.msra.mxu0 0
        %1983 = vmatprep.subr.bf16.mxu0 0
        %1984 = vmatpush1.bf16.msra.mxu0 0
        %1985 = vmatprep.subr.bf16.mxu0 0
        %1986 = vmatpush1.bf16.msra.mxu0 0
        %1987 = vmatprep.subr.bf16.mxu0 0
        %1988 = vmatpush1.bf16.msra.mxu0 0
        %1989 = vmatprep.mubr.bf16.mxu0 0
        %1990 = vmatmul.mubr.bf16.gmra.mrb[0].mxu0 %v1930
        %v1991 = vpop.f32.mrb[0].mxu0
        %v1992 = vadd.f32 %v1867, %v1991
        %v1993 = vpop.f32.mrb[0].mxu0
        %v1994 = vpop.f32.mrb[0].mxu0
        %v1995 = vadd.f32 %v1870, %v1994
        %v1996 = vpop.f32.mrb[0].mxu0
        %1997 = vmatprep.mubr.bf16.mxu0 0
        %1998 = vmatmul.mubr.bf16.gmra.mrb[0].mxu0 %v1933
        %v1999 = vpop.f32.mrb[0].mxu0
        %v2000 = vadd.f32 %v1875, %v1999
        %v2001 = vpop.f32.mrb[0].mxu0
        %v2002 = vpop.f32.mrb[0].mxu0
        %v2003 = vadd.f32 %v1878, %v2002
        %v2004 = vpop.f32.mrb[0].mxu0
        %2005 = vmatprep.mubr.bf16.mxu0 0
        %2006 = vmatmul.mubr.bf16.gmra.mrb[0].mxu0 %v1936
        %v2007 = vpop.f32.mrb[0].mxu0
        %v2008 = vadd.f32 %v1883, %v2007
        %v2009 = vpop.f32.mrb[0].mxu0
        %v2010 = vpop.f32.mrb[0].mxu0
        %v2011 = vadd.f32 %v1886, %v2010
        %v2012 = vpop.f32.mrb[0].mxu0
        %2013 = vmatprep.mubr.bf16.mxu0 0
        %2014 = vmatmul.mubr.bf16.gmra.mrb[0].mxu0 %v1939
        %v2015 = vpop.f32.mrb[0].mxu0
        %v2016 = vadd.f32 %v1891, %v2015
        %v2017 = vpop.f32.mrb[0].mxu0
        %v2018 = vpop.f32.mrb[0].mxu0
        %v2019 = vadd.f32 %v1894, %v2018
        %v2020 = vpop.f32.mrb[0].mxu0
        %2021 = vmatprep.mubr.bf16.mxu0 0
        %2022 = vmatmul.mubr.bf16.gmra.mrb[0].mxu0 %v1942
        %v2023 = vpop.f32.mrb[0].mxu0
        %v2024 = vadd.f32 %v1899, %v2023
        %v2025 = vpop.f32.mrb[0].mxu0
        %v2026 = vpop.f32.mrb[0].mxu0
        %v2027 = vadd.f32 %v1902, %v2026
        %v2028 = vpop.f32.mrb[0].mxu0
        %2029 = vmatprep.mubr.bf16.mxu0 0
        %2030 = vmatmul.mubr.bf16.gmra.mrb[0].mxu0 %v1945
        %v2031 = vpop.f32.mrb[0].mxu0
        %v2032 = vadd.f32 %v1907, %v2031
        %v2033 = vpop.f32.mrb[0].mxu0
        %v2034 = vpop.f32.mrb[0].mxu0
        %v2035 = vadd.f32 %v1910, %v2034
        %v2036 = vpop.f32.mrb[0].mxu0
        %2037 = vmatprep.mubr.bf16.mxu0 0
        %2038 = vmatmul.mubr.bf16.gmra.mrb[0].mxu0 %v1948
        %v2039 = vpop.f32.mrb[0].mxu0
        %v2040 = vadd.f32 %v1915, %v2039
        %v2041 = vpop.f32.mrb[0].mxu0
        %v2042 = vpop.f32.mrb[0].mxu0
        %v2043 = vadd.f32 %v1918, %v2042
        %v2044 = vpop.f32.mrb[0].mxu0
        %2045 = vmatprep.mubr.bf16.mxu0 0
        %2046 = vmatmul.mubr.bf16.gmra.mrb[0].mxu0 %v1951
        %v2047 = vpop.f32.mrb[0].mxu0
        %v2048 = vadd.f32 %v1923, %v2047
        %v2049 = vpop.f32.mrb[0].mxu0
        %v2050 = vpop.f32.mrb[0].mxu0
        %v2051 = vadd.f32 %v1926, %v2050
        %v2052 = vpop.f32.mrb[0].mxu0
        %2053 = vdwg.mxu0
        %v2054 = vld [vmem:[%s7] sm:$0x1]
        %v2056 = vlaneseq
        %v2057 = vshrl.u32 %v2056, 7
        %v2058 = vsub.s32 0, %v2057
        %v2059 = vrot.slane %v2054, %v2058
        %v2061 = vadd.f32 %v1992, %v2059
        %v2062 = vadd.f32 %v1995, %v2059
        %v2063 = vadd.f32 %v2000, %v2059
        %v2064 = vadd.f32 %v2003, %v2059
        %v2065 = vadd.f32 %v2008, %v2059
        %v2066 = vadd.f32 %v2011, %v2059
        %v2067 = vadd.f32 %v2016, %v2059
        %v2068 = vadd.f32 %v2019, %v2059
        %v2069 = vadd.f32 %v2024, %v2059
        %v2070 = vadd.f32 %v2027, %v2059
        %v2071 = vadd.f32 %v2032, %v2059
        %v2072 = vadd.f32 %v2035, %v2059
        %v2073 = vadd.f32 %v2040, %v2059
        %v2074 = vadd.f32 %v2043, %v2059
        %v2075 = vadd.f32 %v2048, %v2059
        %v2076 = vadd.f32 %v2051, %v2059
        %2077 = vst.msk [vmem:[%s422] sm:$0xff] %vm752, %v2061
        %2078 = vst.msk [vmem:[%s422 + $0x8] sm:$0xff] %vm752, %v2062
        %2079 = vst.msk [vmem:[%s422 + $0x10] sm:$0xff] %vm752, %v2063
        %2080 = vst.msk [vmem:[%s422 + $0x18] sm:$0xff] %vm752, %v2064
        %2081 = vst.msk [vmem:[%s422 + $0x20] sm:$0xff] %vm752, %v2065
        %2082 = vst.msk [vmem:[%s422 + $0x28] sm:$0xff] %vm752, %v2066
        %2083 = vst.msk [vmem:[%s422 + $0x30] sm:$0xff] %vm752, %v2067
        %2084 = vst.msk [vmem:[%s422 + $0x38] sm:$0xff] %vm752, %v2068
        %2085 = vst.msk [vmem:[%s422 + $0x40] sm:$0xff] %vm752, %v2069
        %2086 = vst.msk [vmem:[%s422 + $0x48] sm:$0xff] %vm752, %v2070
        %2087 = vst.msk [vmem:[%s422 + $0x50] sm:$0xff] %vm752, %v2071
        %2088 = vst.msk [vmem:[%s422 + $0x58] sm:$0xff] %vm752, %v2072
        %2089 = vst.msk [vmem:[%s422 + $0x60] sm:$0xff] %vm752, %v2073
        %2090 = vst.msk [vmem:[%s422 + $0x68] sm:$0xff] %vm752, %v2074
        %2091 = vst.msk [vmem:[%s422 + $0x70] sm:$0xff] %vm752, %v2075
        %2092 = vst.msk [vmem:[%s422 + $0x78] sm:$0xff] %vm752, %v2076
      $region60: #{nonlocal_psp_correlation.5} parent=51 // pred_fallthru
        _
      %s2093 = smul.u32 16, %s25
      %p2094 = scmp.lt.s32.totalorder %s24, 1
      %s2095 = scalar_select %p2094, %s24, 1
      %p2096 = scmp.lt.s32.totalorder %s2093, 79
      %s2097 = scalar_select %p2096, %s2093, 79
      %s2098 = smul.addr %s2095, 80
      %s2099 = sadd.s32 %s2097, %s2098
      %s2100 = smul.addr %s2099, 8
      %s2101 = scalar_lea.vmem %s8, %s2100
      // Predicated region
      $region61: #{nonlocal_psp_correlation.5} parent=51 // pred_check
        %p2102 = pneg %p247
      $region62: #{nonlocal_psp_correlation.5} parent=51 // pred_check_branch
        %2104 = sbr.rel (%p2102) target = $region64
      $region63: #{nonlocal_psp_correlation.5} parent=51 // pred_region
        %s2105 = smul.u32 16, %s25
      $region64: #{nonlocal_psp_correlation.5} parent=51 // pred_fallthru
        _
    $region52: #{nonlocal_psp_correlation.5} parent=5 // pred_fallthru
      _
    %p2106 = scmp.le.s32.totalorder 2, %s14
    // Predicated region
    $region65: #{nonlocal_psp_correlation.5} parent=5 // pred_check
      %p2107 = pneg %p2106
    $region66: #{nonlocal_psp_correlation.5} parent=5 // pred_check_branch
      %2109 = sbr.rel (%p2107) target = $region68
    $region67: #{nonlocal_psp_correlation.5} parent=5 // pred_region
      %s2110 = ssub.s32 %s14, 2
      // Predicated region
      $region69: #{nonlocal_psp_correlation.5} parent=67 // pred_check
        %p2111 = pneg %p253
      $region70: #{nonlocal_psp_correlation.5} parent=67 // pred_check_branch
        %2113 = sbr.rel (%p2111) target = $region72
      $region71: #{nonlocal_psp_correlation.5} parent=67 // pred_region
        %s2114 = smul.u32 16, %s28
        %p2115 = scmp.lt.s32.totalorder %s27, 1
        %s2116 = scalar_select %p2115, %s27, 1
        %p2117 = scmp.lt.s32.totalorder %s2114, 79
        %s2118 = scalar_select %p2117, %s2114, 79
        %s2119 = smul.addr %s2116, 80
        %s2120 = sadd.s32 %s2118, %s2119
        %s2121 = smul.addr %s2120, 8
        %s2122 = scalar_lea.vmem %s8, %s2121
      $region72: #{nonlocal_psp_correlation.5} parent=67 // pred_fallthru
        _
    $region68: #{nonlocal_psp_correlation.5} parent=5 // pred_fallthru
      _
  $region6: #{nonlocal_psp_correlation.5} parent=0 // loop_footer
    %s18 = sadd.s32 1, %s14
  $region7: #{nonlocal_psp_correlation.5} parent=0 // loop_footer_branch
    %13 = sbr.rel target = $region3
  $region8: #{nonlocal_psp_correlation.5} parent=0 // loop_exit
    _

</llo_original>
